<compile_context>
chip_gen: v7x
topology: tpu7x:2x2x1
jax: 0.10.0
libtpu: 0.0.40
codegen_flags: <defaults>
</compile_context>

<pallas_src>
import functools

import jax
import jax.numpy as jnp
from jax.experimental import pallas as pl
from jax.experimental.pallas import tpu as pltpu


HIDDEN_LOGICAL = 684   # hidden width in the PyTorch module
HIDDEN_PADDED = 768    # padded to a multiple of the 128-lane vreg / MXU tile
LANES = 128


def _round_up(n, m):
    return ((n + m - 1) // m) * m


# ---------------------------------------------------------------------------
# Fused kernel: encoder -> reparameterization -> decoder, one batch row-tile
# per grid step.  All weights are bf16 [in, out]; biases f32 [1, out].
# ---------------------------------------------------------------------------

def _vae_kernel(latent_dim, enc_width,
                x_ref, tau_ref,
                ew1, eb1, ew2, eb2, ew3, eb3, ew4, eb4,
                dw1, db1, dw2, db2, dw3, db3, dw4, db4,
                gen_ref, enc_ref):
    # ----- encoder -----
    h = x_ref[...]                                         # bf16 (bm, in_dim)
    for w_ref, b_ref in ((ew1, eb1), (ew2, eb2), (ew3, eb3)):
        h = jnp.maximum(
            jnp.dot(h, w_ref[...], preferred_element_type=jnp.float32)
            + b_ref[...], 0.0).astype(jnp.bfloat16)
    # Lane-dense (bm, 128) block: [mean | logvar | exact zeros].
    enc = jnp.dot(h, ew4[...], preferred_element_type=jnp.float32) + eb4[...]
    enc_ref[...] = enc

    # ----- reparameterization, fused, 128-wide (no sub-lane slicing) -----
    # XLU roll aligns logvar lanes [latent:2*latent] onto the mean lanes.
    logvar_aligned = pltpu.roll(enc, shift=enc_width - latent_dim, axis=1)
    # tau is zero-padded beyond `latent_dim` lanes, so only the first
    # `latent_dim` lanes of z are meaningful; the rest stay finite and hit
    # the exactly-zero padded rows of dw1, contributing nothing.
    z = (enc + tau_ref[...] * jnp.exp(0.5 * logvar_aligned)).astype(jnp.bfloat16)

    # ----- decoder -----
    h = z
    for w_ref, b_ref in ((dw1, db1), (dw2, db2), (dw3, db3)):
        h = jnp.maximum(
            jnp.dot(h, w_ref[...], preferred_element_type=jnp.float32)
            + b_ref[...], 0.0).astype(jnp.bfloat16)
    gen_ref[...] = jnp.tanh(
        jnp.dot(h, dw4[...], preferred_element_type=jnp.float32) + db4[...])


# ---------------------------------------------------------------------------
# Wrapper: single batch-tiled pallas_call with VMEM-resident weights.
# ---------------------------------------------------------------------------

def vae_forward(x, tau, enc_params, dec_params, latent_dim):
    """Full VAE forward.  Returns (gen_out, mean, logvar)."""
    batch, input_dim = x.shape
    output_dim = dec_params[-1][0].shape[1]
    enc_width = enc_params[-1][0].shape[1]          # 2*latent padded to 128
    assert enc_width == LANES and 2 * latent_dim <= LANES

    # Batch tiling: single tile for tiny batches; otherwise >=2 grid steps so
    # v7x's two TensorCores both get tiles, capped at 512 rows (VMEM is ample).
    padded8 = _round_up(batch, 8)
    if padded8 <= 16:
        block_m = padded8
    else:
        block_m = min(512, _round_up(pl.cdiv(padded8, 2), 8))
    padded_batch = _round_up(padded8, block_m)

    x_p = jnp.pad(x, ((0, padded_batch - batch), (0, 0))).astype(jnp.bfloat16)
    tau_p = jnp.pad(tau, ((0, padded_batch - batch),
                          (0, enc_width - latent_dim)))

    data_inputs = [x_p, tau_p]
    data_specs = [pl.BlockSpec((block_m, input_dim), lambda i: (i, 0)),
                  pl.BlockSpec((block_m, enc_width), lambda i: (i, 0))]

    params = list(enc_params) + list(dec_params)
    param_flat, param_specs = [], []
    for (w, b) in params:
        param_flat += [w, b]
        # Constant index map -> same block every grid step -> VMEM-resident.
        param_specs += [pl.BlockSpec(w.shape, lambda i: (0, 0)),
                        pl.BlockSpec(b.shape, lambda i: (0, 0))]

    # Advisory cost estimate, consistent with the padded shapes actually moved.
    flops = 2 * padded_batch * sum(int(w.shape[0]) * int(w.shape[1])
                                   for (w, _) in params)
    bytes_accessed = (
        int(x_p.size) * x_p.dtype.itemsize
        + int(tau_p.size) * tau_p.dtype.itemsize
        + sum(int(w.size) * w.dtype.itemsize + int(b.size) * b.dtype.itemsize
              for (w, b) in params)
        + padded_batch * (output_dim + enc_width) * 4)
    cost = pl.CostEstimate(
        flops=flops,
        transcendentals=padded_batch * (enc_width + output_dim),
        bytes_accessed=bytes_accessed)

    kernel = functools.partial(_vae_kernel, latent_dim, enc_width)
    gen_out, enc_out = pl.pallas_call(
        kernel,
        out_shape=(jax.ShapeDtypeStruct((padded_batch, output_dim), jnp.float32),
                   jax.ShapeDtypeStruct((padded_batch, enc_width), jnp.float32)),
        grid=(padded_batch // block_m,),
        in_specs=data_specs + param_specs,
        out_specs=(pl.BlockSpec((block_m, output_dim), lambda i: (i, 0)),
                   pl.BlockSpec((block_m, enc_width), lambda i: (i, 0))),
        compiler_params=pltpu.CompilerParams(
            dimension_semantics=("parallel",)),
        cost_estimate=cost,
    )(*data_inputs, *param_flat)

    mean = enc_out[:batch, :latent_dim]
    logvar = enc_out[:batch, latent_dim:2 * latent_dim]
    return gen_out[:batch], mean, logvar


# ---------------------------------------------------------------------------
# Synthetic parameters (nn.Linear shapes, stored transposed [in, out], exact
# zero padding to lane-aligned dims, bf16 weights / f32 biases).
# ---------------------------------------------------------------------------

def _init_linear(key, fan_in, fan_out, pad_in=0, pad_out=0):
    kw, kb = jax.random.split(key)
    bound = float(fan_in) ** -0.5
    w = jax.random.uniform(kw, (fan_in, fan_out), jnp.float32, -bound, bound)
    b = jax.random.uniform(kb, (1, fan_out), jnp.float32, -bound, bound)
    w = jnp.pad(w, ((0, pad_in), (0, pad_out)))     # exact zero padding
    b = jnp.pad(b, ((0, 0), (0, pad_out)))
    return w.astype(jnp.bfloat16), b


def _init_mlp(key, dims):
    params = []
    for (fan_in, fan_out, pad_in, pad_out) in dims:
        key, sub = jax.random.split(key)
        params.append(_init_linear(sub, fan_in, fan_out, pad_in, pad_out))
    return params


def init_encoder_params(key, input_dim, latent_dim):
    hid_pad = HIDDEN_PADDED - HIDDEN_LOGICAL
    out_pad = LANES - 2 * latent_dim            # 64 -> 128 lane-dense output
    return _init_mlp(key, [(input_dim, HIDDEN_LOGICAL, 0, hid_pad),
                           (HIDDEN_LOGICAL, 512, hid_pad, 0),
                           (512, 256, 0, 0),
                           (256, 2 * latent_dim, 0, out_pad)])


def init_decoder_params(key, latent_dim, output_dim):
    hid_pad = HIDDEN_PADDED - HIDDEN_LOGICAL
    in_pad = LANES - latent_dim                 # 32 -> 128 zero rows absorb padded z lanes
    return _init_mlp(key, [(latent_dim, HIDDEN_LOGICAL, in_pad, hid_pad),
                           (HIDDEN_LOGICAL, 512, hid_pad, 0),
                           (512, 256, 0, 0),
                           (256, output_dim, 0, 0)])


# ---------------------------------------------------------------------------
# Pure-JAX reference (same bf16 weight / activation rounding, f32 accumulate).
# ---------------------------------------------------------------------------

def _ref_mlp(h, params, final_act=None):
    n = len(params)
    for i, (w, b) in enumerate(params):
        h = jnp.dot(h.astype(jnp.bfloat16).astype(jnp.float32),
                    w.astype(jnp.float32)) + b
        if i < n - 1:
            h = jnp.maximum(h, 0.0)
    return final_act(h) if final_act is not None else h


if __name__ == "__main__":
    batch = 8
    airfoil_dim = 256    # input_dim == output_dim of the VAE
    latent_dim = 32

    key = jax.random.PRNGKey(0)
    key, kx, ktau, kenc, kdec = jax.random.split(key, 5)
    x = jax.random.normal(kx, (batch, airfoil_dim), jnp.float32)
    # torch.randn_like replaced by an explicit normal sample for determinism.
    tau = jax.random.normal(ktau, (batch, latent_dim), jnp.float32)
    enc_params = init_encoder_params(kenc, airfoil_dim, latent_dim)
    dec_params = init_decoder_params(kdec, latent_dim, airfoil_dim)

    gen_out, mean, logvar = vae_forward(x, tau, enc_params, dec_params,
                                        latent_dim)
    jax.block_until_ready((gen_out, mean, logvar))

    # --- encoder check ---
    ref_enc = _ref_mlp(x, enc_params)                      # (batch, 128)
    ref_mean = ref_enc[:, :latent_dim]
    ref_logvar = ref_enc[:, latent_dim:2 * latent_dim]
    assert mean.shape == (batch, latent_dim)
    assert logvar.shape == (batch, latent_dim)
    assert jnp.allclose(mean, ref_mean, atol=2e-3, rtol=2e-3)
    assert jnp.allclose(logvar, ref_logvar, atol=2e-3, rtol=2e-3)

    # --- decoder check (reference fed the kernel's own mean/logvar to isolate
    #     the decoder from bf16 rounding-boundary effects) ---
    z = mean + tau * jnp.exp(0.5 * logvar)
    z_pad = jnp.pad(z, ((0, 0), (0, LANES - latent_dim)))  # hits zero dw1 rows
    ref_gen = _ref_mlp(z_pad, dec_params, final_act=jnp.tanh)
    assert gen_out.shape == (batch, airfoil_dim)
    assert jnp.allclose(gen_out, ref_gen, atol=2e-3, rtol=2e-3)

    # --- end-to-end check (looser: tiny mean/logvar deltas can flip bf16
    #     rounding in the decoder's first matmul) ---
    z_e2e = ref_mean + tau * jnp.exp(0.5 * ref_logvar)
    ref_gen_e2e = _ref_mlp(jnp.pad(z_e2e, ((0, 0), (0, LANES - latent_dim))),
                           dec_params, final_act=jnp.tanh)
    assert jnp.allclose(gen_out, ref_gen_e2e, atol=5e-2, rtol=5e-2)

    print("KERNEL_OK")
</pallas_src>

<mosaic_0001>
module attributes {stable_mosaic.version = 11 : i64} {
  func.func @_vae_kernel(%arg0: i32, %arg1: memref<8x256xbf16, #tpu.memory_space<vmem>>, %arg2: memref<8x128xf32, #tpu.memory_space<vmem>>, %arg3: memref<256x768xbf16, #tpu.memory_space<vmem>>, %arg4: memref<1x768xf32, #tpu.memory_space<vmem>>, %arg5: memref<768x512xbf16, #tpu.memory_space<vmem>>, %arg6: memref<1x512xf32, #tpu.memory_space<vmem>>, %arg7: memref<512x256xbf16, #tpu.memory_space<vmem>>, %arg8: memref<1x256xf32, #tpu.memory_space<vmem>>, %arg9: memref<256x128xbf16, #tpu.memory_space<vmem>>, %arg10: memref<1x128xf32, #tpu.memory_space<vmem>>, %arg11: memref<128x768xbf16, #tpu.memory_space<vmem>>, %arg12: memref<1x768xf32, #tpu.memory_space<vmem>>, %arg13: memref<768x512xbf16, #tpu.memory_space<vmem>>, %arg14: memref<1x512xf32, #tpu.memory_space<vmem>>, %arg15: memref<512x256xbf16, #tpu.memory_space<vmem>>, %arg16: memref<1x256xf32, #tpu.memory_space<vmem>>, %arg17: memref<256x256xbf16, #tpu.memory_space<vmem>>, %arg18: memref<1x256xf32, #tpu.memory_space<vmem>>, %arg19: memref<8x256xf32, #tpu.memory_space<vmem>>, %arg20: memref<8x128xf32, #tpu.memory_space<vmem>>) attributes {dimension_semantics = [#tpu.dimension_semantics<parallel>], iteration_bounds = array<i64: 1>, scalar_prefetch = 0 : i64, scratch_operands = 0 : i64, tpu.core_type = #tpu.core_type<tc>, window_params = [{transform_indices = @transform_0, window_bounds = array<i64: 8, 256>}, {transform_indices = @transform_1, window_bounds = array<i64: 8, 128>}, {pipeline_mode = #tpu.pipeline_mode<synchronous>, transform_indices = @transform_2, window_bounds = array<i64: 256, 768>}, {pipeline_mode = #tpu.pipeline_mode<synchronous>, transform_indices = @transform_3, window_bounds = array<i64: 1, 768>}, {pipeline_mode = #tpu.pipeline_mode<synchronous>, transform_indices = @transform_4, window_bounds = array<i64: 768, 512>}, {pipeline_mode = #tpu.pipeline_mode<synchronous>, transform_indices = @transform_5, window_bounds = array<i64: 1, 512>}, {pipeline_mode = #tpu.pipeline_mode<synchronous>, transform_indices = @transform_6, window_bounds = array<i64: 512, 256>}, {pipeline_mode = #tpu.pipeline_mode<synchronous>, transform_indices = @transform_7, window_bounds = array<i64: 1, 256>}, {pipeline_mode = #tpu.pipeline_mode<synchronous>, transform_indices = @transform_8, window_bounds = array<i64: 256, 128>}, {pipeline_mode = #tpu.pipeline_mode<synchronous>, transform_indices = @transform_9, window_bounds = array<i64: 1, 128>}, {pipeline_mode = #tpu.pipeline_mode<synchronous>, transform_indices = @transform_10, window_bounds = array<i64: 128, 768>}, {pipeline_mode = #tpu.pipeline_mode<synchronous>, transform_indices = @transform_11, window_bounds = array<i64: 1, 768>}, {pipeline_mode = #tpu.pipeline_mode<synchronous>, transform_indices = @transform_12, window_bounds = array<i64: 768, 512>}, {pipeline_mode = #tpu.pipeline_mode<synchronous>, transform_indices = @transform_13, window_bounds = array<i64: 1, 512>}, {pipeline_mode = #tpu.pipeline_mode<synchronous>, transform_indices = @transform_14, window_bounds = array<i64: 512, 256>}, {pipeline_mode = #tpu.pipeline_mode<synchronous>, transform_indices = @transform_15, window_bounds = array<i64: 1, 256>}, {pipeline_mode = #tpu.pipeline_mode<synchronous>, transform_indices = @transform_16, window_bounds = array<i64: 256, 256>}, {pipeline_mode = #tpu.pipeline_mode<synchronous>, transform_indices = @transform_17, window_bounds = array<i64: 1, 256>}, {transform_indices = @transform_18, window_bounds = array<i64: 8, 256>}, {transform_indices = @transform_19, window_bounds = array<i64: 8, 128>}]} {
    %c0 = arith.constant 0 : index
    %c0_0 = arith.constant 0 : index
    %0 = vector.load %arg1[%c0, %c0_0] : memref<8x256xbf16, #tpu.memory_space<vmem>>, vector<8x256xbf16>
    %c0_1 = arith.constant 0 : index
    %c0_2 = arith.constant 0 : index
    %1 = vector.load %arg3[%c0_1, %c0_2] : memref<256x768xbf16, #tpu.memory_space<vmem>>, vector<256x768xbf16>
    %cst = arith.constant dense<0.000000e+00> : vector<8x768xf32>
    %2 = tpu.matmul %0, %1, %cst {dimension_numbers = #tpu.dot_dimension_numbers<[1], [0], [0], [1], [0, 0, 1, 1], [], []>} : vector<8x256xbf16>, vector<256x768xbf16>, vector<8x768xf32> -> vector<8x768xf32>
    %c0_3 = arith.constant 0 : index
    %c0_4 = arith.constant 0 : index
    %3 = vector.load %arg4[%c0_3, %c0_4] : memref<1x768xf32, #tpu.memory_space<vmem>>, vector<1x768xf32>
    %4 = vector.broadcast %3 : vector<1x768xf32> to vector<8x768xf32>
    %5 = arith.addf %2, %4 : vector<8x768xf32>
    %cst_5 = arith.constant 0.000000e+00 : f32
    %6 = vector.broadcast %cst_5 : f32 to vector<8x768xf32>
    %7 = arith.maximumf %5, %6 : vector<8x768xf32>
    %8 = arith.truncf %7 : vector<8x768xf32> to vector<8x768xbf16>
    %c0_6 = arith.constant 0 : index
    %c0_7 = arith.constant 0 : index
    %9 = vector.load %arg5[%c0_6, %c0_7] : memref<768x512xbf16, #tpu.memory_space<vmem>>, vector<768x512xbf16>
    %cst_8 = arith.constant dense<0.000000e+00> : vector<8x512xf32>
    %10 = tpu.matmul %8, %9, %cst_8 {dimension_numbers = #tpu.dot_dimension_numbers<[1], [0], [0], [1], [0, 0, 1, 1], [], []>} : vector<8x768xbf16>, vector<768x512xbf16>, vector<8x512xf32> -> vector<8x512xf32>
    %c0_9 = arith.constant 0 : index
    %c0_10 = arith.constant 0 : index
    %11 = vector.load %arg6[%c0_9, %c0_10] : memref<1x512xf32, #tpu.memory_space<vmem>>, vector<1x512xf32>
    %12 = vector.broadcast %11 : vector<1x512xf32> to vector<8x512xf32>
    %13 = arith.addf %10, %12 : vector<8x512xf32>
    %cst_11 = arith.constant 0.000000e+00 : f32
    %14 = vector.broadcast %cst_11 : f32 to vector<8x512xf32>
    %15 = arith.maximumf %13, %14 : vector<8x512xf32>
    %16 = arith.truncf %15 : vector<8x512xf32> to vector<8x512xbf16>
    %c0_12 = arith.constant 0 : index
    %c0_13 = arith.constant 0 : index
    %17 = vector.load %arg7[%c0_12, %c0_13] : memref<512x256xbf16, #tpu.memory_space<vmem>>, vector<512x256xbf16>
    %cst_14 = arith.constant dense<0.000000e+00> : vector<8x256xf32>
    %18 = tpu.matmul %16, %17, %cst_14 {dimension_numbers = #tpu.dot_dimension_numbers<[1], [0], [0], [1], [0, 0, 1, 1], [], []>} : vector<8x512xbf16>, vector<512x256xbf16>, vector<8x256xf32> -> vector<8x256xf32>
    %c0_15 = arith.constant 0 : index
    %c0_16 = arith.constant 0 : index
    %19 = vector.load %arg8[%c0_15, %c0_16] : memref<1x256xf32, #tpu.memory_space<vmem>>, vector<1x256xf32>
    %20 = vector.broadcast %19 : vector<1x256xf32> to vector<8x256xf32>
    %21 = arith.addf %18, %20 : vector<8x256xf32>
    %cst_17 = arith.constant 0.000000e+00 : f32
    %22 = vector.broadcast %cst_17 : f32 to vector<8x256xf32>
    %23 = arith.maximumf %21, %22 : vector<8x256xf32>
    %24 = arith.truncf %23 : vector<8x256xf32> to vector<8x256xbf16>
    %c0_18 = arith.constant 0 : index
    %c0_19 = arith.constant 0 : index
    %25 = vector.load %arg9[%c0_18, %c0_19] : memref<256x128xbf16, #tpu.memory_space<vmem>>, vector<256x128xbf16>
    %cst_20 = arith.constant dense<0.000000e+00> : vector<8x128xf32>
    %26 = tpu.matmul %24, %25, %cst_20 {dimension_numbers = #tpu.dot_dimension_numbers<[1], [0], [0], [1], [0, 0, 1, 1], [], []>} : vector<8x256xbf16>, vector<256x128xbf16>, vector<8x128xf32> -> vector<8x128xf32>
    %c0_21 = arith.constant 0 : index
    %c0_22 = arith.constant 0 : index
    %27 = vector.load %arg10[%c0_21, %c0_22] : memref<1x128xf32, #tpu.memory_space<vmem>>, vector<1x128xf32>
    %28 = vector.broadcast %27 : vector<1x128xf32> to vector<8x128xf32>
    %29 = arith.addf %26, %28 : vector<8x128xf32>
    %c0_23 = arith.constant 0 : index
    %c0_24 = arith.constant 0 : index
    %30 = vector.load %arg20[%c0_23, %c0_24] : memref<8x128xf32, #tpu.memory_space<vmem>>, vector<8x128xf32>
    tpu.vector_store %arg20[%c0_23, %c0_24], %29 {strides = array<i32>} : memref<8x128xf32, #tpu.memory_space<vmem>>, vector<8x128xf32>,
    %c96_i32 = arith.constant 96 : i32
    %31 = tpu.dynamic_rotate %29 by %c96_i32 dim 1 : vector<8x128xf32>, i32 -> vector<8x128xf32>
    %c0_25 = arith.constant 0 : index
    %c0_26 = arith.constant 0 : index
    %32 = vector.load %arg2[%c0_25, %c0_26] : memref<8x128xf32, #tpu.memory_space<vmem>>, vector<8x128xf32>
    %cst_27 = arith.constant 5.000000e-01 : f32
    %33 = vector.broadcast %cst_27 : f32 to vector<8x128xf32>
    %34 = arith.mulf %33, %31 : vector<8x128xf32>
    %35 = math.exp %34 : vector<8x128xf32>
    %36 = arith.mulf %32, %35 : vector<8x128xf32>
    %37 = arith.addf %29, %36 : vector<8x128xf32>
    %38 = arith.truncf %37 : vector<8x128xf32> to vector<8x128xbf16>
    %c0_28 = arith.constant 0 : index
    %c0_29 = arith.constant 0 : index
    %39 = vector.load %arg11[%c0_28, %c0_29] : memref<128x768xbf16, #tpu.memory_space<vmem>>, vector<128x768xbf16>
    %cst_30 = arith.constant dense<0.000000e+00> : vector<8x768xf32>
    %40 = tpu.matmul %38, %39, %cst_30 {dimension_numbers = #tpu.dot_dimension_numbers<[1], [0], [0], [1], [0, 0, 1, 1], [], []>} : vector<8x128xbf16>, vector<128x768xbf16>, vector<8x768xf32> -> vector<8x768xf32>
    %c0_31 = arith.constant 0 : index
    %c0_32 = arith.constant 0 : index
    %41 = vector.load %arg12[%c0_31, %c0_32] : memref<1x768xf32, #tpu.memory_space<vmem>>, vector<1x768xf32>
    %42 = vector.broadcast %41 : vector<1x768xf32> to vector<8x768xf32>
    %43 = arith.addf %40, %42 : vector<8x768xf32>
    %cst_33 = arith.constant 0.000000e+00 : f32
    %44 = vector.broadcast %cst_33 : f32 to vector<8x768xf32>
    %45 = arith.maximumf %43, %44 : vector<8x768xf32>
    %46 = arith.truncf %45 : vector<8x768xf32> to vector<8x768xbf16>
    %c0_34 = arith.constant 0 : index
    %c0_35 = arith.constant 0 : index
    %47 = vector.load %arg13[%c0_34, %c0_35] : memref<768x512xbf16, #tpu.memory_space<vmem>>, vector<768x512xbf16>
    %cst_36 = arith.constant dense<0.000000e+00> : vector<8x512xf32>
    %48 = tpu.matmul %46, %47, %cst_36 {dimension_numbers = #tpu.dot_dimension_numbers<[1], [0], [0], [1], [0, 0, 1, 1], [], []>} : vector<8x768xbf16>, vector<768x512xbf16>, vector<8x512xf32> -> vector<8x512xf32>
    %c0_37 = arith.constant 0 : index
    %c0_38 = arith.constant 0 : index
    %49 = vector.load %arg14[%c0_37, %c0_38] : memref<1x512xf32, #tpu.memory_space<vmem>>, vector<1x512xf32>
    %50 = vector.broadcast %49 : vector<1x512xf32> to vector<8x512xf32>
    %51 = arith.addf %48, %50 : vector<8x512xf32>
    %cst_39 = arith.constant 0.000000e+00 : f32
    %52 = vector.broadcast %cst_39 : f32 to vector<8x512xf32>
    %53 = arith.maximumf %51, %52 : vector<8x512xf32>
    %54 = arith.truncf %53 : vector<8x512xf32> to vector<8x512xbf16>
    %c0_40 = arith.constant 0 : index
    %c0_41 = arith.constant 0 : index
    %55 = vector.load %arg15[%c0_40, %c0_41] : memref<512x256xbf16, #tpu.memory_space<vmem>>, vector<512x256xbf16>
    %cst_42 = arith.constant dense<0.000000e+00> : vector<8x256xf32>
    %56 = tpu.matmul %54, %55, %cst_42 {dimension_numbers = #tpu.dot_dimension_numbers<[1], [0], [0], [1], [0, 0, 1, 1], [], []>} : vector<8x512xbf16>, vector<512x256xbf16>, vector<8x256xf32> -> vector<8x256xf32>
    %c0_43 = arith.constant 0 : index
    %c0_44 = arith.constant 0 : index
    %57 = vector.load %arg16[%c0_43, %c0_44] : memref<1x256xf32, #tpu.memory_space<vmem>>, vector<1x256xf32>
    %58 = vector.broadcast %57 : vector<1x256xf32> to vector<8x256xf32>
    %59 = arith.addf %56, %58 : vector<8x256xf32>
    %cst_45 = arith.constant 0.000000e+00 : f32
    %60 = vector.broadcast %cst_45 : f32 to vector<8x256xf32>
    %61 = arith.maximumf %59, %60 : vector<8x256xf32>
    %62 = arith.truncf %61 : vector<8x256xf32> to vector<8x256xbf16>
    %c0_46 = arith.constant 0 : index
    %c0_47 = arith.constant 0 : index
    %63 = vector.load %arg17[%c0_46, %c0_47] : memref<256x256xbf16, #tpu.memory_space<vmem>>, vector<256x256xbf16>
    %cst_48 = arith.constant dense<0.000000e+00> : vector<8x256xf32>
    %64 = tpu.matmul %62, %63, %cst_48 {dimension_numbers = #tpu.dot_dimension_numbers<[1], [0], [0], [1], [0, 0, 1, 1], [], []>} : vector<8x256xbf16>, vector<256x256xbf16>, vector<8x256xf32> -> vector<8x256xf32>
    %c0_49 = arith.constant 0 : index
    %c0_50 = arith.constant 0 : index
    %65 = vector.load %arg18[%c0_49, %c0_50] : memref<1x256xf32, #tpu.memory_space<vmem>>, vector<1x256xf32>
    %66 = vector.broadcast %65 : vector<1x256xf32> to vector<8x256xf32>
    %67 = arith.addf %64, %66 : vector<8x256xf32>
    %68 = math.tanh %67 : vector<8x256xf32>
    %c0_51 = arith.constant 0 : index
    %c0_52 = arith.constant 0 : index
    %69 = vector.load %arg19[%c0_51, %c0_52] : memref<8x256xf32, #tpu.memory_space<vmem>>, vector<8x256xf32>
    tpu.vector_store %arg19[%c0_51, %c0_52], %68 {strides = array<i32>} : memref<8x256xf32, #tpu.memory_space<vmem>>, vector<8x256xf32>,
    return
  }
  func.func @transform_0(%arg0: i32) -> (i32, i32) {
    %c0_i32 = arith.constant 0 : i32
    %c0_i32_0 = arith.constant 0 : i32
    return %arg0, %c0_i32 : i32, i32
  }
  func.func @transform_1(%arg0: i32) -> (i32, i32) {
    %c0_i32 = arith.constant 0 : i32
    %c0_i32_0 = arith.constant 0 : i32
    return %arg0, %c0_i32 : i32, i32
  }
  func.func @transform_2(%arg0: i32) -> (i32, i32) {
    %c0_i32 = arith.constant 0 : i32
    %c0_i32_0 = arith.constant 0 : i32
    %c0_i32_1 = arith.constant 0 : i32
    return %c0_i32, %c0_i32_0 : i32, i32
  }
  func.func @transform_3(%arg0: i32) -> (i32, i32) {
    %c0_i32 = arith.constant 0 : i32
    %c0_i32_0 = arith.constant 0 : i32
    %c0_i32_1 = arith.constant 0 : i32
    return %c0_i32, %c0_i32_0 : i32, i32
  }
  func.func @transform_4(%arg0: i32) -> (i32, i32) {
    %c0_i32 = arith.constant 0 : i32
    %c0_i32_0 = arith.constant 0 : i32
    %c0_i32_1 = arith.constant 0 : i32
    return %c0_i32, %c0_i32_0 : i32, i32
  }
  func.func @transform_5(%arg0: i32) -> (i32, i32) {
    %c0_i32 = arith.constant 0 : i32
    %c0_i32_0 = arith.constant 0 : i32
    %c0_i32_1 = arith.constant 0 : i32
    return %c0_i32, %c0_i32_0 : i32, i32
  }
  func.func @transform_6(%arg0: i32) -> (i32, i32) {
    %c0_i32 = arith.constant 0 : i32
    %c0_i32_0 = arith.constant 0 : i32
    %c0_i32_1 = arith.constant 0 : i32
    return %c0_i32, %c0_i32_0 : i32, i32
  }
  func.func @transform_7(%arg0: i32) -> (i32, i32) {
    %c0_i32 = arith.constant 0 : i32
    %c0_i32_0 = arith.constant 0 : i32
    %c0_i32_1 = arith.constant 0 : i32
    return %c0_i32, %c0_i32_0 : i32, i32
  }
  func.func @transform_8(%arg0: i32) -> (i32, i32) {
    %c0_i32 = arith.constant 0 : i32
    %c0_i32_0 = arith.constant 0 : i32
    %c0_i32_1 = arith.constant 0 : i32
    return %c0_i32, %c0_i32_0 : i32, i32
  }
  func.func @transform_9(%arg0: i32) -> (i32, i32) {
    %c0_i32 = arith.constant 0 : i32
    %c0_i32_0 = arith.constant 0 : i32
    %c0_i32_1 = arith.constant 0 : i32
    return %c0_i32, %c0_i32_0 : i32, i32
  }
  func.func @transform_10(%arg0: i32) -> (i32, i32) {
    %c0_i32 = arith.constant 0 : i32
    %c0_i32_0 = arith.constant 0 : i32
    %c0_i32_1 = arith.constant 0 : i32
    return %c0_i32, %c0_i32_0 : i32, i32
  }
  func.func @transform_11(%arg0: i32) -> (i32, i32) {
    %c0_i32 = arith.constant 0 : i32
    %c0_i32_0 = arith.constant 0 : i32
    %c0_i32_1 = arith.constant 0 : i32
    return %c0_i32, %c0_i32_0 : i32, i32
  }
  func.func @transform_12(%arg0: i32) -> (i32, i32) {
    %c0_i32 = arith.constant 0 : i32
    %c0_i32_0 = arith.constant 0 : i32
    %c0_i32_1 = arith.constant 0 : i32
    return %c0_i32, %c0_i32_0 : i32, i32
  }
  func.func @transform_13(%arg0: i32) -> (i32, i32) {
    %c0_i32 = arith.constant 0 : i32
    %c0_i32_0 = arith.constant 0 : i32
    %c0_i32_1 = arith.constant 0 : i32
    return %c0_i32, %c0_i32_0 : i32, i32
  }
  func.func @transform_14(%arg0: i32) -> (i32, i32) {
    %c0_i32 = arith.constant 0 : i32
    %c0_i32_0 = arith.constant 0 : i32
    %c0_i32_1 = arith.constant 0 : i32
    return %c0_i32, %c0_i32_0 : i32, i32
  }
  func.func @transform_15(%arg0: i32) -> (i32, i32) {
    %c0_i32 = arith.constant 0 : i32
    %c0_i32_0 = arith.constant 0 : i32
    %c0_i32_1 = arith.constant 0 : i32
    return %c0_i32, %c0_i32_0 : i32, i32
  }
  func.func @transform_16(%arg0: i32) -> (i32, i32) {
    %c0_i32 = arith.constant 0 : i32
    %c0_i32_0 = arith.constant 0 : i32
    %c0_i32_1 = arith.constant 0 : i32
    return %c0_i32, %c0_i32_0 : i32, i32
  }
  func.func @transform_17(%arg0: i32) -> (i32, i32) {
    %c0_i32 = arith.constant 0 : i32
    %c0_i32_0 = arith.constant 0 : i32
    %c0_i32_1 = arith.constant 0 : i32
    return %c0_i32, %c0_i32_0 : i32, i32
  }
  func.func @transform_18(%arg0: i32) -> (i32, i32) {
    %c0_i32 = arith.constant 0 : i32
    %c0_i32_0 = arith.constant 0 : i32
    return %arg0, %c0_i32 : i32, i32
  }
  func.func @transform_19(%arg0: i32) -> (i32, i32) {
    %c0_i32 = arith.constant 0 : i32
    %c0_i32_0 = arith.constant 0 : i32
    return %arg0, %c0_i32 : i32, i32
  }
}

</mosaic_0001>

<llo_original>
// kernel: tpu_custom_call.1
$region0: #{tpu_custom_call.1}
  #allocation0 [shape = 'u32[]', space=smem, size = 0x4, offset = 0x4, fixed_abs, tag = 'smem constant byte address 0x4 - core index']
  #allocation1 [shape = 'u32[144,128]{1,0:T(1,128)}', space=vmem, size = 0x12000, scoped, tag = 'internal scratch']
  %s0 = inlined_call_operand.hbm [shape: bf16[8,256], index: 0, kind: input, shape index: {}]
  %s1 = inlined_call_operand.hbm [shape: f32[8,128], index: 1, kind: input, shape index: {}]
  %s2 = inlined_call_operand.hbm [shape: bf16[256,768], index: 2, kind: input, shape index: {}]
  %s3 = inlined_call_operand.vmem [shape: f32[1,768], index: 3, kind: input, shape index: {}]
  %s4 = inlined_call_operand.hbm [shape: bf16[768,512], index: 4, kind: input, shape index: {}]
  %s5 = inlined_call_operand.vmem [shape: f32[1,512], index: 5, kind: input, shape index: {}]
  %s6 = inlined_call_operand.hbm [shape: bf16[512,256], index: 6, kind: input, shape index: {}]
  %s7 = inlined_call_operand.vmem [shape: f32[1,256], index: 7, kind: input, shape index: {}]
  %s8 = inlined_call_operand.hbm [shape: bf16[256,128], index: 8, kind: input, shape index: {}]
  %s9 = inlined_call_operand.vmem [shape: f32[1,128], index: 9, kind: input, shape index: {}]
  %s10 = inlined_call_operand.hbm [shape: bf16[128,768], index: 10, kind: input, shape index: {}]
  %s11 = inlined_call_operand.vmem [shape: f32[1,768], index: 11, kind: input, shape index: {}]
  %s12 = inlined_call_operand.hbm [shape: bf16[768,512], index: 12, kind: input, shape index: {}]
  %s13 = inlined_call_operand.vmem [shape: f32[1,512], index: 13, kind: input, shape index: {}]
  %s14 = inlined_call_operand.hbm [shape: bf16[512,256], index: 14, kind: input, shape index: {}]
  %s15 = inlined_call_operand.vmem [shape: f32[1,256], index: 15, kind: input, shape index: {}]
  %s16 = inlined_call_operand.hbm [shape: bf16[256,256], index: 16, kind: input, shape index: {}]
  %s17 = inlined_call_operand.vmem [shape: f32[1,256], index: 17, kind: input, shape index: {}]
  %s18 = inlined_call_operand.hbm [shape: f32[8,256], index: 18, kind: output, shape index: {0}]
  %s19 = inlined_call_operand.hbm [shape: f32[8,128], index: 19, kind: output, shape index: {1}]
  %20 = xla_tuple %s18, %s19
  %s21 = sld [smem:[#allocation0]]
  $region130: #{tpu_custom_call.1} parent=0
    _
  %s23 = ssub.s32 1, %s21
  %s24 = scalar_select 0, %s23, %s21
  $region1: #{tpu_custom_call.1} parent=0
    #allocation2 [shape = 'u8[4096]{0}', space=vmem, size = 0x1000, scoped, tag = 'input window, operand 0, single buffered']
    #allocation3 [shape = 's32[1]{0}', space=sflag, size = 0x4, scoped, tag = 'scoped memory for tpu_custom_call.1']
    #allocation4 [shape = 's32[1]{0}', space=sflag, size = 0x4, scoped, tag = 'scoped memory for tpu_custom_call.1']
    #allocation5 [shape = 'u8[4096]{0}', space=vmem, size = 0x1000, scoped, tag = 'input window, operand 1, single buffered']
    #allocation6 [shape = 's32[1]{0}', space=sflag, size = 0x4, scoped, tag = 'scoped memory for tpu_custom_call.1']
    #allocation7 [shape = 'u8[393216]{0}', space=vmem, size = 0x60000, scoped, tag = 'input window, operand 2, single buffered']
    #allocation8 [shape = 'u8[786432]{0}', space=vmem, size = 0xc0000, scoped, tag = 'input window, operand 4, single buffered']
    #allocation9 [shape = 's32[1]{0}', space=sflag, size = 0x4, scoped, tag = 'scoped memory for tpu_custom_call.1']
    #allocation10 [shape = 'u8[262144]{0}', space=vmem, size = 0x40000, scoped, tag = 'input window, operand 6, single buffered']
    #allocation11 [shape = 'u8[65536]{0}', space=vmem, size = 0x10000, scoped, tag = 'input window, operand 8, single buffered']
    #allocation12 [shape = 's32[1]{0}', space=sflag, size = 0x4, scoped, tag = 'scoped memory for tpu_custom_call.1']
    #allocation13 [shape = 'u8[196608]{0}', space=vmem, size = 0x30000, scoped, tag = 'input window, operand 10, single buffered']
    #allocation14 [shape = 'u8[786432]{0}', space=vmem, size = 0xc0000, scoped, tag = 'input window, operand 12, single buffered']
    #allocation15 [shape = 's32[1]{0}', space=sflag, size = 0x4, scoped, tag = 'scoped memory for tpu_custom_call.1']
    #allocation16 [shape = 'u8[262144]{0}', space=vmem, size = 0x40000, scoped, tag = 'input window, operand 14, single buffered']
    #allocation17 [shape = 'u8[131072]{0}', space=vmem, size = 0x20000, scoped, tag = 'input window, operand 16, single buffered']
    #allocation18 [shape = 's32[1]{0}', space=sflag, size = 0x4, scoped, tag = 'scoped memory for tpu_custom_call.1']
    #allocation19 [shape = 'u8[8192]{0}', space=vmem, size = 0x2000, scoped, tag = 'output window, operand 0, single buffered']
    #allocation20 [shape = 'u8[4096]{0}', space=vmem, size = 0x1000, scoped, tag = 'output window, operand 1, single buffered']
    #allocation21 [shape = 's32[1]{0}', space=sflag, size = 0x4, scoped, tag = 'scoped memory for tpu_custom_call.1']
    %25 = vsyncpa [#allocation3], 0
    %26 = vsyncpa [#allocation6], 0
    %27 = vsyncpa [#allocation9], 0
    %28 = vsyncpa [#allocation12], 0
    %29 = vsyncpa [#allocation15], 0
    %30 = vsyncpa [#allocation18], 0
    %31 = vsyncpa [#allocation4], 0
    %32 = vsyncpa [#allocation21], 0
    // Predicated region
    $region2: #{tpu_custom_call.1} parent=1 // pred_check
      _
    $region3: #{tpu_custom_call.1} parent=1 // pred_check_branch
      %34 = sbr.rel (0) target = $region5
    $region4: #{tpu_custom_call.1} parent=1 // pred_region
      %s36 = ssub.s32 128, 128
      %37 = vsyncadd [#allocation3], %s36
      %s39 = sshll.u32 [#allocation2], 4
      %s40 = int_to_ptr.vmem [resolvable:$true] %s39
      %42 = dma.hbm_to_vmem [thread:$0]  %s0, 128, %s40, [#allocation3]
    $region5: #{tpu_custom_call.1} parent=1 // pred_fallthru
      _
    // Predicated region
    $region6: #{tpu_custom_call.1} parent=1 // pred_check
      _
    $region7: #{tpu_custom_call.1} parent=1 // pred_check_branch
      %44 = sbr.rel (0) target = $region9
    $region8: #{tpu_custom_call.1} parent=1 // pred_region
      %s46 = ssub.s32 128, 128
      %47 = vsyncadd [#allocation6], %s46
      %s49 = sshll.u32 [#allocation5], 4
      %s50 = int_to_ptr.vmem [resolvable:$true] %s49
      %52 = dma.hbm_to_vmem [thread:$0]  %s1, 128, %s50, [#allocation6]
    $region9: #{tpu_custom_call.1} parent=1 // pred_fallthru
      _
    // Predicated region
    $region10: #{tpu_custom_call.1} parent=1 // pred_check
      _
    $region11: #{tpu_custom_call.1} parent=1 // pred_check_branch
      %54 = sbr.rel (0) target = $region13
    $region12: #{tpu_custom_call.1} parent=1 // pred_region
      %s56 = ssub.s32 12288, 12288
      %57 = vsyncadd [#allocation6], %s56
      %s58 = sshll.u32 [#allocation7], 4
      %s59 = int_to_ptr.vmem [resolvable:$true] %s58
      %64 = dma.hbm_to_vmem [thread:$0]  %s2, 12288, %s59, [#allocation6], 384, 384, 24
    $region13: #{tpu_custom_call.1} parent=1 // pred_fallthru
      _
    // Predicated region
    $region14: #{tpu_custom_call.1} parent=1 // pred_check
      _
    $region15: #{tpu_custom_call.1} parent=1 // pred_check_branch
      %66 = sbr.rel (0) target = $region17
    $region16: #{tpu_custom_call.1} parent=1 // pred_region
      _
    $region17: #{tpu_custom_call.1} parent=1 // pred_fallthru
      _
    // Predicated region
    $region18: #{tpu_custom_call.1} parent=1 // pred_check
      _
    $region19: #{tpu_custom_call.1} parent=1 // pred_check_branch
      %68 = sbr.rel (0) target = $region21
    $region20: #{tpu_custom_call.1} parent=1 // pred_region
      %s70 = ssub.s32 24576, 24576
      %71 = vsyncadd [#allocation9], %s70
      %s72 = sshll.u32 [#allocation8], 4
      %s73 = int_to_ptr.vmem [resolvable:$true] %s72
      %78 = dma.hbm_to_vmem [thread:$0]  %s4, 24576, %s73, [#allocation9], 256, 256, 16
    $region21: #{tpu_custom_call.1} parent=1 // pred_fallthru
      _
    // Predicated region
    $region22: #{tpu_custom_call.1} parent=1 // pred_check
      _
    $region23: #{tpu_custom_call.1} parent=1 // pred_check_branch
      %80 = sbr.rel (0) target = $region25
    $region24: #{tpu_custom_call.1} parent=1 // pred_region
      _
    $region25: #{tpu_custom_call.1} parent=1 // pred_fallthru
      _
    // Predicated region
    $region26: #{tpu_custom_call.1} parent=1 // pred_check
      _
    $region27: #{tpu_custom_call.1} parent=1 // pred_check_branch
      %82 = sbr.rel (0) target = $region29
    $region28: #{tpu_custom_call.1} parent=1 // pred_region
      %s84 = ssub.s32 8192, 8192
      %85 = vsyncadd [#allocation9], %s84
      %s86 = sshll.u32 [#allocation10], 4
      %s87 = int_to_ptr.vmem [resolvable:$true] %s86
      %92 = dma.hbm_to_vmem [thread:$0]  %s6, 8192, %s87, [#allocation9], 128, 128, 8
    $region29: #{tpu_custom_call.1} parent=1 // pred_fallthru
      _
    // Predicated region
    $region30: #{tpu_custom_call.1} parent=1 // pred_check
      _
    $region31: #{tpu_custom_call.1} parent=1 // pred_check_branch
      %94 = sbr.rel (0) target = $region33
    $region32: #{tpu_custom_call.1} parent=1 // pred_region
      _
    $region33: #{tpu_custom_call.1} parent=1 // pred_fallthru
      _
    // Predicated region
    $region34: #{tpu_custom_call.1} parent=1 // pred_check
      _
    $region35: #{tpu_custom_call.1} parent=1 // pred_check_branch
      %96 = sbr.rel (0) target = $region37
    $region36: #{tpu_custom_call.1} parent=1 // pred_region
      %s98 = ssub.s32 2048, 2048
      %99 = vsyncadd [#allocation12], %s98
      %s100 = sshll.u32 [#allocation11], 4
      %s101 = int_to_ptr.vmem [resolvable:$true] %s100
      %106 = dma.hbm_to_vmem [thread:$0]  %s8, 2048, %s101, [#allocation12], 64, 64, 4
    $region37: #{tpu_custom_call.1} parent=1 // pred_fallthru
      _
    // Predicated region
    $region38: #{tpu_custom_call.1} parent=1 // pred_check
      _
    $region39: #{tpu_custom_call.1} parent=1 // pred_check_branch
      %108 = sbr.rel (0) target = $region41
    $region40: #{tpu_custom_call.1} parent=1 // pred_region
      _
    $region41: #{tpu_custom_call.1} parent=1 // pred_fallthru
      _
    // Predicated region
    $region42: #{tpu_custom_call.1} parent=1 // pred_check
      _
    $region43: #{tpu_custom_call.1} parent=1 // pred_check_branch
      %110 = sbr.rel (0) target = $region45
    $region44: #{tpu_custom_call.1} parent=1 // pred_region
      %s112 = ssub.s32 6144, 6144
      %113 = vsyncadd [#allocation12], %s112
      %s114 = sshll.u32 [#allocation13], 4
      %s115 = int_to_ptr.vmem [resolvable:$true] %s114
      %120 = dma.hbm_to_vmem [thread:$0]  %s10, 6144, %s115, [#allocation12], 384, 384, 24
    $region45: #{tpu_custom_call.1} parent=1 // pred_fallthru
      _
    // Predicated region
    $region46: #{tpu_custom_call.1} parent=1 // pred_check
      _
    $region47: #{tpu_custom_call.1} parent=1 // pred_check_branch
      %122 = sbr.rel (0) target = $region49
    $region48: #{tpu_custom_call.1} parent=1 // pred_region
      _
    $region49: #{tpu_custom_call.1} parent=1 // pred_fallthru
      _
    // Predicated region
    $region50: #{tpu_custom_call.1} parent=1 // pred_check
      _
    $region51: #{tpu_custom_call.1} parent=1 // pred_check_branch
      %124 = sbr.rel (0) target = $region53
    $region52: #{tpu_custom_call.1} parent=1 // pred_region
      %s126 = ssub.s32 24576, 24576
      %127 = vsyncadd [#allocation15], %s126
      %s128 = sshll.u32 [#allocation14], 4
      %s129 = int_to_ptr.vmem [resolvable:$true] %s128
      %134 = dma.hbm_to_vmem [thread:$0]  %s12, 24576, %s129, [#allocation15], 256, 256, 16
    $region53: #{tpu_custom_call.1} parent=1 // pred_fallthru
      _
    // Predicated region
    $region54: #{tpu_custom_call.1} parent=1 // pred_check
      _
    $region55: #{tpu_custom_call.1} parent=1 // pred_check_branch
      %136 = sbr.rel (0) target = $region57
    $region56: #{tpu_custom_call.1} parent=1 // pred_region
      _
    $region57: #{tpu_custom_call.1} parent=1 // pred_fallthru
      _
    // Predicated region
    $region58: #{tpu_custom_call.1} parent=1 // pred_check
      _
    $region59: #{tpu_custom_call.1} parent=1 // pred_check_branch
      %138 = sbr.rel (0) target = $region61
    $region60: #{tpu_custom_call.1} parent=1 // pred_region
      %s140 = ssub.s32 8192, 8192
      %141 = vsyncadd [#allocation15], %s140
      %s142 = sshll.u32 [#allocation16], 4
      %s143 = int_to_ptr.vmem [resolvable:$true] %s142
      %148 = dma.hbm_to_vmem [thread:$0]  %s14, 8192, %s143, [#allocation15], 128, 128, 8
    $region61: #{tpu_custom_call.1} parent=1 // pred_fallthru
      _
    // Predicated region
    $region62: #{tpu_custom_call.1} parent=1 // pred_check
      _
    $region63: #{tpu_custom_call.1} parent=1 // pred_check_branch
      %150 = sbr.rel (0) target = $region65
    $region64: #{tpu_custom_call.1} parent=1 // pred_region
      _
    $region65: #{tpu_custom_call.1} parent=1 // pred_fallthru
      _
    // Predicated region
    $region66: #{tpu_custom_call.1} parent=1 // pred_check
      _
    $region67: #{tpu_custom_call.1} parent=1 // pred_check_branch
      %152 = sbr.rel (0) target = $region69
    $region68: #{tpu_custom_call.1} parent=1 // pred_region
      %s154 = ssub.s32 4096, 4096
      %155 = vsyncadd [#allocation18], %s154
      %s156 = sshll.u32 [#allocation17], 4
      %s157 = int_to_ptr.vmem [resolvable:$true] %s156
      %162 = dma.hbm_to_vmem [thread:$0]  %s16, 4096, %s157, [#allocation18], 128, 128, 8
    $region69: #{tpu_custom_call.1} parent=1 // pred_fallthru
      _
    // Predicated region
    $region70: #{tpu_custom_call.1} parent=1 // pred_check
      _
    $region71: #{tpu_custom_call.1} parent=1 // pred_check_branch
      %164 = sbr.rel (0) target = $region73
    $region72: #{tpu_custom_call.1} parent=1 // pred_region
      _
    $region73: #{tpu_custom_call.1} parent=1 // pred_fallthru
      _
    // Predicated region
    $region74: #{tpu_custom_call.1} parent=1 // pred_check
      _
    $region75: #{tpu_custom_call.1} parent=1 // pred_check_branch
      %166 = sbr.rel (0) target = $region77
    $region76: #{tpu_custom_call.1} parent=1 // pred_region
      %167 = dma.done [#allocation3], 128
    $region77: #{tpu_custom_call.1} parent=1 // pred_fallthru
      _
    // Predicated region
    $region78: #{tpu_custom_call.1} parent=1 // pred_check
      _
    $region79: #{tpu_custom_call.1} parent=1 // pred_check_branch
      %169 = sbr.rel (0) target = $region81
    $region80: #{tpu_custom_call.1} parent=1 // pred_region
      %170 = dma.done [#allocation6], 128
    $region81: #{tpu_custom_call.1} parent=1 // pred_fallthru
      _
    // Predicated region
    $region82: #{tpu_custom_call.1} parent=1 // pred_check
      _
    $region83: #{tpu_custom_call.1} parent=1 // pred_check_branch
      %172 = sbr.rel (0) target = $region85
    $region84: #{tpu_custom_call.1} parent=1 // pred_region
      %173 = dma.done [#allocation6], 12288
    $region85: #{tpu_custom_call.1} parent=1 // pred_fallthru
      _
    // Predicated region
    $region86: #{tpu_custom_call.1} parent=1 // pred_check
      _
    $region87: #{tpu_custom_call.1} parent=1 // pred_check_branch
      %175 = sbr.rel (0) target = $region89
    $region88: #{tpu_custom_call.1} parent=1 // pred_region
      %176 = dma.done [#allocation9], 24576
    $region89: #{tpu_custom_call.1} parent=1 // pred_fallthru
      _
    // Predicated region
    $region90: #{tpu_custom_call.1} parent=1 // pred_check
      _
    $region91: #{tpu_custom_call.1} parent=1 // pred_check_branch
      %178 = sbr.rel (0) target = $region93
    $region92: #{tpu_custom_call.1} parent=1 // pred_region
      %179 = dma.done [#allocation9], 8192
    $region93: #{tpu_custom_call.1} parent=1 // pred_fallthru
      _
    // Predicated region
    $region94: #{tpu_custom_call.1} parent=1 // pred_check
      _
    $region95: #{tpu_custom_call.1} parent=1 // pred_check_branch
      %181 = sbr.rel (0) target = $region97
    $region96: #{tpu_custom_call.1} parent=1 // pred_region
      %182 = dma.done [#allocation12], 2048
    $region97: #{tpu_custom_call.1} parent=1 // pred_fallthru
      _
    // Predicated region
    $region98: #{tpu_custom_call.1} parent=1 // pred_check
      _
    $region99: #{tpu_custom_call.1} parent=1 // pred_check_branch
      %184 = sbr.rel (0) target = $region101
    $region100: #{tpu_custom_call.1} parent=1 // pred_region
      %185 = dma.done [#allocation12], 6144
    $region101: #{tpu_custom_call.1} parent=1 // pred_fallthru
      _
    // Predicated region
    $region102: #{tpu_custom_call.1} parent=1 // pred_check
      _
    $region103: #{tpu_custom_call.1} parent=1 // pred_check_branch
      %187 = sbr.rel (0) target = $region105
    $region104: #{tpu_custom_call.1} parent=1 // pred_region
      %188 = dma.done [#allocation15], 24576
    $region105: #{tpu_custom_call.1} parent=1 // pred_fallthru
      _
    // Predicated region
    $region106: #{tpu_custom_call.1} parent=1 // pred_check
      _
    $region107: #{tpu_custom_call.1} parent=1 // pred_check_branch
      %190 = sbr.rel (0) target = $region109
    $region108: #{tpu_custom_call.1} parent=1 // pred_region
      %191 = dma.done [#allocation15], 8192
    $region109: #{tpu_custom_call.1} parent=1 // pred_fallthru
      _
    // Predicated region
    $region110: #{tpu_custom_call.1} parent=1 // pred_check
      _
    $region111: #{tpu_custom_call.1} parent=1 // pred_check_branch
      %193 = sbr.rel (0) target = $region113
    $region112: #{tpu_custom_call.1} parent=1 // pred_region
      %194 = dma.done [#allocation18], 4096
    $region113: #{tpu_custom_call.1} parent=1 // pred_fallthru
      _
    %v196 = vld [vmem:[#allocation2] sm:$0xff]
    %v197 = vld [vmem:[#allocation7] sm:$0xff]
    %v198 = vld [vmem:[#allocation7 + $0x8] sm:$0xff]
    %v199 = vld [vmem:[#allocation7 + $0x10] sm:$0xff]
    %v200 = vld [vmem:[#allocation7 + $0x18] sm:$0xff]
    %v201 = vld [vmem:[#allocation7 + $0x20] sm:$0xff]
    %v202 = vld [vmem:[#allocation7 + $0x28] sm:$0xff]
    %v203 = vld [vmem:[#allocation7 + $0x30] sm:$0xff]
    %v204 = vld [vmem:[#allocation7 + $0x38] sm:$0xff]
    %v205 = vld [vmem:[#allocation7 + $0x40] sm:$0xff]
    %v206 = vld [vmem:[#allocation7 + $0x48] sm:$0xff]
    %v207 = vld [vmem:[#allocation7 + $0x50] sm:$0xff]
    %v208 = vld [vmem:[#allocation7 + $0x58] sm:$0xff]
    %v209 = vld [vmem:[#allocation7 + $0x60] sm:$0xff]
    %v210 = vld [vmem:[#allocation7 + $0x68] sm:$0xff]
    %v211 = vld [vmem:[#allocation7 + $0x70] sm:$0xff]
    %v212 = vld [vmem:[#allocation7 + $0x78] sm:$0xff]
    %v213 = vld [vmem:[#allocation7 + $0x80] sm:$0xff]
    %v214 = vld [vmem:[#allocation7 + $0x88] sm:$0xff]
    %v215 = vld [vmem:[#allocation7 + $0x90] sm:$0xff]
    %v216 = vld [vmem:[#allocation7 + $0x98] sm:$0xff]
    %v217 = vld [vmem:[#allocation7 + $0xa0] sm:$0xff]
    %v218 = vld [vmem:[#allocation7 + $0xa8] sm:$0xff]
    %v219 = vld [vmem:[#allocation7 + $0xb0] sm:$0xff]
    %v220 = vld [vmem:[#allocation7 + $0xb8] sm:$0xff]
    %v221 = vld [vmem:[#allocation7 + $0xc0] sm:$0xff]
    %v222 = vld [vmem:[#allocation7 + $0xc8] sm:$0xff]
    %v223 = vld [vmem:[#allocation7 + $0xd0] sm:$0xff]
    %v224 = vld [vmem:[#allocation7 + $0xd8] sm:$0xff]
    %v225 = vld [vmem:[#allocation7 + $0xe0] sm:$0xff]
    %v226 = vld [vmem:[#allocation7 + $0xe8] sm:$0xff]
    %v227 = vld [vmem:[#allocation7 + $0xf0] sm:$0xff]
    %v228 = vld [vmem:[#allocation7 + $0xf8] sm:$0xff]
    %v229 = vld [vmem:[#allocation7 + $0x100] sm:$0xff]
    %v230 = vld [vmem:[#allocation7 + $0x108] sm:$0xff]
    %v231 = vld [vmem:[#allocation7 + $0x110] sm:$0xff]
    %v232 = vld [vmem:[#allocation7 + $0x118] sm:$0xff]
    %v233 = vld [vmem:[#allocation7 + $0x120] sm:$0xff]
    %v234 = vld [vmem:[#allocation7 + $0x128] sm:$0xff]
    %v235 = vld [vmem:[#allocation7 + $0x130] sm:$0xff]
    %v236 = vld [vmem:[#allocation7 + $0x138] sm:$0xff]
    %v237 = vld [vmem:[#allocation7 + $0x140] sm:$0xff]
    %v238 = vld [vmem:[#allocation7 + $0x148] sm:$0xff]
    %v239 = vld [vmem:[#allocation7 + $0x150] sm:$0xff]
    %v240 = vld [vmem:[#allocation7 + $0x158] sm:$0xff]
    %v241 = vld [vmem:[#allocation7 + $0x160] sm:$0xff]
    %v242 = vld [vmem:[#allocation7 + $0x168] sm:$0xff]
    %v243 = vld [vmem:[#allocation7 + $0x170] sm:$0xff]
    %v244 = vld [vmem:[#allocation7 + $0x178] sm:$0xff]
    %v245 = vld [vmem:[#allocation7 + $0x180] sm:$0xff]
    %v246 = vld [vmem:[#allocation7 + $0x188] sm:$0xff]
    %v247 = vld [vmem:[#allocation7 + $0x190] sm:$0xff]
    %v248 = vld [vmem:[#allocation7 + $0x198] sm:$0xff]
    %v249 = vld [vmem:[#allocation7 + $0x1a0] sm:$0xff]
    %v250 = vld [vmem:[#allocation7 + $0x1a8] sm:$0xff]
    %v251 = vld [vmem:[#allocation7 + $0x1b0] sm:$0xff]
    %v252 = vld [vmem:[#allocation7 + $0x1b8] sm:$0xff]
    %v253 = vld [vmem:[#allocation7 + $0x1c0] sm:$0xff]
    %v254 = vld [vmem:[#allocation7 + $0x1c8] sm:$0xff]
    %v255 = vld [vmem:[#allocation7 + $0x1d0] sm:$0xff]
    %v256 = vld [vmem:[#allocation7 + $0x1d8] sm:$0xff]
    %v257 = vld [vmem:[#allocation7 + $0x1e0] sm:$0xff]
    %v258 = vld [vmem:[#allocation7 + $0x1e8] sm:$0xff]
    %v259 = vld [vmem:[#allocation7 + $0x1f0] sm:$0xff]
    %v260 = vld [vmem:[#allocation7 + $0x1f8] sm:$0xff]
    %v261 = vld [vmem:[#allocation7 + $0x200] sm:$0xff]
    %v262 = vld [vmem:[#allocation7 + $0x208] sm:$0xff]
    %v263 = vld [vmem:[#allocation7 + $0x210] sm:$0xff]
    %v264 = vld [vmem:[#allocation7 + $0x218] sm:$0xff]
    %v265 = vld [vmem:[#allocation7 + $0x220] sm:$0xff]
    %v266 = vld [vmem:[#allocation7 + $0x228] sm:$0xff]
    %v267 = vld [vmem:[#allocation7 + $0x230] sm:$0xff]
    %v268 = vld [vmem:[#allocation7 + $0x238] sm:$0xff]
    %v269 = vld [vmem:[#allocation7 + $0x240] sm:$0xff]
    %v270 = vld [vmem:[#allocation7 + $0x248] sm:$0xff]
    %v271 = vld [vmem:[#allocation7 + $0x250] sm:$0xff]
    %v272 = vld [vmem:[#allocation7 + $0x258] sm:$0xff]
    %v273 = vld [vmem:[#allocation7 + $0x260] sm:$0xff]
    %v274 = vld [vmem:[#allocation7 + $0x268] sm:$0xff]
    %v275 = vld [vmem:[#allocation7 + $0x270] sm:$0xff]
    %v276 = vld [vmem:[#allocation7 + $0x278] sm:$0xff]
    %v277 = vld [vmem:[#allocation7 + $0x280] sm:$0xff]
    %v278 = vld [vmem:[#allocation7 + $0x288] sm:$0xff]
    %v279 = vld [vmem:[#allocation7 + $0x290] sm:$0xff]
    %v280 = vld [vmem:[#allocation7 + $0x298] sm:$0xff]
    %v281 = vld [vmem:[#allocation7 + $0x2a0] sm:$0xff]
    %v282 = vld [vmem:[#allocation7 + $0x2a8] sm:$0xff]
    %v283 = vld [vmem:[#allocation7 + $0x2b0] sm:$0xff]
    %v284 = vld [vmem:[#allocation7 + $0x2b8] sm:$0xff]
    %v285 = vld [vmem:[#allocation7 + $0x2c0] sm:$0xff]
    %v286 = vld [vmem:[#allocation7 + $0x2c8] sm:$0xff]
    %v287 = vld [vmem:[#allocation7 + $0x2d0] sm:$0xff]
    %v288 = vld [vmem:[#allocation7 + $0x2d8] sm:$0xff]
    %v289 = vld [vmem:[#allocation7 + $0x2e0] sm:$0xff]
    %v290 = vld [vmem:[#allocation7 + $0x2e8] sm:$0xff]
    %v291 = vld [vmem:[#allocation7 + $0x2f0] sm:$0xff]
    %v292 = vld [vmem:[#allocation7 + $0x2f8] sm:$0xff]
    %v293 = vld [vmem:[%s3] sm:$0x3f]
    %v295 = vlaneseq
    %v296 = vshrl.u32 %v295, 7
    %v297 = vsub.s32 0, %v296
    %v298 = vrot.slane %v293, %v297
    %v299 = vlaneseq
    %v300 = vshrl.u32 %v299, 7
    %v301 = vsub.s32 1, %v300
    %v302 = vrot.slane %v293, %v301
    %v303 = vlaneseq
    %v304 = vshrl.u32 %v303, 7
    %v305 = vsub.s32 2, %v304
    %v306 = vrot.slane %v293, %v305
    %v307 = vlaneseq
    %v308 = vshrl.u32 %v307, 7
    %v309 = vsub.s32 3, %v308
    %v310 = vrot.slane %v293, %v309
    %v311 = vlaneseq
    %v312 = vshrl.u32 %v311, 7
    %v313 = vsub.s32 4, %v312
    %v314 = vrot.slane %v293, %v313
    %v315 = vlaneseq
    %v316 = vshrl.u32 %v315, 7
    %v317 = vsub.s32 5, %v316
    %v318 = vrot.slane %v293, %v317
    %v326 = vunpack.c.l.b16 %v196
    %v327 = vunpack.c.h.b16 %v196
    %v328 = vpack.c.b16 %v326, %v326
    %v329 = vpack.c.b16 %v327, %v327
    %v428 = vunpack.c.l.b16 %v197
    %v429 = vunpack.c.h.b16 %v197
    %v430 = vunpack.c.l.b16 %v198
    %v431 = vunpack.c.h.b16 %v198
    %v432 = vunpack.c.l.b16 %v199
    %v433 = vunpack.c.h.b16 %v199
    %v434 = vunpack.c.l.b16 %v200
    %v435 = vunpack.c.h.b16 %v200
    %v436 = vunpack.c.l.b16 %v201
    %v437 = vunpack.c.h.b16 %v201
    %v438 = vunpack.c.l.b16 %v202
    %v439 = vunpack.c.h.b16 %v202
    %v440 = vunpack.c.l.b16 %v203
    %v441 = vunpack.c.h.b16 %v203
    %v442 = vunpack.c.l.b16 %v204
    %v443 = vunpack.c.h.b16 %v204
    %v444 = vunpack.c.l.b16 %v205
    %v445 = vunpack.c.h.b16 %v205
    %v446 = vunpack.c.l.b16 %v206
    %v447 = vunpack.c.h.b16 %v206
    %v448 = vunpack.c.l.b16 %v207
    %v449 = vunpack.c.h.b16 %v207
    %v450 = vunpack.c.l.b16 %v208
    %v451 = vunpack.c.h.b16 %v208
    %v452 = vunpack.c.l.b16 %v209
    %v453 = vunpack.c.h.b16 %v209
    %v454 = vunpack.c.l.b16 %v210
    %v455 = vunpack.c.h.b16 %v210
    %v456 = vunpack.c.l.b16 %v211
    %v457 = vunpack.c.h.b16 %v211
    %v458 = vunpack.c.l.b16 %v212
    %v459 = vunpack.c.h.b16 %v212
    %v460 = vunpack.c.l.b16 %v213
    %v461 = vunpack.c.h.b16 %v213
    %v462 = vunpack.c.l.b16 %v214
    %v463 = vunpack.c.h.b16 %v214
    %v464 = vunpack.c.l.b16 %v215
    %v465 = vunpack.c.h.b16 %v215
    %v466 = vunpack.c.l.b16 %v216
    %v467 = vunpack.c.h.b16 %v216
    %v468 = vunpack.c.l.b16 %v217
    %v469 = vunpack.c.h.b16 %v217
    %v470 = vunpack.c.l.b16 %v218
    %v471 = vunpack.c.h.b16 %v218
    %v472 = vunpack.c.l.b16 %v219
    %v473 = vunpack.c.h.b16 %v219
    %v474 = vunpack.c.l.b16 %v220
    %v475 = vunpack.c.h.b16 %v220
    %v476 = vunpack.c.l.b16 %v221
    %v477 = vunpack.c.h.b16 %v221
    %v478 = vunpack.c.l.b16 %v222
    %v479 = vunpack.c.h.b16 %v222
    %v480 = vunpack.c.l.b16 %v223
    %v481 = vunpack.c.h.b16 %v223
    %v482 = vunpack.c.l.b16 %v224
    %v483 = vunpack.c.h.b16 %v224
    %v484 = vunpack.c.l.b16 %v225
    %v485 = vunpack.c.h.b16 %v225
    %v486 = vunpack.c.l.b16 %v226
    %v487 = vunpack.c.h.b16 %v226
    %v488 = vunpack.c.l.b16 %v227
    %v489 = vunpack.c.h.b16 %v227
    %v490 = vunpack.c.l.b16 %v228
    %v491 = vunpack.c.h.b16 %v228
    %v492 = vunpack.c.l.b16 %v229
    %v493 = vunpack.c.h.b16 %v229
    %v494 = vunpack.c.l.b16 %v230
    %v495 = vunpack.c.h.b16 %v230
    %v496 = vunpack.c.l.b16 %v231
    %v497 = vunpack.c.h.b16 %v231
    %v498 = vunpack.c.l.b16 %v232
    %v499 = vunpack.c.h.b16 %v232
    %v500 = vunpack.c.l.b16 %v233
    %v501 = vunpack.c.h.b16 %v233
    %v502 = vunpack.c.l.b16 %v234
    %v503 = vunpack.c.h.b16 %v234
    %v504 = vunpack.c.l.b16 %v235
    %v505 = vunpack.c.h.b16 %v235
    %v506 = vunpack.c.l.b16 %v236
    %v507 = vunpack.c.h.b16 %v236
    %v508 = vunpack.c.l.b16 %v237
    %v509 = vunpack.c.h.b16 %v237
    %v510 = vunpack.c.l.b16 %v238
    %v511 = vunpack.c.h.b16 %v238
    %v512 = vunpack.c.l.b16 %v239
    %v513 = vunpack.c.h.b16 %v239
    %v514 = vunpack.c.l.b16 %v240
    %v515 = vunpack.c.h.b16 %v240
    %v516 = vunpack.c.l.b16 %v241
    %v517 = vunpack.c.h.b16 %v241
    %v518 = vunpack.c.l.b16 %v242
    %v519 = vunpack.c.h.b16 %v242
    %v520 = vunpack.c.l.b16 %v243
    %v521 = vunpack.c.h.b16 %v243
    %v522 = vunpack.c.l.b16 %v244
    %v523 = vunpack.c.h.b16 %v244
    %v524 = vunpack.c.l.b16 %v245
    %v525 = vunpack.c.h.b16 %v245
    %v526 = vunpack.c.l.b16 %v246
    %v527 = vunpack.c.h.b16 %v246
    %v528 = vunpack.c.l.b16 %v247
    %v529 = vunpack.c.h.b16 %v247
    %v530 = vunpack.c.l.b16 %v248
    %v531 = vunpack.c.h.b16 %v248
    %v532 = vunpack.c.l.b16 %v249
    %v533 = vunpack.c.h.b16 %v249
    %v534 = vunpack.c.l.b16 %v250
    %v535 = vunpack.c.h.b16 %v250
    %v536 = vunpack.c.l.b16 %v251
    %v537 = vunpack.c.h.b16 %v251
    %v538 = vunpack.c.l.b16 %v252
    %v539 = vunpack.c.h.b16 %v252
    %v540 = vunpack.c.l.b16 %v253
    %v541 = vunpack.c.h.b16 %v253
    %v542 = vunpack.c.l.b16 %v254
    %v543 = vunpack.c.h.b16 %v254
    %v544 = vunpack.c.l.b16 %v255
    %v545 = vunpack.c.h.b16 %v255
    %v546 = vunpack.c.l.b16 %v256
    %v547 = vunpack.c.h.b16 %v256
    %v548 = vunpack.c.l.b16 %v257
    %v549 = vunpack.c.h.b16 %v257
    %v550 = vunpack.c.l.b16 %v258
    %v551 = vunpack.c.h.b16 %v258
    %v552 = vunpack.c.l.b16 %v259
    %v553 = vunpack.c.h.b16 %v259
    %v554 = vunpack.c.l.b16 %v260
    %v555 = vunpack.c.h.b16 %v260
    %v556 = vunpack.c.l.b16 %v261
    %v557 = vunpack.c.h.b16 %v261
    %v558 = vunpack.c.l.b16 %v262
    %v559 = vunpack.c.h.b16 %v262
    %v560 = vunpack.c.l.b16 %v263
    %v561 = vunpack.c.h.b16 %v263
    %v562 = vunpack.c.l.b16 %v264
    %v563 = vunpack.c.h.b16 %v264
    %v564 = vunpack.c.l.b16 %v265
    %v565 = vunpack.c.h.b16 %v265
    %v566 = vunpack.c.l.b16 %v266
    %v567 = vunpack.c.h.b16 %v266
    %v568 = vunpack.c.l.b16 %v267
    %v569 = vunpack.c.h.b16 %v267
    %v570 = vunpack.c.l.b16 %v268
    %v571 = vunpack.c.h.b16 %v268
    %v572 = vunpack.c.l.b16 %v269
    %v573 = vunpack.c.h.b16 %v269
    %v574 = vunpack.c.l.b16 %v270
    %v575 = vunpack.c.h.b16 %v270
    %v576 = vunpack.c.l.b16 %v271
    %v577 = vunpack.c.h.b16 %v271
    %v578 = vunpack.c.l.b16 %v272
    %v579 = vunpack.c.h.b16 %v272
    %v580 = vunpack.c.l.b16 %v273
    %v581 = vunpack.c.h.b16 %v273
    %v582 = vunpack.c.l.b16 %v274
    %v583 = vunpack.c.h.b16 %v274
    %v584 = vunpack.c.l.b16 %v275
    %v585 = vunpack.c.h.b16 %v275
    %v586 = vunpack.c.l.b16 %v276
    %v587 = vunpack.c.h.b16 %v276
    %v588 = vunpack.c.l.b16 %v277
    %v589 = vunpack.c.h.b16 %v277
    %v590 = vunpack.c.l.b16 %v278
    %v591 = vunpack.c.h.b16 %v278
    %v592 = vunpack.c.l.b16 %v279
    %v593 = vunpack.c.h.b16 %v279
    %v594 = vunpack.c.l.b16 %v280
    %v595 = vunpack.c.h.b16 %v280
    %v596 = vunpack.c.l.b16 %v281
    %v597 = vunpack.c.h.b16 %v281
    %v598 = vunpack.c.l.b16 %v282
    %v599 = vunpack.c.h.b16 %v282
    %v600 = vunpack.c.l.b16 %v283
    %v601 = vunpack.c.h.b16 %v283
    %v602 = vunpack.c.l.b16 %v284
    %v603 = vunpack.c.h.b16 %v284
    %v604 = vunpack.c.l.b16 %v285
    %v605 = vunpack.c.h.b16 %v285
    %v606 = vunpack.c.l.b16 %v286
    %v607 = vunpack.c.h.b16 %v286
    %v608 = vunpack.c.l.b16 %v287
    %v609 = vunpack.c.h.b16 %v287
    %v610 = vunpack.c.l.b16 %v288
    %v611 = vunpack.c.h.b16 %v288
    %v612 = vunpack.c.l.b16 %v289
    %v613 = vunpack.c.h.b16 %v289
    %v614 = vunpack.c.l.b16 %v290
    %v615 = vunpack.c.h.b16 %v290
    %v616 = vunpack.c.l.b16 %v291
    %v617 = vunpack.c.h.b16 %v291
    %v618 = vunpack.c.l.b16 %v292
    %v619 = vunpack.c.h.b16 %v292
    %v620 = vpack.c.b16 %v434, %v428
    %v621 = vpack.c.b16 %v435, %v429
    %v622 = vpack.c.b16 %v436, %v430
    %v623 = vpack.c.b16 %v437, %v431
    %v624 = vpack.c.b16 %v438, %v432
    %v625 = vpack.c.b16 %v439, %v433
    %v626 = vpack.c.b16 %v446, %v440
    %v627 = vpack.c.b16 %v447, %v441
    %v628 = vpack.c.b16 %v448, %v442
    %v629 = vpack.c.b16 %v449, %v443
    %v630 = vpack.c.b16 %v450, %v444
    %v631 = vpack.c.b16 %v451, %v445
    %v632 = vpack.c.b16 %v458, %v452
    %v633 = vpack.c.b16 %v459, %v453
    %v634 = vpack.c.b16 %v460, %v454
    %v635 = vpack.c.b16 %v461, %v455
    %v636 = vpack.c.b16 %v462, %v456
    %v637 = vpack.c.b16 %v463, %v457
    %v638 = vpack.c.b16 %v470, %v464
    %v639 = vpack.c.b16 %v471, %v465
    %v640 = vpack.c.b16 %v472, %v466
    %v641 = vpack.c.b16 %v473, %v467
    %v642 = vpack.c.b16 %v474, %v468
    %v643 = vpack.c.b16 %v475, %v469
    %v644 = vpack.c.b16 %v482, %v476
    %v645 = vpack.c.b16 %v483, %v477
    %v646 = vpack.c.b16 %v484, %v478
    %v647 = vpack.c.b16 %v485, %v479
    %v648 = vpack.c.b16 %v486, %v480
    %v649 = vpack.c.b16 %v487, %v481
    %v650 = vpack.c.b16 %v494, %v488
    %v651 = vpack.c.b16 %v495, %v489
    %v652 = vpack.c.b16 %v496, %v490
    %v653 = vpack.c.b16 %v497, %v491
    %v654 = vpack.c.b16 %v498, %v492
    %v655 = vpack.c.b16 %v499, %v493
    %v656 = vpack.c.b16 %v506, %v500
    %v657 = vpack.c.b16 %v507, %v501
    %v658 = vpack.c.b16 %v508, %v502
    %v659 = vpack.c.b16 %v509, %v503
    %v660 = vpack.c.b16 %v510, %v504
    %v661 = vpack.c.b16 %v511, %v505
    %v662 = vpack.c.b16 %v518, %v512
    %v663 = vpack.c.b16 %v519, %v513
    %v664 = vpack.c.b16 %v520, %v514
    %v665 = vpack.c.b16 %v521, %v515
    %v666 = vpack.c.b16 %v522, %v516
    %v667 = vpack.c.b16 %v523, %v517
    %v668 = vpack.c.b16 %v530, %v524
    %v669 = vpack.c.b16 %v531, %v525
    %v670 = vpack.c.b16 %v532, %v526
    %v671 = vpack.c.b16 %v533, %v527
    %v672 = vpack.c.b16 %v534, %v528
    %v673 = vpack.c.b16 %v535, %v529
    %v674 = vpack.c.b16 %v542, %v536
    %v675 = vpack.c.b16 %v543, %v537
    %v676 = vpack.c.b16 %v544, %v538
    %v677 = vpack.c.b16 %v545, %v539
    %v678 = vpack.c.b16 %v546, %v540
    %v679 = vpack.c.b16 %v547, %v541
    %v680 = vpack.c.b16 %v554, %v548
    %v681 = vpack.c.b16 %v555, %v549
    %v682 = vpack.c.b16 %v556, %v550
    %v683 = vpack.c.b16 %v557, %v551
    %v684 = vpack.c.b16 %v558, %v552
    %v685 = vpack.c.b16 %v559, %v553
    %v686 = vpack.c.b16 %v566, %v560
    %v687 = vpack.c.b16 %v567, %v561
    %v688 = vpack.c.b16 %v568, %v562
    %v689 = vpack.c.b16 %v569, %v563
    %v690 = vpack.c.b16 %v570, %v564
    %v691 = vpack.c.b16 %v571, %v565
    %v692 = vpack.c.b16 %v578, %v572
    %v693 = vpack.c.b16 %v579, %v573
    %v694 = vpack.c.b16 %v580, %v574
    %v695 = vpack.c.b16 %v581, %v575
    %v696 = vpack.c.b16 %v582, %v576
    %v697 = vpack.c.b16 %v583, %v577
    %v698 = vpack.c.b16 %v590, %v584
    %v699 = vpack.c.b16 %v591, %v585
    %v700 = vpack.c.b16 %v592, %v586
    %v701 = vpack.c.b16 %v593, %v587
    %v702 = vpack.c.b16 %v594, %v588
    %v703 = vpack.c.b16 %v595, %v589
    %v704 = vpack.c.b16 %v602, %v596
    %v705 = vpack.c.b16 %v603, %v597
    %v706 = vpack.c.b16 %v604, %v598
    %v707 = vpack.c.b16 %v605, %v599
    %v708 = vpack.c.b16 %v606, %v600
    %v709 = vpack.c.b16 %v607, %v601
    %v710 = vpack.c.b16 %v614, %v608
    %v711 = vpack.c.b16 %v615, %v609
    %v712 = vpack.c.b16 %v616, %v610
    %v713 = vpack.c.b16 %v617, %v611
    %v714 = vpack.c.b16 %v618, %v612
    %v715 = vpack.c.b16 %v619, %v613
    %812 = vmatprep.subr.bf16.mxu0 %v621
    %813 = vmatpush1.bf16.msra.mxu0 %v620
    %814 = vmatprep.subr.bf16.mxu0 %v627
    %815 = vmatpush1.bf16.msra.mxu0 %v626
    %816 = vmatprep.subr.bf16.mxu0 %v633
    %817 = vmatpush1.bf16.msra.mxu0 %v632
    %818 = vmatprep.subr.bf16.mxu0 %v639
    %819 = vmatpush1.bf16.msra.mxu0 %v638
    %820 = vmatprep.subr.bf16.mxu0 %v645
    %821 = vmatpush1.bf16.msra.mxu0 %v644
    %822 = vmatprep.subr.bf16.mxu0 %v651
    %823 = vmatpush1.bf16.msra.mxu0 %v650
    %824 = vmatprep.subr.bf16.mxu0 %v657
    %825 = vmatpush1.bf16.msra.mxu0 %v656
    %826 = vmatprep.subr.bf16.mxu0 %v663
    %827 = vmatpush1.bf16.msra.mxu0 %v662
    %828 = vmatprep.subr.bf16.mxu0 %v669
    %829 = vmatpush1.bf16.msra.mxu0 %v668
    %830 = vmatprep.subr.bf16.mxu0 %v675
    %831 = vmatpush1.bf16.msra.mxu0 %v674
    %832 = vmatprep.subr.bf16.mxu0 %v681
    %833 = vmatpush1.bf16.msra.mxu0 %v680
    %834 = vmatprep.subr.bf16.mxu0 %v687
    %835 = vmatpush1.bf16.msra.mxu0 %v686
    %836 = vmatprep.subr.bf16.mxu0 %v693
    %837 = vmatpush1.bf16.msra.mxu0 %v692
    %838 = vmatprep.subr.bf16.mxu0 %v699
    %839 = vmatpush1.bf16.msra.mxu0 %v698
    %840 = vmatprep.subr.bf16.mxu0 %v705
    %841 = vmatpush1.bf16.msra.mxu0 %v704
    %842 = vmatprep.subr.bf16.mxu0 %v711
    %843 = vmatpush1.bf16.msra.mxu0 %v710
    %844 = vmatprep.mubr.bf16.mxu0 %v329
    %845 = vmatmul.mubr.bf16.gmra.mrb[0].mxu0 %v328
    %v846 = vpop.f32.mrb[0].mxu0
    %v847 = vadd.f32 %v298, %v846
    %v848 = vpop.f32.mrb[0].mxu0
    %v849 = vadd.f32 %v302, %v848
    %v850 = vpop.f32.mrb[0].mxu0
    %v851 = vpop.f32.mrb[0].mxu0
    %852 = vdwg.mxu0
    %853 = vmatprep.subr.bf16.mxu0 %v623
    %854 = vmatpush1.bf16.msra.mxu0 %v622
    %855 = vmatprep.subr.bf16.mxu0 %v629
    %856 = vmatpush1.bf16.msra.mxu0 %v628
    %857 = vmatprep.subr.bf16.mxu0 %v635
    %858 = vmatpush1.bf16.msra.mxu0 %v634
    %859 = vmatprep.subr.bf16.mxu0 %v641
    %860 = vmatpush1.bf16.msra.mxu0 %v640
    %861 = vmatprep.subr.bf16.mxu0 %v647
    %862 = vmatpush1.bf16.msra.mxu0 %v646
    %863 = vmatprep.subr.bf16.mxu0 %v653
    %864 = vmatpush1.bf16.msra.mxu0 %v652
    %865 = vmatprep.subr.bf16.mxu0 %v659
    %866 = vmatpush1.bf16.msra.mxu0 %v658
    %867 = vmatprep.subr.bf16.mxu0 %v665
    %868 = vmatpush1.bf16.msra.mxu0 %v664
    %869 = vmatprep.subr.bf16.mxu0 %v671
    %870 = vmatpush1.bf16.msra.mxu0 %v670
    %871 = vmatprep.subr.bf16.mxu0 %v677
    %872 = vmatpush1.bf16.msra.mxu0 %v676
    %873 = vmatprep.subr.bf16.mxu0 %v683
    %874 = vmatpush1.bf16.msra.mxu0 %v682
    %875 = vmatprep.subr.bf16.mxu0 %v689
    %876 = vmatpush1.bf16.msra.mxu0 %v688
    %877 = vmatprep.subr.bf16.mxu0 %v695
    %878 = vmatpush1.bf16.msra.mxu0 %v694
    %879 = vmatprep.subr.bf16.mxu0 %v701
    %880 = vmatpush1.bf16.msra.mxu0 %v700
    %881 = vmatprep.subr.bf16.mxu0 %v707
    %882 = vmatpush1.bf16.msra.mxu0 %v706
    %883 = vmatprep.subr.bf16.mxu0 %v713
    %884 = vmatpush1.bf16.msra.mxu0 %v712
    %885 = vmatprep.mubr.bf16.mxu0 %v329
    %886 = vmatmul.mubr.bf16.gmra.mrb[0].mxu0 %v328
    %v887 = vpop.f32.mrb[0].mxu0
    %v888 = vadd.f32 %v306, %v887
    %v889 = vpop.f32.mrb[0].mxu0
    %v890 = vadd.f32 %v310, %v889
    %v891 = vpop.f32.mrb[0].mxu0
    %v892 = vpop.f32.mrb[0].mxu0
    %893 = vdwg.mxu0
    %894 = vmatprep.subr.bf16.mxu0 %v625
    %895 = vmatpush1.bf16.msra.mxu0 %v624
    %896 = vmatprep.subr.bf16.mxu0 %v631
    %897 = vmatpush1.bf16.msra.mxu0 %v630
    %898 = vmatprep.subr.bf16.mxu0 %v637
    %899 = vmatpush1.bf16.msra.mxu0 %v636
    %900 = vmatprep.subr.bf16.mxu0 %v643
    %901 = vmatpush1.bf16.msra.mxu0 %v642
    %902 = vmatprep.subr.bf16.mxu0 %v649
    %903 = vmatpush1.bf16.msra.mxu0 %v648
    %904 = vmatprep.subr.bf16.mxu0 %v655
    %905 = vmatpush1.bf16.msra.mxu0 %v654
    %906 = vmatprep.subr.bf16.mxu0 %v661
    %907 = vmatpush1.bf16.msra.mxu0 %v660
    %908 = vmatprep.subr.bf16.mxu0 %v667
    %909 = vmatpush1.bf16.msra.mxu0 %v666
    %910 = vmatprep.subr.bf16.mxu0 %v673
    %911 = vmatpush1.bf16.msra.mxu0 %v672
    %912 = vmatprep.subr.bf16.mxu0 %v679
    %913 = vmatpush1.bf16.msra.mxu0 %v678
    %914 = vmatprep.subr.bf16.mxu0 %v685
    %915 = vmatpush1.bf16.msra.mxu0 %v684
    %916 = vmatprep.subr.bf16.mxu0 %v691
    %917 = vmatpush1.bf16.msra.mxu0 %v690
    %918 = vmatprep.subr.bf16.mxu0 %v697
    %919 = vmatpush1.bf16.msra.mxu0 %v696
    %920 = vmatprep.subr.bf16.mxu0 %v703
    %921 = vmatpush1.bf16.msra.mxu0 %v702
    %922 = vmatprep.subr.bf16.mxu0 %v709
    %923 = vmatpush1.bf16.msra.mxu0 %v708
    %924 = vmatprep.subr.bf16.mxu0 %v715
    %925 = vmatpush1.bf16.msra.mxu0 %v714
    %926 = vmatprep.mubr.bf16.mxu0 %v329
    %927 = vmatmul.mubr.bf16.gmra.mrb[0].mxu0 %v328
    %v928 = vpop.f32.mrb[0].mxu0
    %v929 = vadd.f32 %v314, %v928
    %v930 = vpop.f32.mrb[0].mxu0
    %v931 = vadd.f32 %v318, %v930
    %v932 = vpop.f32.mrb[0].mxu0
    %v933 = vpop.f32.mrb[0].mxu0
    %934 = vdwg.mxu0
    %v935 = vmax.f32 %v847, 0.0
    %v936 = vmax.f32 %v849, 0.0
    %v937 = vmax.f32 %v888, 0.0
    %v938 = vmax.f32 %v890, 0.0
    %v939 = vmax.f32 %v929, 0.0
    %v940 = vmax.f32 %v931, 0.0
    %v941 = vpack.c.bf16 %v935, %v935
    %v942 = vpack.c.bf16 %v936, %v936
    %v943 = vpack.c.bf16 %v937, %v937
    %v944 = vpack.c.bf16 %v938, %v938
    %v945 = vpack.c.bf16 %v939, %v939
    %v946 = vpack.c.bf16 %v940, %v940
    %v947 = vld [vmem:[#allocation8] sm:$0xff]
    %v948 = vld [vmem:[#allocation8 + $0x8] sm:$0xff]
    %v949 = vld [vmem:[#allocation8 + $0x10] sm:$0xff]
    %v950 = vld [vmem:[#allocation8 + $0x18] sm:$0xff]
    %v951 = vld [vmem:[#allocation8 + $0x20] sm:$0xff]
    %v952 = vld [vmem:[#allocation8 + $0x28] sm:$0xff]
    %v953 = vld [vmem:[#allocation8 + $0x30] sm:$0xff]
    %v954 = vld [vmem:[#allocation8 + $0x38] sm:$0xff]
    %v955 = vld [vmem:[#allocation8 + $0x40] sm:$0xff]
    %v956 = vld [vmem:[#allocation8 + $0x48] sm:$0xff]
    %v957 = vld [vmem:[#allocation8 + $0x50] sm:$0xff]
    %v958 = vld [vmem:[#allocation8 + $0x58] sm:$0xff]
    %v959 = vld [vmem:[#allocation8 + $0x60] sm:$0xff]
    %v960 = vld [vmem:[#allocation8 + $0x68] sm:$0xff]
    %v961 = vld [vmem:[#allocation8 + $0x70] sm:$0xff]
    %v962 = vld [vmem:[#allocation8 + $0x78] sm:$0xff]
    %v963 = vld [vmem:[#allocation8 + $0x80] sm:$0xff]
    %v964 = vld [vmem:[#allocation8 + $0x88] sm:$0xff]
    %v965 = vld [vmem:[#allocation8 + $0x90] sm:$0xff]
    %v966 = vld [vmem:[#allocation8 + $0x98] sm:$0xff]
    %v967 = vld [vmem:[#allocation8 + $0xa0] sm:$0xff]
    %v968 = vld [vmem:[#allocation8 + $0xa8] sm:$0xff]
    %v969 = vld [vmem:[#allocation8 + $0xb0] sm:$0xff]
    %v970 = vld [vmem:[#allocation8 + $0xb8] sm:$0xff]
    %v971 = vld [vmem:[#allocation8 + $0xc0] sm:$0xff]
    %v972 = vld [vmem:[#allocation8 + $0xc8] sm:$0xff]
    %v973 = vld [vmem:[#allocation8 + $0xd0] sm:$0xff]
    %v974 = vld [vmem:[#allocation8 + $0xd8] sm:$0xff]
    %v975 = vld [vmem:[#allocation8 + $0xe0] sm:$0xff]
    %v976 = vld [vmem:[#allocation8 + $0xe8] sm:$0xff]
    %v977 = vld [vmem:[#allocation8 + $0xf0] sm:$0xff]
    %v978 = vld [vmem:[#allocation8 + $0xf8] sm:$0xff]
    %v979 = vld [vmem:[#allocation8 + $0x100] sm:$0xff]
    %v980 = vld [vmem:[#allocation8 + $0x108] sm:$0xff]
    %v981 = vld [vmem:[#allocation8 + $0x110] sm:$0xff]
    %v982 = vld [vmem:[#allocation8 + $0x118] sm:$0xff]
    %v983 = vld [vmem:[#allocation8 + $0x120] sm:$0xff]
    %v984 = vld [vmem:[#allocation8 + $0x128] sm:$0xff]
    %v985 = vld [vmem:[#allocation8 + $0x130] sm:$0xff]
    %v986 = vld [vmem:[#allocation8 + $0x138] sm:$0xff]
    %v987 = vld [vmem:[#allocation8 + $0x140] sm:$0xff]
    %v988 = vld [vmem:[#allocation8 + $0x148] sm:$0xff]
    %v989 = vld [vmem:[#allocation8 + $0x150] sm:$0xff]
    %v990 = vld [vmem:[#allocation8 + $0x158] sm:$0xff]
    %v991 = vld [vmem:[#allocation8 + $0x160] sm:$0xff]
    %v992 = vld [vmem:[#allocation8 + $0x168] sm:$0xff]
    %v993 = vld [vmem:[#allocation8 + $0x170] sm:$0xff]
    %v994 = vld [vmem:[#allocation8 + $0x178] sm:$0xff]
    %v995 = vld [vmem:[#allocation8 + $0x180] sm:$0xff]
    %v996 = vld [vmem:[#allocation8 + $0x188] sm:$0xff]
    %v997 = vld [vmem:[#allocation8 + $0x190] sm:$0xff]
    %v998 = vld [vmem:[#allocation8 + $0x198] sm:$0xff]
    %v999 = vld [vmem:[#allocation8 + $0x1a0] sm:$0xff]
    %v1000 = vld [vmem:[#allocation8 + $0x1a8] sm:$0xff]
    %v1001 = vld [vmem:[#allocation8 + $0x1b0] sm:$0xff]
    %v1002 = vld [vmem:[#allocation8 + $0x1b8] sm:$0xff]
    %v1003 = vld [vmem:[#allocation8 + $0x1c0] sm:$0xff]
    %v1004 = vld [vmem:[#allocation8 + $0x1c8] sm:$0xff]
    %v1005 = vld [vmem:[#allocation8 + $0x1d0] sm:$0xff]
    %v1006 = vld [vmem:[#allocation8 + $0x1d8] sm:$0xff]
    %v1007 = vld [vmem:[#allocation8 + $0x1e0] sm:$0xff]
    %v1008 = vld [vmem:[#allocation8 + $0x1e8] sm:$0xff]
    %v1009 = vld [vmem:[#allocation8 + $0x1f0] sm:$0xff]
    %v1010 = vld [vmem:[#allocation8 + $0x1f8] sm:$0xff]
    %v1011 = vld [vmem:[#allocation8 + $0x200] sm:$0xff]
    %v1012 = vld [vmem:[#allocation8 + $0x208] sm:$0xff]
    %v1013 = vld [vmem:[#allocation8 + $0x210] sm:$0xff]
    %v1014 = vld [vmem:[#allocation8 + $0x218] sm:$0xff]
    %v1015 = vld [vmem:[#allocation8 + $0x220] sm:$0xff]
    %v1016 = vld [vmem:[#allocation8 + $0x228] sm:$0xff]
    %v1017 = vld [vmem:[#allocation8 + $0x230] sm:$0xff]
    %v1018 = vld [vmem:[#allocation8 + $0x238] sm:$0xff]
    %v1019 = vld [vmem:[#allocation8 + $0x240] sm:$0xff]
    %v1020 = vld [vmem:[#allocation8 + $0x248] sm:$0xff]
    %v1021 = vld [vmem:[#allocation8 + $0x250] sm:$0xff]
    %v1022 = vld [vmem:[#allocation8 + $0x258] sm:$0xff]
    %v1023 = vld [vmem:[#allocation8 + $0x260] sm:$0xff]
    %v1024 = vld [vmem:[#allocation8 + $0x268] sm:$0xff]
    %v1025 = vld [vmem:[#allocation8 + $0x270] sm:$0xff]
    %v1026 = vld [vmem:[#allocation8 + $0x278] sm:$0xff]
    %v1027 = vld [vmem:[#allocation8 + $0x280] sm:$0xff]
    %v1028 = vld [vmem:[#allocation8 + $0x288] sm:$0xff]
    %v1029 = vld [vmem:[#allocation8 + $0x290] sm:$0xff]
    %v1030 = vld [vmem:[#allocation8 + $0x298] sm:$0xff]
    %v1031 = vld [vmem:[#allocation8 + $0x2a0] sm:$0xff]
    %v1032 = vld [vmem:[#allocation8 + $0x2a8] sm:$0xff]
    %v1033 = vld [vmem:[#allocation8 + $0x2b0] sm:$0xff]
    %v1034 = vld [vmem:[#allocation8 + $0x2b8] sm:$0xff]
    %v1035 = vld [vmem:[#allocation8 + $0x2c0] sm:$0xff]
    %v1036 = vld [vmem:[#allocation8 + $0x2c8] sm:$0xff]
    %v1037 = vld [vmem:[#allocation8 + $0x2d0] sm:$0xff]
    %v1038 = vld [vmem:[#allocation8 + $0x2d8] sm:$0xff]
    %v1039 = vld [vmem:[#allocation8 + $0x2e0] sm:$0xff]
    %v1040 = vld [vmem:[#allocation8 + $0x2e8] sm:$0xff]
    %v1041 = vld [vmem:[#allocation8 + $0x2f0] sm:$0xff]
    %v1042 = vld [vmem:[#allocation8 + $0x2f8] sm:$0xff]
    %v1043 = vld [vmem:[#allocation8 + $0x300] sm:$0xff]
    %v1044 = vld [vmem:[#allocation8 + $0x308] sm:$0xff]
    %v1045 = vld [vmem:[#allocation8 + $0x310] sm:$0xff]
    %v1046 = vld [vmem:[#allocation8 + $0x318] sm:$0xff]
    %v1047 = vld [vmem:[#allocation8 + $0x320] sm:$0xff]
    %v1048 = vld [vmem:[#allocation8 + $0x328] sm:$0xff]
    %v1049 = vld [vmem:[#allocation8 + $0x330] sm:$0xff]
    %v1050 = vld [vmem:[#allocation8 + $0x338] sm:$0xff]
    %v1051 = vld [vmem:[#allocation8 + $0x340] sm:$0xff]
    %v1052 = vld [vmem:[#allocation8 + $0x348] sm:$0xff]
    %v1053 = vld [vmem:[#allocation8 + $0x350] sm:$0xff]
    %v1054 = vld [vmem:[#allocation8 + $0x358] sm:$0xff]
    %v1055 = vld [vmem:[#allocation8 + $0x360] sm:$0xff]
    %v1056 = vld [vmem:[#allocation8 + $0x368] sm:$0xff]
    %v1057 = vld [vmem:[#allocation8 + $0x370] sm:$0xff]
    %v1058 = vld [vmem:[#allocation8 + $0x378] sm:$0xff]
    %v1059 = vld [vmem:[#allocation8 + $0x380] sm:$0xff]
    %v1060 = vld [vmem:[#allocation8 + $0x388] sm:$0xff]
    %v1061 = vld [vmem:[#allocation8 + $0x390] sm:$0xff]
    %v1062 = vld [vmem:[#allocation8 + $0x398] sm:$0xff]
    %v1063 = vld [vmem:[#allocation8 + $0x3a0] sm:$0xff]
    %v1064 = vld [vmem:[#allocation8 + $0x3a8] sm:$0xff]
    %v1065 = vld [vmem:[#allocation8 + $0x3b0] sm:$0xff]
    %v1066 = vld [vmem:[#allocation8 + $0x3b8] sm:$0xff]
    %v1067 = vld [vmem:[#allocation8 + $0x3c0] sm:$0xff]
    %v1068 = vld [vmem:[#allocation8 + $0x3c8] sm:$0xff]
    %v1069 = vld [vmem:[#allocation8 + $0x3d0] sm:$0xff]
    %v1070 = vld [vmem:[#allocation8 + $0x3d8] sm:$0xff]
    %v1071 = vld [vmem:[#allocation8 + $0x3e0] sm:$0xff]
    %v1072 = vld [vmem:[#allocation8 + $0x3e8] sm:$0xff]
    %v1073 = vld [vmem:[#allocation8 + $0x3f0] sm:$0xff]
    %v1074 = vld [vmem:[#allocation8 + $0x3f8] sm:$0xff]
    %v1075 = vld [vmem:[#allocation8 + $0x400] sm:$0xff]
    %v1076 = vld [vmem:[#allocation8 + $0x408] sm:$0xff]
    %v1077 = vld [vmem:[#allocation8 + $0x410] sm:$0xff]
    %v1078 = vld [vmem:[#allocation8 + $0x418] sm:$0xff]
    %v1079 = vld [vmem:[#allocation8 + $0x420] sm:$0xff]
    %v1080 = vld [vmem:[#allocation8 + $0x428] sm:$0xff]
    %v1081 = vld [vmem:[#allocation8 + $0x430] sm:$0xff]
    %v1082 = vld [vmem:[#allocation8 + $0x438] sm:$0xff]
    %v1083 = vld [vmem:[#allocation8 + $0x440] sm:$0xff]
    %v1084 = vld [vmem:[#allocation8 + $0x448] sm:$0xff]
    %v1085 = vld [vmem:[#allocation8 + $0x450] sm:$0xff]
    %v1086 = vld [vmem:[#allocation8 + $0x458] sm:$0xff]
    %v1087 = vld [vmem:[#allocation8 + $0x460] sm:$0xff]
    %v1088 = vld [vmem:[#allocation8 + $0x468] sm:$0xff]
    %v1089 = vld [vmem:[#allocation8 + $0x470] sm:$0xff]
    %v1090 = vld [vmem:[#allocation8 + $0x478] sm:$0xff]
    %v1091 = vld [vmem:[#allocation8 + $0x480] sm:$0xff]
    %v1092 = vld [vmem:[#allocation8 + $0x488] sm:$0xff]
    %v1093 = vld [vmem:[#allocation8 + $0x490] sm:$0xff]
    %v1094 = vld [vmem:[#allocation8 + $0x498] sm:$0xff]
    %v1095 = vld [vmem:[#allocation8 + $0x4a0] sm:$0xff]
    %v1096 = vld [vmem:[#allocation8 + $0x4a8] sm:$0xff]
    %v1097 = vld [vmem:[#allocation8 + $0x4b0] sm:$0xff]
    %v1098 = vld [vmem:[#allocation8 + $0x4b8] sm:$0xff]
    %v1099 = vld [vmem:[#allocation8 + $0x4c0] sm:$0xff]
    %v1100 = vld [vmem:[#allocation8 + $0x4c8] sm:$0xff]
    %v1101 = vld [vmem:[#allocation8 + $0x4d0] sm:$0xff]
    %v1102 = vld [vmem:[#allocation8 + $0x4d8] sm:$0xff]
    %v1103 = vld [vmem:[#allocation8 + $0x4e0] sm:$0xff]
    %v1104 = vld [vmem:[#allocation8 + $0x4e8] sm:$0xff]
    %v1105 = vld [vmem:[#allocation8 + $0x4f0] sm:$0xff]
    %v1106 = vld [vmem:[#allocation8 + $0x4f8] sm:$0xff]
    %v1107 = vld [vmem:[#allocation8 + $0x500] sm:$0xff]
    %v1108 = vld [vmem:[#allocation8 + $0x508] sm:$0xff]
    %v1109 = vld [vmem:[#allocation8 + $0x510] sm:$0xff]
    %v1110 = vld [vmem:[#allocation8 + $0x518] sm:$0xff]
    %v1111 = vld [vmem:[#allocation8 + $0x520] sm:$0xff]
    %v1112 = vld [vmem:[#allocation8 + $0x528] sm:$0xff]
    %v1113 = vld [vmem:[#allocation8 + $0x530] sm:$0xff]
    %v1114 = vld [vmem:[#allocation8 + $0x538] sm:$0xff]
    %v1115 = vld [vmem:[#allocation8 + $0x540] sm:$0xff]
    %v1116 = vld [vmem:[#allocation8 + $0x548] sm:$0xff]
    %v1117 = vld [vmem:[#allocation8 + $0x550] sm:$0xff]
    %v1118 = vld [vmem:[#allocation8 + $0x558] sm:$0xff]
    %v1119 = vld [vmem:[#allocation8 + $0x560] sm:$0xff]
    %v1120 = vld [vmem:[#allocation8 + $0x568] sm:$0xff]
    %v1121 = vld [vmem:[#allocation8 + $0x570] sm:$0xff]
    %v1122 = vld [vmem:[#allocation8 + $0x578] sm:$0xff]
    %v1123 = vld [vmem:[#allocation8 + $0x580] sm:$0xff]
    %v1124 = vld [vmem:[#allocation8 + $0x588] sm:$0xff]
    %v1125 = vld [vmem:[#allocation8 + $0x590] sm:$0xff]
    %v1126 = vld [vmem:[#allocation8 + $0x598] sm:$0xff]
    %v1127 = vld [vmem:[#allocation8 + $0x5a0] sm:$0xff]
    %v1128 = vld [vmem:[#allocation8 + $0x5a8] sm:$0xff]
    %v1129 = vld [vmem:[#allocation8 + $0x5b0] sm:$0xff]
    %v1130 = vld [vmem:[#allocation8 + $0x5b8] sm:$0xff]
    %v1131 = vld [vmem:[#allocation8 + $0x5c0] sm:$0xff]
    %v1132 = vld [vmem:[#allocation8 + $0x5c8] sm:$0xff]
    %v1133 = vld [vmem:[#allocation8 + $0x5d0] sm:$0xff]
    %v1134 = vld [vmem:[#allocation8 + $0x5d8] sm:$0xff]
    %v1135 = vld [vmem:[#allocation8 + $0x5e0] sm:$0xff]
    %v1136 = vld [vmem:[#allocation8 + $0x5e8] sm:$0xff]
    %v1137 = vld [vmem:[#allocation8 + $0x5f0] sm:$0xff]
    %v1138 = vld [vmem:[#allocation8 + $0x5f8] sm:$0xff]
    %v1139 = vld [vmem:[%s5] sm:$0xf]
    %v1141 = vlaneseq
    %v1142 = vshrl.u32 %v1141, 7
    %v1143 = vsub.s32 0, %v1142
    %v1144 = vrot.slane %v1139, %v1143
    %v1145 = vlaneseq
    %v1146 = vshrl.u32 %v1145, 7
    %v1147 = vsub.s32 1, %v1146
    %v1148 = vrot.slane %v1139, %v1147
    %v1149 = vlaneseq
    %v1150 = vshrl.u32 %v1149, 7
    %v1151 = vsub.s32 2, %v1150
    %v1152 = vrot.slane %v1139, %v1151
    %v1153 = vlaneseq
    %v1154 = vshrl.u32 %v1153, 7
    %v1155 = vsub.s32 3, %v1154
    %v1156 = vrot.slane %v1139, %v1155
    %v1353 = vunpack.c.l.b16 %v947
    %v1354 = vunpack.c.h.b16 %v947
    %v1355 = vunpack.c.l.b16 %v948
    %v1356 = vunpack.c.h.b16 %v948
    %v1357 = vunpack.c.l.b16 %v949
    %v1358 = vunpack.c.h.b16 %v949
    %v1359 = vunpack.c.l.b16 %v950
    %v1360 = vunpack.c.h.b16 %v950
    %v1361 = vunpack.c.l.b16 %v951
    %v1362 = vunpack.c.h.b16 %v951
    %v1363 = vunpack.c.l.b16 %v952
    %v1364 = vunpack.c.h.b16 %v952
    %v1365 = vunpack.c.l.b16 %v953
    %v1366 = vunpack.c.h.b16 %v953
    %v1367 = vunpack.c.l.b16 %v954
    %v1368 = vunpack.c.h.b16 %v954
    %v1369 = vunpack.c.l.b16 %v955
    %v1370 = vunpack.c.h.b16 %v955
    %v1371 = vunpack.c.l.b16 %v956
    %v1372 = vunpack.c.h.b16 %v956
    %v1373 = vunpack.c.l.b16 %v957
    %v1374 = vunpack.c.h.b16 %v957
    %v1375 = vunpack.c.l.b16 %v958
    %v1376 = vunpack.c.h.b16 %v958
    %v1377 = vunpack.c.l.b16 %v959
    %v1378 = vunpack.c.h.b16 %v959
    %v1379 = vunpack.c.l.b16 %v960
    %v1380 = vunpack.c.h.b16 %v960
    %v1381 = vunpack.c.l.b16 %v961
    %v1382 = vunpack.c.h.b16 %v961
    %v1383 = vunpack.c.l.b16 %v962
    %v1384 = vunpack.c.h.b16 %v962
    %v1385 = vunpack.c.l.b16 %v963
    %v1386 = vunpack.c.h.b16 %v963
    %v1387 = vunpack.c.l.b16 %v964
    %v1388 = vunpack.c.h.b16 %v964
    %v1389 = vunpack.c.l.b16 %v965
    %v1390 = vunpack.c.h.b16 %v965
    %v1391 = vunpack.c.l.b16 %v966
    %v1392 = vunpack.c.h.b16 %v966
    %v1393 = vunpack.c.l.b16 %v967
    %v1394 = vunpack.c.h.b16 %v967
    %v1395 = vunpack.c.l.b16 %v968
    %v1396 = vunpack.c.h.b16 %v968
    %v1397 = vunpack.c.l.b16 %v969
    %v1398 = vunpack.c.h.b16 %v969
    %v1399 = vunpack.c.l.b16 %v970
    %v1400 = vunpack.c.h.b16 %v970
    %v1401 = vunpack.c.l.b16 %v971
    %v1402 = vunpack.c.h.b16 %v971
    %v1403 = vunpack.c.l.b16 %v972
    %v1404 = vunpack.c.h.b16 %v972
    %v1405 = vunpack.c.l.b16 %v973
    %v1406 = vunpack.c.h.b16 %v973
    %v1407 = vunpack.c.l.b16 %v974
    %v1408 = vunpack.c.h.b16 %v974
    %v1409 = vunpack.c.l.b16 %v975
    %v1410 = vunpack.c.h.b16 %v975
    %v1411 = vunpack.c.l.b16 %v976
    %v1412 = vunpack.c.h.b16 %v976
    %v1413 = vunpack.c.l.b16 %v977
    %v1414 = vunpack.c.h.b16 %v977
    %v1415 = vunpack.c.l.b16 %v978
    %v1416 = vunpack.c.h.b16 %v978
    %v1417 = vunpack.c.l.b16 %v979
    %v1418 = vunpack.c.h.b16 %v979
    %v1419 = vunpack.c.l.b16 %v980
    %v1420 = vunpack.c.h.b16 %v980
    %v1421 = vunpack.c.l.b16 %v981
    %v1422 = vunpack.c.h.b16 %v981
    %v1423 = vunpack.c.l.b16 %v982
    %v1424 = vunpack.c.h.b16 %v982
    %v1425 = vunpack.c.l.b16 %v983
    %v1426 = vunpack.c.h.b16 %v983
    %v1427 = vunpack.c.l.b16 %v984
    %v1428 = vunpack.c.h.b16 %v984
    %v1429 = vunpack.c.l.b16 %v985
    %v1430 = vunpack.c.h.b16 %v985
    %v1431 = vunpack.c.l.b16 %v986
    %v1432 = vunpack.c.h.b16 %v986
    %v1433 = vunpack.c.l.b16 %v987
    %v1434 = vunpack.c.h.b16 %v987
    %v1435 = vunpack.c.l.b16 %v988
    %v1436 = vunpack.c.h.b16 %v988
    %v1437 = vunpack.c.l.b16 %v989
    %v1438 = vunpack.c.h.b16 %v989
    %v1439 = vunpack.c.l.b16 %v990
    %v1440 = vunpack.c.h.b16 %v990
    %v1441 = vunpack.c.l.b16 %v991
    %v1442 = vunpack.c.h.b16 %v991
    %v1443 = vunpack.c.l.b16 %v992
    %v1444 = vunpack.c.h.b16 %v992
    %v1445 = vunpack.c.l.b16 %v993
    %v1446 = vunpack.c.h.b16 %v993
    %v1447 = vunpack.c.l.b16 %v994
    %v1448 = vunpack.c.h.b16 %v994
    %v1449 = vunpack.c.l.b16 %v995
    %v1450 = vunpack.c.h.b16 %v995
    %v1451 = vunpack.c.l.b16 %v996
    %v1452 = vunpack.c.h.b16 %v996
    %v1453 = vunpack.c.l.b16 %v997
    %v1454 = vunpack.c.h.b16 %v997
    %v1455 = vunpack.c.l.b16 %v998
    %v1456 = vunpack.c.h.b16 %v998
    %v1457 = vunpack.c.l.b16 %v999
    %v1458 = vunpack.c.h.b16 %v999
    %v1459 = vunpack.c.l.b16 %v1000
    %v1460 = vunpack.c.h.b16 %v1000
    %v1461 = vunpack.c.l.b16 %v1001
    %v1462 = vunpack.c.h.b16 %v1001
    %v1463 = vunpack.c.l.b16 %v1002
    %v1464 = vunpack.c.h.b16 %v1002
    %v1465 = vunpack.c.l.b16 %v1003
    %v1466 = vunpack.c.h.b16 %v1003
    %v1467 = vunpack.c.l.b16 %v1004
    %v1468 = vunpack.c.h.b16 %v1004
    %v1469 = vunpack.c.l.b16 %v1005
    %v1470 = vunpack.c.h.b16 %v1005
    %v1471 = vunpack.c.l.b16 %v1006
    %v1472 = vunpack.c.h.b16 %v1006
    %v1473 = vunpack.c.l.b16 %v1007
    %v1474 = vunpack.c.h.b16 %v1007
    %v1475 = vunpack.c.l.b16 %v1008
    %v1476 = vunpack.c.h.b16 %v1008
    %v1477 = vunpack.c.l.b16 %v1009
    %v1478 = vunpack.c.h.b16 %v1009
    %v1479 = vunpack.c.l.b16 %v1010
    %v1480 = vunpack.c.h.b16 %v1010
    %v1481 = vunpack.c.l.b16 %v1011
    %v1482 = vunpack.c.h.b16 %v1011
    %v1483 = vunpack.c.l.b16 %v1012
    %v1484 = vunpack.c.h.b16 %v1012
    %v1485 = vunpack.c.l.b16 %v1013
    %v1486 = vunpack.c.h.b16 %v1013
    %v1487 = vunpack.c.l.b16 %v1014
    %v1488 = vunpack.c.h.b16 %v1014
    %v1489 = vunpack.c.l.b16 %v1015
    %v1490 = vunpack.c.h.b16 %v1015
    %v1491 = vunpack.c.l.b16 %v1016
    %v1492 = vunpack.c.h.b16 %v1016
    %v1493 = vunpack.c.l.b16 %v1017
    %v1494 = vunpack.c.h.b16 %v1017
    %v1495 = vunpack.c.l.b16 %v1018
    %v1496 = vunpack.c.h.b16 %v1018
    %v1497 = vunpack.c.l.b16 %v1019
    %v1498 = vunpack.c.h.b16 %v1019
    %v1499 = vunpack.c.l.b16 %v1020
    %v1500 = vunpack.c.h.b16 %v1020
    %v1501 = vunpack.c.l.b16 %v1021
    %v1502 = vunpack.c.h.b16 %v1021
    %v1503 = vunpack.c.l.b16 %v1022
    %v1504 = vunpack.c.h.b16 %v1022
    %v1505 = vunpack.c.l.b16 %v1023
    %v1506 = vunpack.c.h.b16 %v1023
    %v1507 = vunpack.c.l.b16 %v1024
    %v1508 = vunpack.c.h.b16 %v1024
    %v1509 = vunpack.c.l.b16 %v1025
    %v1510 = vunpack.c.h.b16 %v1025
    %v1511 = vunpack.c.l.b16 %v1026
    %v1512 = vunpack.c.h.b16 %v1026
    %v1513 = vunpack.c.l.b16 %v1027
    %v1514 = vunpack.c.h.b16 %v1027
    %v1515 = vunpack.c.l.b16 %v1028
    %v1516 = vunpack.c.h.b16 %v1028
    %v1517 = vunpack.c.l.b16 %v1029
    %v1518 = vunpack.c.h.b16 %v1029
    %v1519 = vunpack.c.l.b16 %v1030
    %v1520 = vunpack.c.h.b16 %v1030
    %v1521 = vunpack.c.l.b16 %v1031
    %v1522 = vunpack.c.h.b16 %v1031
    %v1523 = vunpack.c.l.b16 %v1032
    %v1524 = vunpack.c.h.b16 %v1032
    %v1525 = vunpack.c.l.b16 %v1033
    %v1526 = vunpack.c.h.b16 %v1033
    %v1527 = vunpack.c.l.b16 %v1034
    %v1528 = vunpack.c.h.b16 %v1034
    %v1529 = vunpack.c.l.b16 %v1035
    %v1530 = vunpack.c.h.b16 %v1035
    %v1531 = vunpack.c.l.b16 %v1036
    %v1532 = vunpack.c.h.b16 %v1036
    %v1533 = vunpack.c.l.b16 %v1037
    %v1534 = vunpack.c.h.b16 %v1037
    %v1535 = vunpack.c.l.b16 %v1038
    %v1536 = vunpack.c.h.b16 %v1038
    %v1537 = vunpack.c.l.b16 %v1039
    %v1538 = vunpack.c.h.b16 %v1039
    %v1539 = vunpack.c.l.b16 %v1040
    %v1540 = vunpack.c.h.b16 %v1040
    %v1541 = vunpack.c.l.b16 %v1041
    %v1542 = vunpack.c.h.b16 %v1041
    %v1543 = vunpack.c.l.b16 %v1042
    %v1544 = vunpack.c.h.b16 %v1042
    %v1545 = vunpack.c.l.b16 %v1043
    %v1546 = vunpack.c.h.b16 %v1043
    %v1547 = vunpack.c.l.b16 %v1044
    %v1548 = vunpack.c.h.b16 %v1044
    %v1549 = vunpack.c.l.b16 %v1045
    %v1550 = vunpack.c.h.b16 %v1045
    %v1551 = vunpack.c.l.b16 %v1046
    %v1552 = vunpack.c.h.b16 %v1046
    %v1553 = vunpack.c.l.b16 %v1047
    %v1554 = vunpack.c.h.b16 %v1047
    %v1555 = vunpack.c.l.b16 %v1048
    %v1556 = vunpack.c.h.b16 %v1048
    %v1557 = vunpack.c.l.b16 %v1049
    %v1558 = vunpack.c.h.b16 %v1049
    %v1559 = vunpack.c.l.b16 %v1050
    %v1560 = vunpack.c.h.b16 %v1050
    %v1561 = vunpack.c.l.b16 %v1051
    %v1562 = vunpack.c.h.b16 %v1051
    %v1563 = vunpack.c.l.b16 %v1052
    %v1564 = vunpack.c.h.b16 %v1052
    %v1565 = vunpack.c.l.b16 %v1053
    %v1566 = vunpack.c.h.b16 %v1053
    %v1567 = vunpack.c.l.b16 %v1054
    %v1568 = vunpack.c.h.b16 %v1054
    %v1569 = vunpack.c.l.b16 %v1055
    %v1570 = vunpack.c.h.b16 %v1055
    %v1571 = vunpack.c.l.b16 %v1056
    %v1572 = vunpack.c.h.b16 %v1056
    %v1573 = vunpack.c.l.b16 %v1057
    %v1574 = vunpack.c.h.b16 %v1057
    %v1575 = vunpack.c.l.b16 %v1058
    %v1576 = vunpack.c.h.b16 %v1058
    %v1577 = vunpack.c.l.b16 %v1059
    %v1578 = vunpack.c.h.b16 %v1059
    %v1579 = vunpack.c.l.b16 %v1060
    %v1580 = vunpack.c.h.b16 %v1060
    %v1581 = vunpack.c.l.b16 %v1061
    %v1582 = vunpack.c.h.b16 %v1061
    %v1583 = vunpack.c.l.b16 %v1062
    %v1584 = vunpack.c.h.b16 %v1062
    %v1585 = vunpack.c.l.b16 %v1063
    %v1586 = vunpack.c.h.b16 %v1063
    %v1587 = vunpack.c.l.b16 %v1064
    %v1588 = vunpack.c.h.b16 %v1064
    %v1589 = vunpack.c.l.b16 %v1065
    %v1590 = vunpack.c.h.b16 %v1065
    %v1591 = vunpack.c.l.b16 %v1066
    %v1592 = vunpack.c.h.b16 %v1066
    %v1593 = vunpack.c.l.b16 %v1067
    %v1594 = vunpack.c.h.b16 %v1067
    %v1595 = vunpack.c.l.b16 %v1068
    %v1596 = vunpack.c.h.b16 %v1068
    %v1597 = vunpack.c.l.b16 %v1069
    %v1598 = vunpack.c.h.b16 %v1069
    %v1599 = vunpack.c.l.b16 %v1070
    %v1600 = vunpack.c.h.b16 %v1070
    %v1601 = vunpack.c.l.b16 %v1071
    %v1602 = vunpack.c.h.b16 %v1071
    %v1603 = vunpack.c.l.b16 %v1072
    %v1604 = vunpack.c.h.b16 %v1072
    %v1605 = vunpack.c.l.b16 %v1073
    %v1606 = vunpack.c.h.b16 %v1073
    %v1607 = vunpack.c.l.b16 %v1074
    %v1608 = vunpack.c.h.b16 %v1074
    %v1609 = vunpack.c.l.b16 %v1075
    %v1610 = vunpack.c.h.b16 %v1075
    %v1611 = vunpack.c.l.b16 %v1076
    %v1612 = vunpack.c.h.b16 %v1076
    %v1613 = vunpack.c.l.b16 %v1077
    %v1614 = vunpack.c.h.b16 %v1077
    %v1615 = vunpack.c.l.b16 %v1078
    %v1616 = vunpack.c.h.b16 %v1078
    %v1617 = vunpack.c.l.b16 %v1079
    %v1618 = vunpack.c.h.b16 %v1079
    %v1619 = vunpack.c.l.b16 %v1080
    %v1620 = vunpack.c.h.b16 %v1080
    %v1621 = vunpack.c.l.b16 %v1081
    %v1622 = vunpack.c.h.b16 %v1081
    %v1623 = vunpack.c.l.b16 %v1082
    %v1624 = vunpack.c.h.b16 %v1082
    %v1625 = vunpack.c.l.b16 %v1083
    %v1626 = vunpack.c.h.b16 %v1083
    %v1627 = vunpack.c.l.b16 %v1084
    %v1628 = vunpack.c.h.b16 %v1084
    %v1629 = vunpack.c.l.b16 %v1085
    %v1630 = vunpack.c.h.b16 %v1085
    %v1631 = vunpack.c.l.b16 %v1086
    %v1632 = vunpack.c.h.b16 %v1086
    %v1633 = vunpack.c.l.b16 %v1087
    %v1634 = vunpack.c.h.b16 %v1087
    %v1635 = vunpack.c.l.b16 %v1088
    %v1636 = vunpack.c.h.b16 %v1088
    %v1637 = vunpack.c.l.b16 %v1089
    %v1638 = vunpack.c.h.b16 %v1089
    %v1639 = vunpack.c.l.b16 %v1090
    %v1640 = vunpack.c.h.b16 %v1090
    %v1641 = vunpack.c.l.b16 %v1091
    %v1642 = vunpack.c.h.b16 %v1091
    %v1643 = vunpack.c.l.b16 %v1092
    %v1644 = vunpack.c.h.b16 %v1092
    %v1645 = vunpack.c.l.b16 %v1093
    %v1646 = vunpack.c.h.b16 %v1093
    %v1647 = vunpack.c.l.b16 %v1094
    %v1648 = vunpack.c.h.b16 %v1094
    %v1649 = vunpack.c.l.b16 %v1095
    %v1650 = vunpack.c.h.b16 %v1095
    %v1651 = vunpack.c.l.b16 %v1096
    %v1652 = vunpack.c.h.b16 %v1096
    %v1653 = vunpack.c.l.b16 %v1097
    %v1654 = vunpack.c.h.b16 %v1097
    %v1655 = vunpack.c.l.b16 %v1098
    %v1656 = vunpack.c.h.b16 %v1098
    %v1657 = vunpack.c.l.b16 %v1099
    %v1658 = vunpack.c.h.b16 %v1099
    %v1659 = vunpack.c.l.b16 %v1100
    %v1660 = vunpack.c.h.b16 %v1100
    %v1661 = vunpack.c.l.b16 %v1101
    %v1662 = vunpack.c.h.b16 %v1101
    %v1663 = vunpack.c.l.b16 %v1102
    %v1664 = vunpack.c.h.b16 %v1102
    %v1665 = vunpack.c.l.b16 %v1103
    %v1666 = vunpack.c.h.b16 %v1103
    %v1667 = vunpack.c.l.b16 %v1104
    %v1668 = vunpack.c.h.b16 %v1104
    %v1669 = vunpack.c.l.b16 %v1105
    %v1670 = vunpack.c.h.b16 %v1105
    %v1671 = vunpack.c.l.b16 %v1106
    %v1672 = vunpack.c.h.b16 %v1106
    %v1673 = vunpack.c.l.b16 %v1107
    %v1674 = vunpack.c.h.b16 %v1107
    %v1675 = vunpack.c.l.b16 %v1108
    %v1676 = vunpack.c.h.b16 %v1108
    %v1677 = vunpack.c.l.b16 %v1109
    %v1678 = vunpack.c.h.b16 %v1109
    %v1679 = vunpack.c.l.b16 %v1110
    %v1680 = vunpack.c.h.b16 %v1110
    %v1681 = vunpack.c.l.b16 %v1111
    %v1682 = vunpack.c.h.b16 %v1111
    %v1683 = vunpack.c.l.b16 %v1112
    %v1684 = vunpack.c.h.b16 %v1112
    %v1685 = vunpack.c.l.b16 %v1113
    %v1686 = vunpack.c.h.b16 %v1113
    %v1687 = vunpack.c.l.b16 %v1114
    %v1688 = vunpack.c.h.b16 %v1114
    %v1689 = vunpack.c.l.b16 %v1115
    %v1690 = vunpack.c.h.b16 %v1115
    %v1691 = vunpack.c.l.b16 %v1116
    %v1692 = vunpack.c.h.b16 %v1116
    %v1693 = vunpack.c.l.b16 %v1117
    %v1694 = vunpack.c.h.b16 %v1117
    %v1695 = vunpack.c.l.b16 %v1118
    %v1696 = vunpack.c.h.b16 %v1118
    %v1697 = vunpack.c.l.b16 %v1119
    %v1698 = vunpack.c.h.b16 %v1119
    %v1699 = vunpack.c.l.b16 %v1120
    %v1700 = vunpack.c.h.b16 %v1120
    %v1701 = vunpack.c.l.b16 %v1121
    %v1702 = vunpack.c.h.b16 %v1121
    %v1703 = vunpack.c.l.b16 %v1122
    %v1704 = vunpack.c.h.b16 %v1122
    %v1705 = vunpack.c.l.b16 %v1123
    %v1706 = vunpack.c.h.b16 %v1123
    %v1707 = vunpack.c.l.b16 %v1124
    %v1708 = vunpack.c.h.b16 %v1124
    %v1709 = vunpack.c.l.b16 %v1125
    %v1710 = vunpack.c.h.b16 %v1125
    %v1711 = vunpack.c.l.b16 %v1126
    %v1712 = vunpack.c.h.b16 %v1126
    %v1713 = vunpack.c.l.b16 %v1127
    %v1714 = vunpack.c.h.b16 %v1127
    %v1715 = vunpack.c.l.b16 %v1128
    %v1716 = vunpack.c.h.b16 %v1128
    %v1717 = vunpack.c.l.b16 %v1129
    %v1718 = vunpack.c.h.b16 %v1129
    %v1719 = vunpack.c.l.b16 %v1130
    %v1720 = vunpack.c.h.b16 %v1130
    %v1721 = vunpack.c.l.b16 %v1131
    %v1722 = vunpack.c.h.b16 %v1131
    %v1723 = vunpack.c.l.b16 %v1132
    %v1724 = vunpack.c.h.b16 %v1132
    %v1725 = vunpack.c.l.b16 %v1133
    %v1726 = vunpack.c.h.b16 %v1133
    %v1727 = vunpack.c.l.b16 %v1134
    %v1728 = vunpack.c.h.b16 %v1134
    %v1729 = vunpack.c.l.b16 %v1135
    %v1730 = vunpack.c.h.b16 %v1135
    %v1731 = vunpack.c.l.b16 %v1136
    %v1732 = vunpack.c.h.b16 %v1136
    %v1733 = vunpack.c.l.b16 %v1137
    %v1734 = vunpack.c.h.b16 %v1137
    %v1735 = vunpack.c.l.b16 %v1138
    %v1736 = vunpack.c.h.b16 %v1138
    %v1737 = vpack.c.b16 %v1357, %v1353
    %v1738 = vpack.c.b16 %v1358, %v1354
    %v1739 = vpack.c.b16 %v1359, %v1355
    %v1740 = vpack.c.b16 %v1360, %v1356
    %v1741 = vpack.c.b16 %v1365, %v1361
    %v1742 = vpack.c.b16 %v1366, %v1362
    %v1743 = vpack.c.b16 %v1367, %v1363
    %v1744 = vpack.c.b16 %v1368, %v1364
    %v1745 = vpack.c.b16 %v1373, %v1369
    %v1746 = vpack.c.b16 %v1374, %v1370
    %v1747 = vpack.c.b16 %v1375, %v1371
    %v1748 = vpack.c.b16 %v1376, %v1372
    %v1749 = vpack.c.b16 %v1381, %v1377
    %v1750 = vpack.c.b16 %v1382, %v1378
    %v1751 = vpack.c.b16 %v1383, %v1379
    %v1752 = vpack.c.b16 %v1384, %v1380
    %v1753 = vpack.c.b16 %v1389, %v1385
    %v1754 = vpack.c.b16 %v1390, %v1386
    %v1755 = vpack.c.b16 %v1391, %v1387
    %v1756 = vpack.c.b16 %v1392, %v1388
    %v1757 = vpack.c.b16 %v1397, %v1393
    %v1758 = vpack.c.b16 %v1398, %v1394
    %v1759 = vpack.c.b16 %v1399, %v1395
    %v1760 = vpack.c.b16 %v1400, %v1396
    %v1761 = vpack.c.b16 %v1405, %v1401
    %v1762 = vpack.c.b16 %v1406, %v1402
    %v1763 = vpack.c.b16 %v1407, %v1403
    %v1764 = vpack.c.b16 %v1408, %v1404
    %v1765 = vpack.c.b16 %v1413, %v1409
    %v1766 = vpack.c.b16 %v1414, %v1410
    %v1767 = vpack.c.b16 %v1415, %v1411
    %v1768 = vpack.c.b16 %v1416, %v1412
    %v1769 = vpack.c.b16 %v1421, %v1417
    %v1770 = vpack.c.b16 %v1422, %v1418
    %v1771 = vpack.c.b16 %v1423, %v1419
    %v1772 = vpack.c.b16 %v1424, %v1420
    %v1773 = vpack.c.b16 %v1429, %v1425
    %v1774 = vpack.c.b16 %v1430, %v1426
    %v1775 = vpack.c.b16 %v1431, %v1427
    %v1776 = vpack.c.b16 %v1432, %v1428
    %v1777 = vpack.c.b16 %v1437, %v1433
    %v1778 = vpack.c.b16 %v1438, %v1434
    %v1779 = vpack.c.b16 %v1439, %v1435
    %v1780 = vpack.c.b16 %v1440, %v1436
    %v1781 = vpack.c.b16 %v1445, %v1441
    %v1782 = vpack.c.b16 %v1446, %v1442
    %v1783 = vpack.c.b16 %v1447, %v1443
    %v1784 = vpack.c.b16 %v1448, %v1444
    %v1785 = vpack.c.b16 %v1453, %v1449
    %v1786 = vpack.c.b16 %v1454, %v1450
    %v1787 = vpack.c.b16 %v1455, %v1451
    %v1788 = vpack.c.b16 %v1456, %v1452
    %v1789 = vpack.c.b16 %v1461, %v1457
    %v1790 = vpack.c.b16 %v1462, %v1458
    %v1791 = vpack.c.b16 %v1463, %v1459
    %v1792 = vpack.c.b16 %v1464, %v1460
    %v1793 = vpack.c.b16 %v1469, %v1465
    %v1794 = vpack.c.b16 %v1470, %v1466
    %v1795 = vpack.c.b16 %v1471, %v1467
    %v1796 = vpack.c.b16 %v1472, %v1468
    %v1797 = vpack.c.b16 %v1477, %v1473
    %v1798 = vpack.c.b16 %v1478, %v1474
    %v1799 = vpack.c.b16 %v1479, %v1475
    %v1800 = vpack.c.b16 %v1480, %v1476
    %v1801 = vpack.c.b16 %v1485, %v1481
    %v1802 = vpack.c.b16 %v1486, %v1482
    %v1803 = vpack.c.b16 %v1487, %v1483
    %v1804 = vpack.c.b16 %v1488, %v1484
    %v1805 = vpack.c.b16 %v1493, %v1489
    %v1806 = vpack.c.b16 %v1494, %v1490
    %v1807 = vpack.c.b16 %v1495, %v1491
    %v1808 = vpack.c.b16 %v1496, %v1492
    %v1809 = vpack.c.b16 %v1501, %v1497
    %v1810 = vpack.c.b16 %v1502, %v1498
    %v1811 = vpack.c.b16 %v1503, %v1499
    %v1812 = vpack.c.b16 %v1504, %v1500
    %v1813 = vpack.c.b16 %v1509, %v1505
    %v1814 = vpack.c.b16 %v1510, %v1506
    %v1815 = vpack.c.b16 %v1511, %v1507
    %v1816 = vpack.c.b16 %v1512, %v1508
    %v1817 = vpack.c.b16 %v1517, %v1513
    %v1818 = vpack.c.b16 %v1518, %v1514
    %v1819 = vpack.c.b16 %v1519, %v1515
    %v1820 = vpack.c.b16 %v1520, %v1516
    %v1821 = vpack.c.b16 %v1525, %v1521
    %v1822 = vpack.c.b16 %v1526, %v1522
    %v1823 = vpack.c.b16 %v1527, %v1523
    %v1824 = vpack.c.b16 %v1528, %v1524
    %v1825 = vpack.c.b16 %v1533, %v1529
    %v1826 = vpack.c.b16 %v1534, %v1530
    %v1827 = vpack.c.b16 %v1535, %v1531
    %v1828 = vpack.c.b16 %v1536, %v1532
    %v1829 = vpack.c.b16 %v1541, %v1537
    %v1830 = vpack.c.b16 %v1542, %v1538
    %v1831 = vpack.c.b16 %v1543, %v1539
    %v1832 = vpack.c.b16 %v1544, %v1540
    %v1833 = vpack.c.b16 %v1549, %v1545
    %v1834 = vpack.c.b16 %v1550, %v1546
    %v1835 = vpack.c.b16 %v1551, %v1547
    %v1836 = vpack.c.b16 %v1552, %v1548
    %v1837 = vpack.c.b16 %v1557, %v1553
    %v1838 = vpack.c.b16 %v1558, %v1554
    %v1839 = vpack.c.b16 %v1559, %v1555
    %v1840 = vpack.c.b16 %v1560, %v1556
    %v1841 = vpack.c.b16 %v1565, %v1561
    %v1842 = vpack.c.b16 %v1566, %v1562
    %v1843 = vpack.c.b16 %v1567, %v1563
    %v1844 = vpack.c.b16 %v1568, %v1564
    %v1845 = vpack.c.b16 %v1573, %v1569
    %v1846 = vpack.c.b16 %v1574, %v1570
    %v1847 = vpack.c.b16 %v1575, %v1571
    %v1848 = vpack.c.b16 %v1576, %v1572
    %v1849 = vpack.c.b16 %v1581, %v1577
    %v1850 = vpack.c.b16 %v1582, %v1578
    %v1851 = vpack.c.b16 %v1583, %v1579
    %v1852 = vpack.c.b16 %v1584, %v1580
    %v1853 = vpack.c.b16 %v1589, %v1585
    %v1854 = vpack.c.b16 %v1590, %v1586
    %v1855 = vpack.c.b16 %v1591, %v1587
    %v1856 = vpack.c.b16 %v1592, %v1588
    %v1857 = vpack.c.b16 %v1597, %v1593
    %v1858 = vpack.c.b16 %v1598, %v1594
    %v1859 = vpack.c.b16 %v1599, %v1595
    %v1860 = vpack.c.b16 %v1600, %v1596
    %v1861 = vpack.c.b16 %v1605, %v1601
    %v1862 = vpack.c.b16 %v1606, %v1602
    %v1863 = vpack.c.b16 %v1607, %v1603
    %v1864 = vpack.c.b16 %v1608, %v1604
    %v1865 = vpack.c.b16 %v1613, %v1609
    %v1866 = vpack.c.b16 %v1614, %v1610
    %v1867 = vpack.c.b16 %v1615, %v1611
    %v1868 = vpack.c.b16 %v1616, %v1612
    %v1869 = vpack.c.b16 %v1621, %v1617
    %v1870 = vpack.c.b16 %v1622, %v1618
    %v1871 = vpack.c.b16 %v1623, %v1619
    %v1872 = vpack.c.b16 %v1624, %v1620
    %v1873 = vpack.c.b16 %v1629, %v1625
    %v1874 = vpack.c.b16 %v1630, %v1626
    %v1875 = vpack.c.b16 %v1631, %v1627
    %v1876 = vpack.c.b16 %v1632, %v1628
    %v1877 = vpack.c.b16 %v1637, %v1633
    %v1878 = vpack.c.b16 %v1638, %v1634
    %v1879 = vpack.c.b16 %v1639, %v1635
    %v1880 = vpack.c.b16 %v1640, %v1636
    %v1881 = vpack.c.b16 %v1645, %v1641
    %v1882 = vpack.c.b16 %v1646, %v1642
    %v1883 = vpack.c.b16 %v1647, %v1643
    %v1884 = vpack.c.b16 %v1648, %v1644
    %v1885 = vpack.c.b16 %v1653, %v1649
    %v1886 = vpack.c.b16 %v1654, %v1650
    %v1887 = vpack.c.b16 %v1655, %v1651
    %v1888 = vpack.c.b16 %v1656, %v1652
    %v1889 = vpack.c.b16 %v1661, %v1657
    %v1890 = vpack.c.b16 %v1662, %v1658
    %v1891 = vpack.c.b16 %v1663, %v1659
    %v1892 = vpack.c.b16 %v1664, %v1660
    %v1893 = vpack.c.b16 %v1669, %v1665
    %v1894 = vpack.c.b16 %v1670, %v1666
    %v1895 = vpack.c.b16 %v1671, %v1667
    %v1896 = vpack.c.b16 %v1672, %v1668
    %v1897 = vpack.c.b16 %v1677, %v1673
    %v1898 = vpack.c.b16 %v1678, %v1674
    %v1899 = vpack.c.b16 %v1679, %v1675
    %v1900 = vpack.c.b16 %v1680, %v1676
    %v1901 = vpack.c.b16 %v1685, %v1681
    %v1902 = vpack.c.b16 %v1686, %v1682
    %v1903 = vpack.c.b16 %v1687, %v1683
    %v1904 = vpack.c.b16 %v1688, %v1684
    %v1905 = vpack.c.b16 %v1693, %v1689
    %v1906 = vpack.c.b16 %v1694, %v1690
    %v1907 = vpack.c.b16 %v1695, %v1691
    %v1908 = vpack.c.b16 %v1696, %v1692
    %v1909 = vpack.c.b16 %v1701, %v1697
    %v1910 = vpack.c.b16 %v1702, %v1698
    %v1911 = vpack.c.b16 %v1703, %v1699
    %v1912 = vpack.c.b16 %v1704, %v1700
    %v1913 = vpack.c.b16 %v1709, %v1705
    %v1914 = vpack.c.b16 %v1710, %v1706
    %v1915 = vpack.c.b16 %v1711, %v1707
    %v1916 = vpack.c.b16 %v1712, %v1708
    %v1917 = vpack.c.b16 %v1717, %v1713
    %v1918 = vpack.c.b16 %v1718, %v1714
    %v1919 = vpack.c.b16 %v1719, %v1715
    %v1920 = vpack.c.b16 %v1720, %v1716
    %v1921 = vpack.c.b16 %v1725, %v1721
    %v1922 = vpack.c.b16 %v1726, %v1722
    %v1923 = vpack.c.b16 %v1727, %v1723
    %v1924 = vpack.c.b16 %v1728, %v1724
    %v1925 = vpack.c.b16 %v1733, %v1729
    %v1926 = vpack.c.b16 %v1734, %v1730
    %v1927 = vpack.c.b16 %v1735, %v1731
    %v1928 = vpack.c.b16 %v1736, %v1732
    %2121 = vmatprep.subr.bf16.mxu0 %v1738
    %2122 = vmatpush1.bf16.msra.mxu0 %v1737
    %2123 = vmatprep.subr.bf16.mxu0 %v1742
    %2124 = vmatpush1.bf16.msra.mxu0 %v1741
    %2125 = vmatprep.subr.bf16.mxu0 %v1746
    %2126 = vmatpush1.bf16.msra.mxu0 %v1745
    %2127 = vmatprep.subr.bf16.mxu0 %v1750
    %2128 = vmatpush1.bf16.msra.mxu0 %v1749
    %2129 = vmatprep.subr.bf16.mxu0 %v1754
    %2130 = vmatpush1.bf16.msra.mxu0 %v1753
    %2131 = vmatprep.subr.bf16.mxu0 %v1758
    %2132 = vmatpush1.bf16.msra.mxu0 %v1757
    %2133 = vmatprep.subr.bf16.mxu0 %v1762
    %2134 = vmatpush1.bf16.msra.mxu0 %v1761
    %2135 = vmatprep.subr.bf16.mxu0 %v1766
    %2136 = vmatpush1.bf16.msra.mxu0 %v1765
    %2137 = vmatprep.subr.bf16.mxu0 %v1770
    %2138 = vmatpush1.bf16.msra.mxu0 %v1769
    %2139 = vmatprep.subr.bf16.mxu0 %v1774
    %2140 = vmatpush1.bf16.msra.mxu0 %v1773
    %2141 = vmatprep.subr.bf16.mxu0 %v1778
    %2142 = vmatpush1.bf16.msra.mxu0 %v1777
    %2143 = vmatprep.subr.bf16.mxu0 %v1782
    %2144 = vmatpush1.bf16.msra.mxu0 %v1781
    %2145 = vmatprep.subr.bf16.mxu0 %v1786
    %2146 = vmatpush1.bf16.msra.mxu0 %v1785
    %2147 = vmatprep.subr.bf16.mxu0 %v1790
    %2148 = vmatpush1.bf16.msra.mxu0 %v1789
    %2149 = vmatprep.subr.bf16.mxu0 %v1794
    %2150 = vmatpush1.bf16.msra.mxu0 %v1793
    %2151 = vmatprep.subr.bf16.mxu0 %v1798
    %2152 = vmatpush1.bf16.msra.mxu0 %v1797
    %2153 = vmatprep.mubr.bf16.mxu0 %v942
    %2154 = vmatmul.mubr.bf16.gmra.mrb[0].mxu0 %v941
    %v2155 = vpop.f32.mrb[0].mxu0
    %v2156 = vadd.f32 %v1144, %v2155
    %v2157 = vpop.f32.mrb[0].mxu0
    %v2158 = vadd.f32 %v1148, %v2157
    %v2159 = vpop.f32.mrb[0].mxu0
    %v2160 = vpop.f32.mrb[0].mxu0
    %2161 = vdwg.mxu0
    %2162 = vmatprep.subr.bf16.mxu0 %v1802
    %2163 = vmatpush1.bf16.msra.mxu0 %v1801
    %2164 = vmatprep.subr.bf16.mxu0 %v1806
    %2165 = vmatpush1.bf16.msra.mxu0 %v1805
    %2166 = vmatprep.subr.bf16.mxu0 %v1810
    %2167 = vmatpush1.bf16.msra.mxu0 %v1809
    %2168 = vmatprep.subr.bf16.mxu0 %v1814
    %2169 = vmatpush1.bf16.msra.mxu0 %v1813
    %2170 = vmatprep.subr.bf16.mxu0 %v1818
    %2171 = vmatpush1.bf16.msra.mxu0 %v1817
    %2172 = vmatprep.subr.bf16.mxu0 %v1822
    %2173 = vmatpush1.bf16.msra.mxu0 %v1821
    %2174 = vmatprep.subr.bf16.mxu0 %v1826
    %2175 = vmatpush1.bf16.msra.mxu0 %v1825
    %2176 = vmatprep.subr.bf16.mxu0 %v1830
    %2177 = vmatpush1.bf16.msra.mxu0 %v1829
    %2178 = vmatprep.subr.bf16.mxu0 %v1834
    %2179 = vmatpush1.bf16.msra.mxu0 %v1833
    %2180 = vmatprep.subr.bf16.mxu0 %v1838
    %2181 = vmatpush1.bf16.msra.mxu0 %v1837
    %2182 = vmatprep.subr.bf16.mxu0 %v1842
    %2183 = vmatpush1.bf16.msra.mxu0 %v1841
    %2184 = vmatprep.subr.bf16.mxu0 %v1846
    %2185 = vmatpush1.bf16.msra.mxu0 %v1845
    %2186 = vmatprep.subr.bf16.mxu0 %v1850
    %2187 = vmatpush1.bf16.msra.mxu0 %v1849
    %2188 = vmatprep.subr.bf16.mxu0 %v1854
    %2189 = vmatpush1.bf16.msra.mxu0 %v1853
    %2190 = vmatprep.subr.bf16.mxu0 %v1858
    %2191 = vmatpush1.bf16.msra.mxu0 %v1857
    %2192 = vmatprep.subr.bf16.mxu0 %v1862
    %2193 = vmatpush1.bf16.msra.mxu0 %v1861
    %2194 = vmatprep.mubr.bf16.mxu0 %v944
    %2195 = vmatmul.mubr.bf16.gmra.mrb[0].mxu0 %v943
    %v2196 = vpop.f32.mrb[0].mxu0
    %v2197 = vadd.f32 %v2156, %v2196
    %v2198 = vpop.f32.mrb[0].mxu0
    %v2199 = vadd.f32 %v2158, %v2198
    %v2200 = vpop.f32.mrb[0].mxu0
    %v2201 = vpop.f32.mrb[0].mxu0
    %2202 = vdwg.mxu0
    %2203 = vmatprep.subr.bf16.mxu0 %v1866
    %2204 = vmatpush1.bf16.msra.mxu0 %v1865
    %2205 = vmatprep.subr.bf16.mxu0 %v1870
    %2206 = vmatpush1.bf16.msra.mxu0 %v1869
    %2207 = vmatprep.subr.bf16.mxu0 %v1874
    %2208 = vmatpush1.bf16.msra.mxu0 %v1873
    %2209 = vmatprep.subr.bf16.mxu0 %v1878
    %2210 = vmatpush1.bf16.msra.mxu0 %v1877
    %2211 = vmatprep.subr.bf16.mxu0 %v1882
    %2212 = vmatpush1.bf16.msra.mxu0 %v1881
    %2213 = vmatprep.subr.bf16.mxu0 %v1886
    %2214 = vmatpush1.bf16.msra.mxu0 %v1885
    %2215 = vmatprep.subr.bf16.mxu0 %v1890
    %2216 = vmatpush1.bf16.msra.mxu0 %v1889
    %2217 = vmatprep.subr.bf16.mxu0 %v1894
    %2218 = vmatpush1.bf16.msra.mxu0 %v1893
    %2219 = vmatprep.subr.bf16.mxu0 %v1898
    %2220 = vmatpush1.bf16.msra.mxu0 %v1897
    %2221 = vmatprep.subr.bf16.mxu0 %v1902
    %2222 = vmatpush1.bf16.msra.mxu0 %v1901
    %2223 = vmatprep.subr.bf16.mxu0 %v1906
    %2224 = vmatpush1.bf16.msra.mxu0 %v1905
    %2225 = vmatprep.subr.bf16.mxu0 %v1910
    %2226 = vmatpush1.bf16.msra.mxu0 %v1909
    %2227 = vmatprep.subr.bf16.mxu0 %v1914
    %2228 = vmatpush1.bf16.msra.mxu0 %v1913
    %2229 = vmatprep.subr.bf16.mxu0 %v1918
    %2230 = vmatpush1.bf16.msra.mxu0 %v1917
    %2231 = vmatprep.subr.bf16.mxu0 %v1922
    %2232 = vmatpush1.bf16.msra.mxu0 %v1921
    %2233 = vmatprep.subr.bf16.mxu0 %v1926
    %2234 = vmatpush1.bf16.msra.mxu0 %v1925
    %2235 = vmatprep.mubr.bf16.mxu0 %v946
    %2236 = vmatmul.mubr.bf16.gmra.mrb[0].mxu0 %v945
    %v2237 = vpop.f32.mrb[0].mxu0
    %v2238 = vadd.f32 %v2197, %v2237
    %v2239 = vpop.f32.mrb[0].mxu0
    %v2240 = vadd.f32 %v2199, %v2239
    %v2241 = vpop.f32.mrb[0].mxu0
    %v2242 = vpop.f32.mrb[0].mxu0
    %2243 = vdwg.mxu0
    %2244 = vmatprep.subr.bf16.mxu0 %v1740
    %2245 = vmatpush1.bf16.msra.mxu0 %v1739
    %2246 = vmatprep.subr.bf16.mxu0 %v1744
    %2247 = vmatpush1.bf16.msra.mxu0 %v1743
    %2248 = vmatprep.subr.bf16.mxu0 %v1748
    %2249 = vmatpush1.bf16.msra.mxu0 %v1747
    %2250 = vmatprep.subr.bf16.mxu0 %v1752
    %2251 = vmatpush1.bf16.msra.mxu0 %v1751
    %2252 = vmatprep.subr.bf16.mxu0 %v1756
    %2253 = vmatpush1.bf16.msra.mxu0 %v1755
    %2254 = vmatprep.subr.bf16.mxu0 %v1760
    %2255 = vmatpush1.bf16.msra.mxu0 %v1759
    %2256 = vmatprep.subr.bf16.mxu0 %v1764
    %2257 = vmatpush1.bf16.msra.mxu0 %v1763
    %2258 = vmatprep.subr.bf16.mxu0 %v1768
    %2259 = vmatpush1.bf16.msra.mxu0 %v1767
    %2260 = vmatprep.subr.bf16.mxu0 %v1772
    %2261 = vmatpush1.bf16.msra.mxu0 %v1771
    %2262 = vmatprep.subr.bf16.mxu0 %v1776
    %2263 = vmatpush1.bf16.msra.mxu0 %v1775
    %2264 = vmatprep.subr.bf16.mxu0 %v1780
    %2265 = vmatpush1.bf16.msra.mxu0 %v1779
    %2266 = vmatprep.subr.bf16.mxu0 %v1784
    %2267 = vmatpush1.bf16.msra.mxu0 %v1783
    %2268 = vmatprep.subr.bf16.mxu0 %v1788
    %2269 = vmatpush1.bf16.msra.mxu0 %v1787
    %2270 = vmatprep.subr.bf16.mxu0 %v1792
    %2271 = vmatpush1.bf16.msra.mxu0 %v1791
    %2272 = vmatprep.subr.bf16.mxu0 %v1796
    %2273 = vmatpush1.bf16.msra.mxu0 %v1795
    %2274 = vmatprep.subr.bf16.mxu0 %v1800
    %2275 = vmatpush1.bf16.msra.mxu0 %v1799
    %2276 = vmatprep.mubr.bf16.mxu0 %v942
    %2277 = vmatmul.mubr.bf16.gmra.mrb[0].mxu0 %v941
    %v2278 = vpop.f32.mrb[0].mxu0
    %v2279 = vadd.f32 %v1152, %v2278
    %v2280 = vpop.f32.mrb[0].mxu0
    %v2281 = vadd.f32 %v1156, %v2280
    %v2282 = vpop.f32.mrb[0].mxu0
    %v2283 = vpop.f32.mrb[0].mxu0
    %2284 = vdwg.mxu0
    %2285 = vmatprep.subr.bf16.mxu0 %v1804
    %2286 = vmatpush1.bf16.msra.mxu0 %v1803
    %2287 = vmatprep.subr.bf16.mxu0 %v1808
    %2288 = vmatpush1.bf16.msra.mxu0 %v1807
    %2289 = vmatprep.subr.bf16.mxu0 %v1812
    %2290 = vmatpush1.bf16.msra.mxu0 %v1811
    %2291 = vmatprep.subr.bf16.mxu0 %v1816
    %2292 = vmatpush1.bf16.msra.mxu0 %v1815
    %2293 = vmatprep.subr.bf16.mxu0 %v1820
    %2294 = vmatpush1.bf16.msra.mxu0 %v1819
    %2295 = vmatprep.subr.bf16.mxu0 %v1824
    %2296 = vmatpush1.bf16.msra.mxu0 %v1823
    %2297 = vmatprep.subr.bf16.mxu0 %v1828
    %2298 = vmatpush1.bf16.msra.mxu0 %v1827
    %2299 = vmatprep.subr.bf16.mxu0 %v1832
    %2300 = vmatpush1.bf16.msra.mxu0 %v1831
    %2301 = vmatprep.subr.bf16.mxu0 %v1836
    %2302 = vmatpush1.bf16.msra.mxu0 %v1835
    %2303 = vmatprep.subr.bf16.mxu0 %v1840
    %2304 = vmatpush1.bf16.msra.mxu0 %v1839
    %2305 = vmatprep.subr.bf16.mxu0 %v1844
    %2306 = vmatpush1.bf16.msra.mxu0 %v1843
    %2307 = vmatprep.subr.bf16.mxu0 %v1848
    %2308 = vmatpush1.bf16.msra.mxu0 %v1847
    %2309 = vmatprep.subr.bf16.mxu0 %v1852
    %2310 = vmatpush1.bf16.msra.mxu0 %v1851
    %2311 = vmatprep.subr.bf16.mxu0 %v1856
    %2312 = vmatpush1.bf16.msra.mxu0 %v1855
    %2313 = vmatprep.subr.bf16.mxu0 %v1860
    %2314 = vmatpush1.bf16.msra.mxu0 %v1859
    %2315 = vmatprep.subr.bf16.mxu0 %v1864
    %2316 = vmatpush1.bf16.msra.mxu0 %v1863
    %2317 = vmatprep.mubr.bf16.mxu0 %v944
    %2318 = vmatmul.mubr.bf16.gmra.mrb[0].mxu0 %v943
    %v2319 = vpop.f32.mrb[0].mxu0
    %v2320 = vadd.f32 %v2279, %v2319
    %v2321 = vpop.f32.mrb[0].mxu0
    %v2322 = vadd.f32 %v2281, %v2321
    %v2323 = vpop.f32.mrb[0].mxu0
    %v2324 = vpop.f32.mrb[0].mxu0
    %2325 = vdwg.mxu0
    %2326 = vmatprep.subr.bf16.mxu0 %v1868
    %2327 = vmatpush1.bf16.msra.mxu0 %v1867
    %2328 = vmatprep.subr.bf16.mxu0 %v1872
    %2329 = vmatpush1.bf16.msra.mxu0 %v1871
    %2330 = vmatprep.subr.bf16.mxu0 %v1876
    %2331 = vmatpush1.bf16.msra.mxu0 %v1875
    %2332 = vmatprep.subr.bf16.mxu0 %v1880
    %2333 = vmatpush1.bf16.msra.mxu0 %v1879
    %2334 = vmatprep.subr.bf16.mxu0 %v1884
    %2335 = vmatpush1.bf16.msra.mxu0 %v1883
    %2336 = vmatprep.subr.bf16.mxu0 %v1888
    %2337 = vmatpush1.bf16.msra.mxu0 %v1887
    %2338 = vmatprep.subr.bf16.mxu0 %v1892
    %2339 = vmatpush1.bf16.msra.mxu0 %v1891
    %2340 = vmatprep.subr.bf16.mxu0 %v1896
    %2341 = vmatpush1.bf16.msra.mxu0 %v1895
    %2342 = vmatprep.subr.bf16.mxu0 %v1900
    %2343 = vmatpush1.bf16.msra.mxu0 %v1899
    %2344 = vmatprep.subr.bf16.mxu0 %v1904
    %2345 = vmatpush1.bf16.msra.mxu0 %v1903
    %2346 = vmatprep.subr.bf16.mxu0 %v1908
    %2347 = vmatpush1.bf16.msra.mxu0 %v1907
    %2348 = vmatprep.subr.bf16.mxu0 %v1912
    %2349 = vmatpush1.bf16.msra.mxu0 %v1911
    %2350 = vmatprep.subr.bf16.mxu0 %v1916
    %2351 = vmatpush1.bf16.msra.mxu0 %v1915
    %2352 = vmatprep.subr.bf16.mxu0 %v1920
    %2353 = vmatpush1.bf16.msra.mxu0 %v1919
    %2354 = vmatprep.subr.bf16.mxu0 %v1924
    %2355 = vmatpush1.bf16.msra.mxu0 %v1923
    %2356 = vmatprep.subr.bf16.mxu0 %v1928
    %2357 = vmatpush1.bf16.msra.mxu0 %v1927
    %2358 = vmatprep.mubr.bf16.mxu0 %v946
    %2359 = vmatmul.mubr.bf16.gmra.mrb[0].mxu0 %v945
    %v2360 = vpop.f32.mrb[0].mxu0
    %v2361 = vadd.f32 %v2320, %v2360
    %v2362 = vpop.f32.mrb[0].mxu0
    %v2363 = vadd.f32 %v2322, %v2362
    %v2364 = vpop.f32.mrb[0].mxu0
    %v2365 = vpop.f32.mrb[0].mxu0
    %2366 = vdwg.mxu0
    %v2367 = vmax.f32 %v2238, 0.0
    %v2368 = vmax.f32 %v2240, 0.0
    %v2369 = vmax.f32 %v2361, 0.0
    %v2370 = vmax.f32 %v2363, 0.0
    %v2371 = vpack.c.bf16 %v2367, %v2367
    %v2372 = vpack.c.bf16 %v2368, %v2368
    %v2373 = vpack.c.bf16 %v2369, %v2369
    %v2374 = vpack.c.bf16 %v2370, %v2370
    %v2375 = vld [vmem:[#allocation10] sm:$0xff]
    %v2376 = vld [vmem:[#allocation10 + $0x8] sm:$0xff]
    %v2377 = vld [vmem:[#allocation10 + $0x10] sm:$0xff]
    %v2378 = vld [vmem:[#allocation10 + $0x18] sm:$0xff]
    %v2379 = vld [vmem:[#allocation10 + $0x20] sm:$0xff]
    %v2380 = vld [vmem:[#allocation10 + $0x28] sm:$0xff]
    %v2381 = vld [vmem:[#allocation10 + $0x30] sm:$0xff]
    %v2382 = vld [vmem:[#allocation10 + $0x38] sm:$0xff]
    %v2383 = vld [vmem:[#allocation10 + $0x40] sm:$0xff]
    %v2384 = vld [vmem:[#allocation10 + $0x48] sm:$0xff]
    %v2385 = vld [vmem:[#allocation10 + $0x50] sm:$0xff]
    %v2386 = vld [vmem:[#allocation10 + $0x58] sm:$0xff]
    %v2387 = vld [vmem:[#allocation10 + $0x60] sm:$0xff]
    %v2388 = vld [vmem:[#allocation10 + $0x68] sm:$0xff]
    %v2389 = vld [vmem:[#allocation10 + $0x70] sm:$0xff]
    %v2390 = vld [vmem:[#allocation10 + $0x78] sm:$0xff]
    %v2391 = vld [vmem:[#allocation10 + $0x80] sm:$0xff]
    %v2392 = vld [vmem:[#allocation10 + $0x88] sm:$0xff]
    %v2393 = vld [vmem:[#allocation10 + $0x90] sm:$0xff]
    %v2394 = vld [vmem:[#allocation10 + $0x98] sm:$0xff]
    %v2395 = vld [vmem:[#allocation10 + $0xa0] sm:$0xff]
    %v2396 = vld [vmem:[#allocation10 + $0xa8] sm:$0xff]
    %v2397 = vld [vmem:[#allocation10 + $0xb0] sm:$0xff]
    %v2398 = vld [vmem:[#allocation10 + $0xb8] sm:$0xff]
    %v2399 = vld [vmem:[#allocation10 + $0xc0] sm:$0xff]
    %v2400 = vld [vmem:[#allocation10 + $0xc8] sm:$0xff]
    %v2401 = vld [vmem:[#allocation10 + $0xd0] sm:$0xff]
    %v2402 = vld [vmem:[#allocation10 + $0xd8] sm:$0xff]
    %v2403 = vld [vmem:[#allocation10 + $0xe0] sm:$0xff]
    %v2404 = vld [vmem:[#allocation10 + $0xe8] sm:$0xff]
    %v2405 = vld [vmem:[#allocation10 + $0xf0] sm:$0xff]
    %v2406 = vld [vmem:[#allocation10 + $0xf8] sm:$0xff]
    %v2407 = vld [vmem:[#allocation10 + $0x100] sm:$0xff]
    %v2408 = vld [vmem:[#allocation10 + $0x108] sm:$0xff]
    %v2409 = vld [vmem:[#allocation10 + $0x110] sm:$0xff]
    %v2410 = vld [vmem:[#allocation10 + $0x118] sm:$0xff]
    %v2411 = vld [vmem:[#allocation10 + $0x120] sm:$0xff]
    %v2412 = vld [vmem:[#allocation10 + $0x128] sm:$0xff]
    %v2413 = vld [vmem:[#allocation10 + $0x130] sm:$0xff]
    %v2414 = vld [vmem:[#allocation10 + $0x138] sm:$0xff]
    %v2415 = vld [vmem:[#allocation10 + $0x140] sm:$0xff]
    %v2416 = vld [vmem:[#allocation10 + $0x148] sm:$0xff]
    %v2417 = vld [vmem:[#allocation10 + $0x150] sm:$0xff]
    %v2418 = vld [vmem:[#allocation10 + $0x158] sm:$0xff]
    %v2419 = vld [vmem:[#allocation10 + $0x160] sm:$0xff]
    %v2420 = vld [vmem:[#allocation10 + $0x168] sm:$0xff]
    %v2421 = vld [vmem:[#allocation10 + $0x170] sm:$0xff]
    %v2422 = vld [vmem:[#allocation10 + $0x178] sm:$0xff]
    %v2423 = vld [vmem:[#allocation10 + $0x180] sm:$0xff]
    %v2424 = vld [vmem:[#allocation10 + $0x188] sm:$0xff]
    %v2425 = vld [vmem:[#allocation10 + $0x190] sm:$0xff]
    %v2426 = vld [vmem:[#allocation10 + $0x198] sm:$0xff]
    %v2427 = vld [vmem:[#allocation10 + $0x1a0] sm:$0xff]
    %v2428 = vld [vmem:[#allocation10 + $0x1a8] sm:$0xff]
    %v2429 = vld [vmem:[#allocation10 + $0x1b0] sm:$0xff]
    %v2430 = vld [vmem:[#allocation10 + $0x1b8] sm:$0xff]
    %v2431 = vld [vmem:[#allocation10 + $0x1c0] sm:$0xff]
    %v2432 = vld [vmem:[#allocation10 + $0x1c8] sm:$0xff]
    %v2433 = vld [vmem:[#allocation10 + $0x1d0] sm:$0xff]
    %v2434 = vld [vmem:[#allocation10 + $0x1d8] sm:$0xff]
    %v2435 = vld [vmem:[#allocation10 + $0x1e0] sm:$0xff]
    %v2436 = vld [vmem:[#allocation10 + $0x1e8] sm:$0xff]
    %v2437 = vld [vmem:[#allocation10 + $0x1f0] sm:$0xff]
    %v2438 = vld [vmem:[#allocation10 + $0x1f8] sm:$0xff]
    %v2439 = vld [vmem:[%s7] sm:$0x3]
    %v2441 = vlaneseq
    %v2442 = vshrl.u32 %v2441, 7
    %v2443 = vsub.s32 0, %v2442
    %v2444 = vrot.slane %v2439, %v2443
    %v2445 = vlaneseq
    %v2446 = vshrl.u32 %v2445, 7
    %v2447 = vsub.s32 1, %v2446
    %v2448 = vrot.slane %v2439, %v2447
    %v2515 = vunpack.c.l.b16 %v2375
    %v2516 = vunpack.c.h.b16 %v2375
    %v2517 = vunpack.c.l.b16 %v2376
    %v2518 = vunpack.c.h.b16 %v2376
    %v2519 = vunpack.c.l.b16 %v2377
    %v2520 = vunpack.c.h.b16 %v2377
    %v2521 = vunpack.c.l.b16 %v2378
    %v2522 = vunpack.c.h.b16 %v2378
    %v2523 = vunpack.c.l.b16 %v2379
    %v2524 = vunpack.c.h.b16 %v2379
    %v2525 = vunpack.c.l.b16 %v2380
    %v2526 = vunpack.c.h.b16 %v2380
    %v2527 = vunpack.c.l.b16 %v2381
    %v2528 = vunpack.c.h.b16 %v2381
    %v2529 = vunpack.c.l.b16 %v2382
    %v2530 = vunpack.c.h.b16 %v2382
    %v2531 = vunpack.c.l.b16 %v2383
    %v2532 = vunpack.c.h.b16 %v2383
    %v2533 = vunpack.c.l.b16 %v2384
    %v2534 = vunpack.c.h.b16 %v2384
    %v2535 = vunpack.c.l.b16 %v2385
    %v2536 = vunpack.c.h.b16 %v2385
    %v2537 = vunpack.c.l.b16 %v2386
    %v2538 = vunpack.c.h.b16 %v2386
    %v2539 = vunpack.c.l.b16 %v2387
    %v2540 = vunpack.c.h.b16 %v2387
    %v2541 = vunpack.c.l.b16 %v2388
    %v2542 = vunpack.c.h.b16 %v2388
    %v2543 = vunpack.c.l.b16 %v2389
    %v2544 = vunpack.c.h.b16 %v2389
    %v2545 = vunpack.c.l.b16 %v2390
    %v2546 = vunpack.c.h.b16 %v2390
    %v2547 = vunpack.c.l.b16 %v2391
    %v2548 = vunpack.c.h.b16 %v2391
    %v2549 = vunpack.c.l.b16 %v2392
    %v2550 = vunpack.c.h.b16 %v2392
    %v2551 = vunpack.c.l.b16 %v2393
    %v2552 = vunpack.c.h.b16 %v2393
    %v2553 = vunpack.c.l.b16 %v2394
    %v2554 = vunpack.c.h.b16 %v2394
    %v2555 = vunpack.c.l.b16 %v2395
    %v2556 = vunpack.c.h.b16 %v2395
    %v2557 = vunpack.c.l.b16 %v2396
    %v2558 = vunpack.c.h.b16 %v2396
    %v2559 = vunpack.c.l.b16 %v2397
    %v2560 = vunpack.c.h.b16 %v2397
    %v2561 = vunpack.c.l.b16 %v2398
    %v2562 = vunpack.c.h.b16 %v2398
    %v2563 = vunpack.c.l.b16 %v2399
    %v2564 = vunpack.c.h.b16 %v2399
    %v2565 = vunpack.c.l.b16 %v2400
    %v2566 = vunpack.c.h.b16 %v2400
    %v2567 = vunpack.c.l.b16 %v2401
    %v2568 = vunpack.c.h.b16 %v2401
    %v2569 = vunpack.c.l.b16 %v2402
    %v2570 = vunpack.c.h.b16 %v2402
    %v2571 = vunpack.c.l.b16 %v2403
    %v2572 = vunpack.c.h.b16 %v2403
    %v2573 = vunpack.c.l.b16 %v2404
    %v2574 = vunpack.c.h.b16 %v2404
    %v2575 = vunpack.c.l.b16 %v2405
    %v2576 = vunpack.c.h.b16 %v2405
    %v2577 = vunpack.c.l.b16 %v2406
    %v2578 = vunpack.c.h.b16 %v2406
    %v2579 = vunpack.c.l.b16 %v2407
    %v2580 = vunpack.c.h.b16 %v2407
    %v2581 = vunpack.c.l.b16 %v2408
    %v2582 = vunpack.c.h.b16 %v2408
    %v2583 = vunpack.c.l.b16 %v2409
    %v2584 = vunpack.c.h.b16 %v2409
    %v2585 = vunpack.c.l.b16 %v2410
    %v2586 = vunpack.c.h.b16 %v2410
    %v2587 = vunpack.c.l.b16 %v2411
    %v2588 = vunpack.c.h.b16 %v2411
    %v2589 = vunpack.c.l.b16 %v2412
    %v2590 = vunpack.c.h.b16 %v2412
    %v2591 = vunpack.c.l.b16 %v2413
    %v2592 = vunpack.c.h.b16 %v2413
    %v2593 = vunpack.c.l.b16 %v2414
    %v2594 = vunpack.c.h.b16 %v2414
    %v2595 = vunpack.c.l.b16 %v2415
    %v2596 = vunpack.c.h.b16 %v2415
    %v2597 = vunpack.c.l.b16 %v2416
    %v2598 = vunpack.c.h.b16 %v2416
    %v2599 = vunpack.c.l.b16 %v2417
    %v2600 = vunpack.c.h.b16 %v2417
    %v2601 = vunpack.c.l.b16 %v2418
    %v2602 = vunpack.c.h.b16 %v2418
    %v2603 = vunpack.c.l.b16 %v2419
    %v2604 = vunpack.c.h.b16 %v2419
    %v2605 = vunpack.c.l.b16 %v2420
    %v2606 = vunpack.c.h.b16 %v2420
    %v2607 = vunpack.c.l.b16 %v2421
    %v2608 = vunpack.c.h.b16 %v2421
    %v2609 = vunpack.c.l.b16 %v2422
    %v2610 = vunpack.c.h.b16 %v2422
    %v2611 = vunpack.c.l.b16 %v2423
    %v2612 = vunpack.c.h.b16 %v2423
    %v2613 = vunpack.c.l.b16 %v2424
    %v2614 = vunpack.c.h.b16 %v2424
    %v2615 = vunpack.c.l.b16 %v2425
    %v2616 = vunpack.c.h.b16 %v2425
    %v2617 = vunpack.c.l.b16 %v2426
    %v2618 = vunpack.c.h.b16 %v2426
    %v2619 = vunpack.c.l.b16 %v2427
    %v2620 = vunpack.c.h.b16 %v2427
    %v2621 = vunpack.c.l.b16 %v2428
    %v2622 = vunpack.c.h.b16 %v2428
    %v2623 = vunpack.c.l.b16 %v2429
    %v2624 = vunpack.c.h.b16 %v2429
    %v2625 = vunpack.c.l.b16 %v2430
    %v2626 = vunpack.c.h.b16 %v2430
    %v2627 = vunpack.c.l.b16 %v2431
    %v2628 = vunpack.c.h.b16 %v2431
    %v2629 = vunpack.c.l.b16 %v2432
    %v2630 = vunpack.c.h.b16 %v2432
    %v2631 = vunpack.c.l.b16 %v2433
    %v2632 = vunpack.c.h.b16 %v2433
    %v2633 = vunpack.c.l.b16 %v2434
    %v2634 = vunpack.c.h.b16 %v2434
    %v2635 = vunpack.c.l.b16 %v2435
    %v2636 = vunpack.c.h.b16 %v2435
    %v2637 = vunpack.c.l.b16 %v2436
    %v2638 = vunpack.c.h.b16 %v2436
    %v2639 = vunpack.c.l.b16 %v2437
    %v2640 = vunpack.c.h.b16 %v2437
    %v2641 = vunpack.c.l.b16 %v2438
    %v2642 = vunpack.c.h.b16 %v2438
    %v2643 = vpack.c.b16 %v2517, %v2515
    %v2644 = vpack.c.b16 %v2518, %v2516
    %v2645 = vpack.c.b16 %v2521, %v2519
    %v2646 = vpack.c.b16 %v2522, %v2520
    %v2647 = vpack.c.b16 %v2525, %v2523
    %v2648 = vpack.c.b16 %v2526, %v2524
    %v2649 = vpack.c.b16 %v2529, %v2527
    %v2650 = vpack.c.b16 %v2530, %v2528
    %v2651 = vpack.c.b16 %v2533, %v2531
    %v2652 = vpack.c.b16 %v2534, %v2532
    %v2653 = vpack.c.b16 %v2537, %v2535
    %v2654 = vpack.c.b16 %v2538, %v2536
    %v2655 = vpack.c.b16 %v2541, %v2539
    %v2656 = vpack.c.b16 %v2542, %v2540
    %v2657 = vpack.c.b16 %v2545, %v2543
    %v2658 = vpack.c.b16 %v2546, %v2544
    %v2659 = vpack.c.b16 %v2549, %v2547
    %v2660 = vpack.c.b16 %v2550, %v2548
    %v2661 = vpack.c.b16 %v2553, %v2551
    %v2662 = vpack.c.b16 %v2554, %v2552
    %v2663 = vpack.c.b16 %v2557, %v2555
    %v2664 = vpack.c.b16 %v2558, %v2556
    %v2665 = vpack.c.b16 %v2561, %v2559
    %v2666 = vpack.c.b16 %v2562, %v2560
    %v2667 = vpack.c.b16 %v2565, %v2563
    %v2668 = vpack.c.b16 %v2566, %v2564
    %v2669 = vpack.c.b16 %v2569, %v2567
    %v2670 = vpack.c.b16 %v2570, %v2568
    %v2671 = vpack.c.b16 %v2573, %v2571
    %v2672 = vpack.c.b16 %v2574, %v2572
    %v2673 = vpack.c.b16 %v2577, %v2575
    %v2674 = vpack.c.b16 %v2578, %v2576
    %v2675 = vpack.c.b16 %v2581, %v2579
    %v2676 = vpack.c.b16 %v2582, %v2580
    %v2677 = vpack.c.b16 %v2585, %v2583
    %v2678 = vpack.c.b16 %v2586, %v2584
    %v2679 = vpack.c.b16 %v2589, %v2587
    %v2680 = vpack.c.b16 %v2590, %v2588
    %v2681 = vpack.c.b16 %v2593, %v2591
    %v2682 = vpack.c.b16 %v2594, %v2592
    %v2683 = vpack.c.b16 %v2597, %v2595
    %v2684 = vpack.c.b16 %v2598, %v2596
    %v2685 = vpack.c.b16 %v2601, %v2599
    %v2686 = vpack.c.b16 %v2602, %v2600
    %v2687 = vpack.c.b16 %v2605, %v2603
    %v2688 = vpack.c.b16 %v2606, %v2604
    %v2689 = vpack.c.b16 %v2609, %v2607
    %v2690 = vpack.c.b16 %v2610, %v2608
    %v2691 = vpack.c.b16 %v2613, %v2611
    %v2692 = vpack.c.b16 %v2614, %v2612
    %v2693 = vpack.c.b16 %v2617, %v2615
    %v2694 = vpack.c.b16 %v2618, %v2616
    %v2695 = vpack.c.b16 %v2621, %v2619
    %v2696 = vpack.c.b16 %v2622, %v2620
    %v2697 = vpack.c.b16 %v2625, %v2623
    %v2698 = vpack.c.b16 %v2626, %v2624
    %v2699 = vpack.c.b16 %v2629, %v2627
    %v2700 = vpack.c.b16 %v2630, %v2628
    %v2701 = vpack.c.b16 %v2633, %v2631
    %v2702 = vpack.c.b16 %v2634, %v2632
    %v2703 = vpack.c.b16 %v2637, %v2635
    %v2704 = vpack.c.b16 %v2638, %v2636
    %v2705 = vpack.c.b16 %v2641, %v2639
    %v2706 = vpack.c.b16 %v2642, %v2640
    %2771 = vmatprep.subr.bf16.mxu0 %v2644
    %2772 = vmatpush1.bf16.msra.mxu0 %v2643
    %2773 = vmatprep.subr.bf16.mxu0 %v2646
    %2774 = vmatpush1.bf16.msra.mxu0 %v2645
    %2775 = vmatprep.subr.bf16.mxu0 %v2648
    %2776 = vmatpush1.bf16.msra.mxu0 %v2647
    %2777 = vmatprep.subr.bf16.mxu0 %v2650
    %2778 = vmatpush1.bf16.msra.mxu0 %v2649
    %2779 = vmatprep.subr.bf16.mxu0 %v2652
    %2780 = vmatpush1.bf16.msra.mxu0 %v2651
    %2781 = vmatprep.subr.bf16.mxu0 %v2654
    %2782 = vmatpush1.bf16.msra.mxu0 %v2653
    %2783 = vmatprep.subr.bf16.mxu0 %v2656
    %2784 = vmatpush1.bf16.msra.mxu0 %v2655
    %2785 = vmatprep.subr.bf16.mxu0 %v2658
    %2786 = vmatpush1.bf16.msra.mxu0 %v2657
    %2787 = vmatprep.subr.bf16.mxu0 %v2660
    %2788 = vmatpush1.bf16.msra.mxu0 %v2659
    %2789 = vmatprep.subr.bf16.mxu0 %v2662
    %2790 = vmatpush1.bf16.msra.mxu0 %v2661
    %2791 = vmatprep.subr.bf16.mxu0 %v2664
    %2792 = vmatpush1.bf16.msra.mxu0 %v2663
    %2793 = vmatprep.subr.bf16.mxu0 %v2666
    %2794 = vmatpush1.bf16.msra.mxu0 %v2665
    %2795 = vmatprep.subr.bf16.mxu0 %v2668
    %2796 = vmatpush1.bf16.msra.mxu0 %v2667
    %2797 = vmatprep.subr.bf16.mxu0 %v2670
    %2798 = vmatpush1.bf16.msra.mxu0 %v2669
    %2799 = vmatprep.subr.bf16.mxu0 %v2672
    %2800 = vmatpush1.bf16.msra.mxu0 %v2671
    %2801 = vmatprep.subr.bf16.mxu0 %v2674
    %2802 = vmatpush1.bf16.msra.mxu0 %v2673
    %2803 = vmatprep.mubr.bf16.mxu0 %v2372
    %2804 = vmatmul.mubr.bf16.gmra.mrb[0].mxu0 %v2371
    %v2805 = vpop.f32.mrb[0].mxu0
    %v2806 = vadd.f32 %v2444, %v2805
    %v2807 = vpop.f32.mrb[0].mxu0
    %v2808 = vadd.f32 %v2448, %v2807
    %v2809 = vpop.f32.mrb[0].mxu0
    %v2810 = vpop.f32.mrb[0].mxu0
    %2811 = vdwg.mxu0
    %2812 = vmatprep.subr.bf16.mxu0 %v2676
    %2813 = vmatpush1.bf16.msra.mxu0 %v2675
    %2814 = vmatprep.subr.bf16.mxu0 %v2678
    %2815 = vmatpush1.bf16.msra.mxu0 %v2677
    %2816 = vmatprep.subr.bf16.mxu0 %v2680
    %2817 = vmatpush1.bf16.msra.mxu0 %v2679
    %2818 = vmatprep.subr.bf16.mxu0 %v2682
    %2819 = vmatpush1.bf16.msra.mxu0 %v2681
    %2820 = vmatprep.subr.bf16.mxu0 %v2684
    %2821 = vmatpush1.bf16.msra.mxu0 %v2683
    %2822 = vmatprep.subr.bf16.mxu0 %v2686
    %2823 = vmatpush1.bf16.msra.mxu0 %v2685
    %2824 = vmatprep.subr.bf16.mxu0 %v2688
    %2825 = vmatpush1.bf16.msra.mxu0 %v2687
    %2826 = vmatprep.subr.bf16.mxu0 %v2690
    %2827 = vmatpush1.bf16.msra.mxu0 %v2689
    %2828 = vmatprep.subr.bf16.mxu0 %v2692
    %2829 = vmatpush1.bf16.msra.mxu0 %v2691
    %2830 = vmatprep.subr.bf16.mxu0 %v2694
    %2831 = vmatpush1.bf16.msra.mxu0 %v2693
    %2832 = vmatprep.subr.bf16.mxu0 %v2696
    %2833 = vmatpush1.bf16.msra.mxu0 %v2695
    %2834 = vmatprep.subr.bf16.mxu0 %v2698
    %2835 = vmatpush1.bf16.msra.mxu0 %v2697
    %2836 = vmatprep.subr.bf16.mxu0 %v2700
    %2837 = vmatpush1.bf16.msra.mxu0 %v2699
    %2838 = vmatprep.subr.bf16.mxu0 %v2702
    %2839 = vmatpush1.bf16.msra.mxu0 %v2701
    %2840 = vmatprep.subr.bf16.mxu0 %v2704
    %2841 = vmatpush1.bf16.msra.mxu0 %v2703
    %2842 = vmatprep.subr.bf16.mxu0 %v2706
    %2843 = vmatpush1.bf16.msra.mxu0 %v2705
    %2844 = vmatprep.mubr.bf16.mxu0 %v2374
    %2845 = vmatmul.mubr.bf16.gmra.mrb[0].mxu0 %v2373
    %v2846 = vpop.f32.mrb[0].mxu0
    %v2847 = vadd.f32 %v2806, %v2846
    %v2848 = vpop.f32.mrb[0].mxu0
    %v2849 = vadd.f32 %v2808, %v2848
    %v2850 = vpop.f32.mrb[0].mxu0
    %v2851 = vpop.f32.mrb[0].mxu0
    %2852 = vdwg.mxu0
    %v2853 = vmax.f32 %v2847, 0.0
    %v2854 = vmax.f32 %v2849, 0.0
    %v2855 = vpack.c.bf16 %v2853, %v2853
    %v2856 = vpack.c.bf16 %v2854, %v2854
    %v2857 = vld [vmem:[#allocation11] sm:$0xf]
    %v2858 = vld [vmem:[#allocation11 + $0x4] sm:$0xf]
    %v2859 = vld [vmem:[#allocation11 + $0x8] sm:$0xf]
    %v2860 = vld [vmem:[#allocation11 + $0xc] sm:$0xf]
    %v2861 = vld [vmem:[#allocation11 + $0x10] sm:$0xf]
    %v2862 = vld [vmem:[#allocation11 + $0x14] sm:$0xf]
    %v2863 = vld [vmem:[#allocation11 + $0x18] sm:$0xf]
    %v2864 = vld [vmem:[#allocation11 + $0x1c] sm:$0xf]
    %v2865 = vld [vmem:[#allocation11 + $0x20] sm:$0xf]
    %v2866 = vld [vmem:[#allocation11 + $0x24] sm:$0xf]
    %v2867 = vld [vmem:[#allocation11 + $0x28] sm:$0xf]
    %v2868 = vld [vmem:[#allocation11 + $0x2c] sm:$0xf]
    %v2869 = vld [vmem:[#allocation11 + $0x30] sm:$0xf]
    %v2870 = vld [vmem:[#allocation11 + $0x34] sm:$0xf]
    %v2871 = vld [vmem:[#allocation11 + $0x38] sm:$0xf]
    %v2872 = vld [vmem:[#allocation11 + $0x3c] sm:$0xf]
    %v2873 = vld [vmem:[#allocation11 + $0x40] sm:$0xf]
    %v2874 = vld [vmem:[#allocation11 + $0x44] sm:$0xf]
    %v2875 = vld [vmem:[#allocation11 + $0x48] sm:$0xf]
    %v2876 = vld [vmem:[#allocation11 + $0x4c] sm:$0xf]
    %v2877 = vld [vmem:[#allocation11 + $0x50] sm:$0xf]
    %v2878 = vld [vmem:[#allocation11 + $0x54] sm:$0xf]
    %v2879 = vld [vmem:[#allocation11 + $0x58] sm:$0xf]
    %v2880 = vld [vmem:[#allocation11 + $0x5c] sm:$0xf]
    %v2881 = vld [vmem:[#allocation11 + $0x60] sm:$0xf]
    %v2882 = vld [vmem:[#allocation11 + $0x64] sm:$0xf]
    %v2883 = vld [vmem:[#allocation11 + $0x68] sm:$0xf]
    %v2884 = vld [vmem:[#allocation11 + $0x6c] sm:$0xf]
    %v2885 = vld [vmem:[#allocation11 + $0x70] sm:$0xf]
    %v2886 = vld [vmem:[#allocation11 + $0x74] sm:$0xf]
    %v2887 = vld [vmem:[#allocation11 + $0x78] sm:$0xf]
    %v2888 = vld [vmem:[#allocation11 + $0x7c] sm:$0xf]
    %v2889 = vld [vmem:[%s9] sm:$0x1]
    %v2891 = vlaneseq
    %v2892 = vshrl.u32 %v2891, 7
    %v2893 = vsub.s32 0, %v2892
    %v2894 = vrot.slane %v2889, %v2893
    %v2928 = vunpack.c.l.b16 %v2857
    %v2929 = vunpack.c.l.b16 %v2858
    %v2930 = vunpack.c.l.b16 %v2859
    %v2931 = vunpack.c.l.b16 %v2860
    %v2932 = vunpack.c.l.b16 %v2861
    %v2933 = vunpack.c.l.b16 %v2862
    %v2934 = vunpack.c.l.b16 %v2863
    %v2935 = vunpack.c.l.b16 %v2864
    %v2936 = vunpack.c.l.b16 %v2865
    %v2937 = vunpack.c.l.b16 %v2866
    %v2938 = vunpack.c.l.b16 %v2867
    %v2939 = vunpack.c.l.b16 %v2868
    %v2940 = vunpack.c.l.b16 %v2869
    %v2941 = vunpack.c.l.b16 %v2870
    %v2942 = vunpack.c.l.b16 %v2871
    %v2943 = vunpack.c.l.b16 %v2872
    %v2944 = vunpack.c.l.b16 %v2873
    %v2945 = vunpack.c.l.b16 %v2874
    %v2946 = vunpack.c.l.b16 %v2875
    %v2947 = vunpack.c.l.b16 %v2876
    %v2948 = vunpack.c.l.b16 %v2877
    %v2949 = vunpack.c.l.b16 %v2878
    %v2950 = vunpack.c.l.b16 %v2879
    %v2951 = vunpack.c.l.b16 %v2880
    %v2952 = vunpack.c.l.b16 %v2881
    %v2953 = vunpack.c.l.b16 %v2882
    %v2954 = vunpack.c.l.b16 %v2883
    %v2955 = vunpack.c.l.b16 %v2884
    %v2956 = vunpack.c.l.b16 %v2885
    %v2957 = vunpack.c.l.b16 %v2886
    %v2958 = vunpack.c.l.b16 %v2887
    %v2959 = vunpack.c.l.b16 %v2888
    %v2960 = vpack.c.b16 %v2929, %v2928
    %v2961 = vpack.c.b16 %v2931, %v2930
    %v2962 = vpack.c.b16 %v2933, %v2932
    %v2963 = vpack.c.b16 %v2935, %v2934
    %v2964 = vpack.c.b16 %v2937, %v2936
    %v2965 = vpack.c.b16 %v2939, %v2938
    %v2966 = vpack.c.b16 %v2941, %v2940
    %v2967 = vpack.c.b16 %v2943, %v2942
    %v2968 = vpack.c.b16 %v2945, %v2944
    %v2969 = vpack.c.b16 %v2947, %v2946
    %v2970 = vpack.c.b16 %v2949, %v2948
    %v2971 = vpack.c.b16 %v2951, %v2950
    %v2972 = vpack.c.b16 %v2953, %v2952
    %v2973 = vpack.c.b16 %v2955, %v2954
    %v2974 = vpack.c.b16 %v2957, %v2956
    %v2975 = vpack.c.b16 %v2959, %v2958
    %2992 = vmatprep.subr.bf16.mxu0 0
    %2993 = vmatpush1.bf16.msra.mxu0 %v2960
    %2994 = vmatprep.subr.bf16.mxu0 0
    %2995 = vmatpush1.bf16.msra.mxu0 %v2961
    %2996 = vmatprep.subr.bf16.mxu0 0
    %2997 = vmatpush1.bf16.msra.mxu0 %v2962
    %2998 = vmatprep.subr.bf16.mxu0 0
    %2999 = vmatpush1.bf16.msra.mxu0 %v2963
    %3000 = vmatprep.subr.bf16.mxu0 0
    %3001 = vmatpush1.bf16.msra.mxu0 %v2964
    %3002 = vmatprep.subr.bf16.mxu0 0
    %3003 = vmatpush1.bf16.msra.mxu0 %v2965
    %3004 = vmatprep.subr.bf16.mxu0 0
    %3005 = vmatpush1.bf16.msra.mxu0 %v2966
    %3006 = vmatprep.subr.bf16.mxu0 0
    %3007 = vmatpush1.bf16.msra.mxu0 %v2967
    %3008 = vmatprep.subr.bf16.mxu0 0
    %3009 = vmatpush1.bf16.msra.mxu0 %v2968
    %3010 = vmatprep.subr.bf16.mxu0 0
    %3011 = vmatpush1.bf16.msra.mxu0 %v2969
    %3012 = vmatprep.subr.bf16.mxu0 0
    %3013 = vmatpush1.bf16.msra.mxu0 %v2970
    %3014 = vmatprep.subr.bf16.mxu0 0
    %3015 = vmatpush1.bf16.msra.mxu0 %v2971
    %3016 = vmatprep.subr.bf16.mxu0 0
    %3017 = vmatpush1.bf16.msra.mxu0 %v2972
    %3018 = vmatprep.subr.bf16.mxu0 0
    %3019 = vmatpush1.bf16.msra.mxu0 %v2973
    %3020 = vmatprep.subr.bf16.mxu0 0
    %3021 = vmatpush1.bf16.msra.mxu0 %v2974
    %3022 = vmatprep.subr.bf16.mxu0 0
    %3023 = vmatpush1.bf16.msra.mxu0 %v2975
    %3024 = vmatprep.mubr.bf16.mxu0 %v2856
    %3025 = vmatmul.mubr.bf16.gmra.mrb[0].mxu0 %v2855
    %v3026 = vpop.f32.mrb[0].mxu0
    %v3027 = vadd.f32 %v2894, %v3026
    %v3028 = vpop.f32.mrb[0].mxu0
    %v3029 = vpop.f32.mrb[0].mxu0
    %v3030 = vpop.f32.mrb[0].mxu0
    %3031 = vdwg.mxu0
    %3032 = vst [vmem:[#allocation20] sm:$0xff] %v3027
    %3033 = vrot.lane.b32.xlu0 %v3027, 96
    %v3034 = vpop.permute.xlu0 %3033
    %v3035 = vld [vmem:[#allocation5] sm:$0xff]
    %v3036 = vmul.f32 %v3034, 0.5
    %v3037 = vmul.f32 %v3036, 1.442695
    %v3038 = vpow.pop %v3037
    %v3039 = vmul.f32 %v3035, %v3038
    %v3040 = vadd.f32 %v3027, %v3039
    %v3041 = vpack.c.bf16 %v3040, %v3040
    %v3042 = vld [vmem:[#allocation13] sm:$0xff]
    %v3043 = vld [vmem:[#allocation13 + $0x8] sm:$0xff]
    %v3044 = vld [vmem:[#allocation13 + $0x10] sm:$0xff]
    %v3045 = vld [vmem:[#allocation13 + $0x18] sm:$0xff]
    %v3046 = vld [vmem:[#allocation13 + $0x20] sm:$0xff]
    %v3047 = vld [vmem:[#allocation13 + $0x28] sm:$0xff]
    %v3048 = vld [vmem:[#allocation13 + $0x30] sm:$0xff]
    %v3049 = vld [vmem:[#allocation13 + $0x38] sm:$0xff]
    %v3050 = vld [vmem:[#allocation13 + $0x40] sm:$0xff]
    %v3051 = vld [vmem:[#allocation13 + $0x48] sm:$0xff]
    %v3052 = vld [vmem:[#allocation13 + $0x50] sm:$0xff]
    %v3053 = vld [vmem:[#allocation13 + $0x58] sm:$0xff]
    %v3054 = vld [vmem:[#allocation13 + $0x60] sm:$0xff]
    %v3055 = vld [vmem:[#allocation13 + $0x68] sm:$0xff]
    %v3056 = vld [vmem:[#allocation13 + $0x70] sm:$0xff]
    %v3057 = vld [vmem:[#allocation13 + $0x78] sm:$0xff]
    %v3058 = vld [vmem:[#allocation13 + $0x80] sm:$0xff]
    %v3059 = vld [vmem:[#allocation13 + $0x88] sm:$0xff]
    %v3060 = vld [vmem:[#allocation13 + $0x90] sm:$0xff]
    %v3061 = vld [vmem:[#allocation13 + $0x98] sm:$0xff]
    %v3062 = vld [vmem:[#allocation13 + $0xa0] sm:$0xff]
    %v3063 = vld [vmem:[#allocation13 + $0xa8] sm:$0xff]
    %v3064 = vld [vmem:[#allocation13 + $0xb0] sm:$0xff]
    %v3065 = vld [vmem:[#allocation13 + $0xb8] sm:$0xff]
    %v3066 = vld [vmem:[#allocation13 + $0xc0] sm:$0xff]
    %v3067 = vld [vmem:[#allocation13 + $0xc8] sm:$0xff]
    %v3068 = vld [vmem:[#allocation13 + $0xd0] sm:$0xff]
    %v3069 = vld [vmem:[#allocation13 + $0xd8] sm:$0xff]
    %v3070 = vld [vmem:[#allocation13 + $0xe0] sm:$0xff]
    %v3071 = vld [vmem:[#allocation13 + $0xe8] sm:$0xff]
    %v3072 = vld [vmem:[#allocation13 + $0xf0] sm:$0xff]
    %v3073 = vld [vmem:[#allocation13 + $0xf8] sm:$0xff]
    %v3074 = vld [vmem:[#allocation13 + $0x100] sm:$0xff]
    %v3075 = vld [vmem:[#allocation13 + $0x108] sm:$0xff]
    %v3076 = vld [vmem:[#allocation13 + $0x110] sm:$0xff]
    %v3077 = vld [vmem:[#allocation13 + $0x118] sm:$0xff]
    %v3078 = vld [vmem:[#allocation13 + $0x120] sm:$0xff]
    %v3079 = vld [vmem:[#allocation13 + $0x128] sm:$0xff]
    %v3080 = vld [vmem:[#allocation13 + $0x130] sm:$0xff]
    %v3081 = vld [vmem:[#allocation13 + $0x138] sm:$0xff]
    %v3082 = vld [vmem:[#allocation13 + $0x140] sm:$0xff]
    %v3083 = vld [vmem:[#allocation13 + $0x148] sm:$0xff]
    %v3084 = vld [vmem:[#allocation13 + $0x150] sm:$0xff]
    %v3085 = vld [vmem:[#allocation13 + $0x158] sm:$0xff]
    %v3086 = vld [vmem:[#allocation13 + $0x160] sm:$0xff]
    %v3087 = vld [vmem:[#allocation13 + $0x168] sm:$0xff]
    %v3088 = vld [vmem:[#allocation13 + $0x170] sm:$0xff]
    %v3089 = vld [vmem:[#allocation13 + $0x178] sm:$0xff]
    %v3090 = vld [vmem:[%s11] sm:$0x3f]
    %v3092 = vlaneseq
    %v3093 = vshrl.u32 %v3092, 7
    %v3094 = vsub.s32 0, %v3093
    %v3095 = vrot.slane %v3090, %v3094
    %v3096 = vlaneseq
    %v3097 = vshrl.u32 %v3096, 7
    %v3098 = vsub.s32 1, %v3097
    %v3099 = vrot.slane %v3090, %v3098
    %v3100 = vlaneseq
    %v3101 = vshrl.u32 %v3100, 7
    %v3102 = vsub.s32 2, %v3101
    %v3103 = vrot.slane %v3090, %v3102
    %v3104 = vlaneseq
    %v3105 = vshrl.u32 %v3104, 7
    %v3106 = vsub.s32 3, %v3105
    %v3107 = vrot.slane %v3090, %v3106
    %v3108 = vlaneseq
    %v3109 = vshrl.u32 %v3108, 7
    %v3110 = vsub.s32 4, %v3109
    %v3111 = vrot.slane %v3090, %v3110
    %v3112 = vlaneseq
    %v3113 = vshrl.u32 %v3112, 7
    %v3114 = vsub.s32 5, %v3113
    %v3115 = vrot.slane %v3090, %v3114
    %v3170 = vunpack.c.l.b16 %v3042
    %v3171 = vunpack.c.h.b16 %v3042
    %v3172 = vunpack.c.l.b16 %v3043
    %v3173 = vunpack.c.h.b16 %v3043
    %v3174 = vunpack.c.l.b16 %v3044
    %v3175 = vunpack.c.h.b16 %v3044
    %v3176 = vunpack.c.l.b16 %v3045
    %v3177 = vunpack.c.h.b16 %v3045
    %v3178 = vunpack.c.l.b16 %v3046
    %v3179 = vunpack.c.h.b16 %v3046
    %v3180 = vunpack.c.l.b16 %v3047
    %v3181 = vunpack.c.h.b16 %v3047
    %v3182 = vunpack.c.l.b16 %v3048
    %v3183 = vunpack.c.h.b16 %v3048
    %v3184 = vunpack.c.l.b16 %v3049
    %v3185 = vunpack.c.h.b16 %v3049
    %v3186 = vunpack.c.l.b16 %v3050
    %v3187 = vunpack.c.h.b16 %v3050
    %v3188 = vunpack.c.l.b16 %v3051
    %v3189 = vunpack.c.h.b16 %v3051
    %v3190 = vunpack.c.l.b16 %v3052
    %v3191 = vunpack.c.h.b16 %v3052
    %v3192 = vunpack.c.l.b16 %v3053
    %v3193 = vunpack.c.h.b16 %v3053
    %v3194 = vunpack.c.l.b16 %v3054
    %v3195 = vunpack.c.h.b16 %v3054
    %v3196 = vunpack.c.l.b16 %v3055
    %v3197 = vunpack.c.h.b16 %v3055
    %v3198 = vunpack.c.l.b16 %v3056
    %v3199 = vunpack.c.h.b16 %v3056
    %v3200 = vunpack.c.l.b16 %v3057
    %v3201 = vunpack.c.h.b16 %v3057
    %v3202 = vunpack.c.l.b16 %v3058
    %v3203 = vunpack.c.h.b16 %v3058
    %v3204 = vunpack.c.l.b16 %v3059
    %v3205 = vunpack.c.h.b16 %v3059
    %v3206 = vunpack.c.l.b16 %v3060
    %v3207 = vunpack.c.h.b16 %v3060
    %v3208 = vunpack.c.l.b16 %v3061
    %v3209 = vunpack.c.h.b16 %v3061
    %v3210 = vunpack.c.l.b16 %v3062
    %v3211 = vunpack.c.h.b16 %v3062
    %v3212 = vunpack.c.l.b16 %v3063
    %v3213 = vunpack.c.h.b16 %v3063
    %v3214 = vunpack.c.l.b16 %v3064
    %v3215 = vunpack.c.h.b16 %v3064
    %v3216 = vunpack.c.l.b16 %v3065
    %v3217 = vunpack.c.h.b16 %v3065
    %v3218 = vunpack.c.l.b16 %v3066
    %v3219 = vunpack.c.h.b16 %v3066
    %v3220 = vunpack.c.l.b16 %v3067
    %v3221 = vunpack.c.h.b16 %v3067
    %v3222 = vunpack.c.l.b16 %v3068
    %v3223 = vunpack.c.h.b16 %v3068
    %v3224 = vunpack.c.l.b16 %v3069
    %v3225 = vunpack.c.h.b16 %v3069
    %v3226 = vunpack.c.l.b16 %v3070
    %v3227 = vunpack.c.h.b16 %v3070
    %v3228 = vunpack.c.l.b16 %v3071
    %v3229 = vunpack.c.h.b16 %v3071
    %v3230 = vunpack.c.l.b16 %v3072
    %v3231 = vunpack.c.h.b16 %v3072
    %v3232 = vunpack.c.l.b16 %v3073
    %v3233 = vunpack.c.h.b16 %v3073
    %v3234 = vunpack.c.l.b16 %v3074
    %v3235 = vunpack.c.h.b16 %v3074
    %v3236 = vunpack.c.l.b16 %v3075
    %v3237 = vunpack.c.h.b16 %v3075
    %v3238 = vunpack.c.l.b16 %v3076
    %v3239 = vunpack.c.h.b16 %v3076
    %v3240 = vunpack.c.l.b16 %v3077
    %v3241 = vunpack.c.h.b16 %v3077
    %v3242 = vunpack.c.l.b16 %v3078
    %v3243 = vunpack.c.h.b16 %v3078
    %v3244 = vunpack.c.l.b16 %v3079
    %v3245 = vunpack.c.h.b16 %v3079
    %v3246 = vunpack.c.l.b16 %v3080
    %v3247 = vunpack.c.h.b16 %v3080
    %v3248 = vunpack.c.l.b16 %v3081
    %v3249 = vunpack.c.h.b16 %v3081
    %v3250 = vunpack.c.l.b16 %v3082
    %v3251 = vunpack.c.h.b16 %v3082
    %v3252 = vunpack.c.l.b16 %v3083
    %v3253 = vunpack.c.h.b16 %v3083
    %v3254 = vunpack.c.l.b16 %v3084
    %v3255 = vunpack.c.h.b16 %v3084
    %v3256 = vunpack.c.l.b16 %v3085
    %v3257 = vunpack.c.h.b16 %v3085
    %v3258 = vunpack.c.l.b16 %v3086
    %v3259 = vunpack.c.h.b16 %v3086
    %v3260 = vunpack.c.l.b16 %v3087
    %v3261 = vunpack.c.h.b16 %v3087
    %v3262 = vunpack.c.l.b16 %v3088
    %v3263 = vunpack.c.h.b16 %v3088
    %v3264 = vunpack.c.l.b16 %v3089
    %v3265 = vunpack.c.h.b16 %v3089
    %v3266 = vpack.c.b16 %v3176, %v3170
    %v3267 = vpack.c.b16 %v3177, %v3171
    %v3268 = vpack.c.b16 %v3178, %v3172
    %v3269 = vpack.c.b16 %v3179, %v3173
    %v3270 = vpack.c.b16 %v3180, %v3174
    %v3271 = vpack.c.b16 %v3181, %v3175
    %v3272 = vpack.c.b16 %v3188, %v3182
    %v3273 = vpack.c.b16 %v3189, %v3183
    %v3274 = vpack.c.b16 %v3190, %v3184
    %v3275 = vpack.c.b16 %v3191, %v3185
    %v3276 = vpack.c.b16 %v3192, %v3186
    %v3277 = vpack.c.b16 %v3193, %v3187
    %v3278 = vpack.c.b16 %v3200, %v3194
    %v3279 = vpack.c.b16 %v3201, %v3195
    %v3280 = vpack.c.b16 %v3202, %v3196
    %v3281 = vpack.c.b16 %v3203, %v3197
    %v3282 = vpack.c.b16 %v3204, %v3198
    %v3283 = vpack.c.b16 %v3205, %v3199
    %v3284 = vpack.c.b16 %v3212, %v3206
    %v3285 = vpack.c.b16 %v3213, %v3207
    %v3286 = vpack.c.b16 %v3214, %v3208
    %v3287 = vpack.c.b16 %v3215, %v3209
    %v3288 = vpack.c.b16 %v3216, %v3210
    %v3289 = vpack.c.b16 %v3217, %v3211
    %v3290 = vpack.c.b16 %v3224, %v3218
    %v3291 = vpack.c.b16 %v3225, %v3219
    %v3292 = vpack.c.b16 %v3226, %v3220
    %v3293 = vpack.c.b16 %v3227, %v3221
    %v3294 = vpack.c.b16 %v3228, %v3222
    %v3295 = vpack.c.b16 %v3229, %v3223
    %v3296 = vpack.c.b16 %v3236, %v3230
    %v3297 = vpack.c.b16 %v3237, %v3231
    %v3298 = vpack.c.b16 %v3238, %v3232
    %v3299 = vpack.c.b16 %v3239, %v3233
    %v3300 = vpack.c.b16 %v3240, %v3234
    %v3301 = vpack.c.b16 %v3241, %v3235
    %v3302 = vpack.c.b16 %v3248, %v3242
    %v3303 = vpack.c.b16 %v3249, %v3243
    %v3304 = vpack.c.b16 %v3250, %v3244
    %v3305 = vpack.c.b16 %v3251, %v3245
    %v3306 = vpack.c.b16 %v3252, %v3246
    %v3307 = vpack.c.b16 %v3253, %v3247
    %v3308 = vpack.c.b16 %v3260, %v3254
    %v3309 = vpack.c.b16 %v3261, %v3255
    %v3310 = vpack.c.b16 %v3262, %v3256
    %v3311 = vpack.c.b16 %v3263, %v3257
    %v3312 = vpack.c.b16 %v3264, %v3258
    %v3313 = vpack.c.b16 %v3265, %v3259
    %3362 = vmatprep.subr.bf16.mxu0 %v3267
    %3363 = vmatpush1.bf16.msra.mxu0 %v3266
    %3364 = vmatprep.subr.bf16.mxu0 %v3273
    %3365 = vmatpush1.bf16.msra.mxu0 %v3272
    %3366 = vmatprep.subr.bf16.mxu0 %v3279
    %3367 = vmatpush1.bf16.msra.mxu0 %v3278
    %3368 = vmatprep.subr.bf16.mxu0 %v3285
    %3369 = vmatpush1.bf16.msra.mxu0 %v3284
    %3370 = vmatprep.subr.bf16.mxu0 %v3291
    %3371 = vmatpush1.bf16.msra.mxu0 %v3290
    %3372 = vmatprep.subr.bf16.mxu0 %v3297
    %3373 = vmatpush1.bf16.msra.mxu0 %v3296
    %3374 = vmatprep.subr.bf16.mxu0 %v3303
    %3375 = vmatpush1.bf16.msra.mxu0 %v3302
    %3376 = vmatprep.subr.bf16.mxu0 %v3309
    %3377 = vmatpush1.bf16.msra.mxu0 %v3308
    %3378 = vmatprep.subr.bf16.mxu0 0
    %3379 = vmatpush1.bf16.msra.mxu0 0
    %3380 = vmatprep.subr.bf16.mxu0 0
    %3381 = vmatpush1.bf16.msra.mxu0 0
    %3382 = vmatprep.subr.bf16.mxu0 0
    %3383 = vmatpush1.bf16.msra.mxu0 0
    %3384 = vmatprep.subr.bf16.mxu0 0
    %3385 = vmatpush1.bf16.msra.mxu0 0
    %3386 = vmatprep.subr.bf16.mxu0 0
    %3387 = vmatpush1.bf16.msra.mxu0 0
    %3388 = vmatprep.subr.bf16.mxu0 0
    %3389 = vmatpush1.bf16.msra.mxu0 0
    %3390 = vmatprep.subr.bf16.mxu0 0
    %3391 = vmatpush1.bf16.msra.mxu0 0
    %3392 = vmatprep.subr.bf16.mxu0 0
    %3393 = vmatpush1.bf16.msra.mxu0 0
    %3394 = vmatprep.mubr.bf16.mxu0 0
    %3395 = vmatmul.mubr.bf16.gmra.mrb[0].mxu0 %v3041
    %v3396 = vpop.f32.mrb[0].mxu0
    %v3397 = vadd.f32 %v3095, %v3396
    %v3398 = vpop.f32.mrb[0].mxu0
    %v3399 = vadd.f32 %v3099, %v3398
    %v3400 = vpop.f32.mrb[0].mxu0
    %v3401 = vpop.f32.mrb[0].mxu0
    %3402 = vdwg.mxu0
    %3403 = vmatprep.subr.bf16.mxu0 %v3269
    %3404 = vmatpush1.bf16.msra.mxu0 %v3268
    %3405 = vmatprep.subr.bf16.mxu0 %v3275
    %3406 = vmatpush1.bf16.msra.mxu0 %v3274
    %3407 = vmatprep.subr.bf16.mxu0 %v3281
    %3408 = vmatpush1.bf16.msra.mxu0 %v3280
    %3409 = vmatprep.subr.bf16.mxu0 %v3287
    %3410 = vmatpush1.bf16.msra.mxu0 %v3286
    %3411 = vmatprep.subr.bf16.mxu0 %v3293
    %3412 = vmatpush1.bf16.msra.mxu0 %v3292
    %3413 = vmatprep.subr.bf16.mxu0 %v3299
    %3414 = vmatpush1.bf16.msra.mxu0 %v3298
    %3415 = vmatprep.subr.bf16.mxu0 %v3305
    %3416 = vmatpush1.bf16.msra.mxu0 %v3304
    %3417 = vmatprep.subr.bf16.mxu0 %v3311
    %3418 = vmatpush1.bf16.msra.mxu0 %v3310
    %3419 = vmatprep.subr.bf16.mxu0 0
    %3420 = vmatpush1.bf16.msra.mxu0 0
    %3421 = vmatprep.subr.bf16.mxu0 0
    %3422 = vmatpush1.bf16.msra.mxu0 0
    %3423 = vmatprep.subr.bf16.mxu0 0
    %3424 = vmatpush1.bf16.msra.mxu0 0
    %3425 = vmatprep.subr.bf16.mxu0 0
    %3426 = vmatpush1.bf16.msra.mxu0 0
    %3427 = vmatprep.subr.bf16.mxu0 0
    %3428 = vmatpush1.bf16.msra.mxu0 0
    %3429 = vmatprep.subr.bf16.mxu0 0
    %3430 = vmatpush1.bf16.msra.mxu0 0
    %3431 = vmatprep.subr.bf16.mxu0 0
    %3432 = vmatpush1.bf16.msra.mxu0 0
    %3433 = vmatprep.subr.bf16.mxu0 0
    %3434 = vmatpush1.bf16.msra.mxu0 0
    %3435 = vmatprep.mubr.bf16.mxu0 0
    %3436 = vmatmul.mubr.bf16.gmra.mrb[0].mxu0 %v3041
    %v3437 = vpop.f32.mrb[0].mxu0
    %v3438 = vadd.f32 %v3103, %v3437
    %v3439 = vpop.f32.mrb[0].mxu0
    %v3440 = vadd.f32 %v3107, %v3439
    %v3441 = vpop.f32.mrb[0].mxu0
    %v3442 = vpop.f32.mrb[0].mxu0
    %3443 = vdwg.mxu0
    %3444 = vmatprep.subr.bf16.mxu0 %v3271
    %3445 = vmatpush1.bf16.msra.mxu0 %v3270
    %3446 = vmatprep.subr.bf16.mxu0 %v3277
    %3447 = vmatpush1.bf16.msra.mxu0 %v3276
    %3448 = vmatprep.subr.bf16.mxu0 %v3283
    %3449 = vmatpush1.bf16.msra.mxu0 %v3282
    %3450 = vmatprep.subr.bf16.mxu0 %v3289
    %3451 = vmatpush1.bf16.msra.mxu0 %v3288
    %3452 = vmatprep.subr.bf16.mxu0 %v3295
    %3453 = vmatpush1.bf16.msra.mxu0 %v3294
    %3454 = vmatprep.subr.bf16.mxu0 %v3301
    %3455 = vmatpush1.bf16.msra.mxu0 %v3300
    %3456 = vmatprep.subr.bf16.mxu0 %v3307
    %3457 = vmatpush1.bf16.msra.mxu0 %v3306
    %3458 = vmatprep.subr.bf16.mxu0 %v3313
    %3459 = vmatpush1.bf16.msra.mxu0 %v3312
    %3460 = vmatprep.subr.bf16.mxu0 0
    %3461 = vmatpush1.bf16.msra.mxu0 0
    %3462 = vmatprep.subr.bf16.mxu0 0
    %3463 = vmatpush1.bf16.msra.mxu0 0
    %3464 = vmatprep.subr.bf16.mxu0 0
    %3465 = vmatpush1.bf16.msra.mxu0 0
    %3466 = vmatprep.subr.bf16.mxu0 0
    %3467 = vmatpush1.bf16.msra.mxu0 0
    %3468 = vmatprep.subr.bf16.mxu0 0
    %3469 = vmatpush1.bf16.msra.mxu0 0
    %3470 = vmatprep.subr.bf16.mxu0 0
    %3471 = vmatpush1.bf16.msra.mxu0 0
    %3472 = vmatprep.subr.bf16.mxu0 0
    %3473 = vmatpush1.bf16.msra.mxu0 0
    %3474 = vmatprep.subr.bf16.mxu0 0
    %3475 = vmatpush1.bf16.msra.mxu0 0
    %3476 = vmatprep.mubr.bf16.mxu0 0
    %3477 = vmatmul.mubr.bf16.gmra.mrb[0].mxu0 %v3041
    %v3478 = vpop.f32.mrb[0].mxu0
    %v3479 = vadd.f32 %v3111, %v3478
    %v3480 = vpop.f32.mrb[0].mxu0
    %v3481 = vadd.f32 %v3115, %v3480
    %v3482 = vpop.f32.mrb[0].mxu0
    %v3483 = vpop.f32.mrb[0].mxu0
    %3484 = vdwg.mxu0
    %v3485 = vmax.f32 %v3397, 0.0
    %v3486 = vmax.f32 %v3399, 0.0
    %v3487 = vmax.f32 %v3438, 0.0
    %v3488 = vmax.f32 %v3440, 0.0
    %v3489 = vmax.f32 %v3479, 0.0
    %v3490 = vmax.f32 %v3481, 0.0
    %v3491 = vpack.c.bf16 %v3485, %v3485
    %v3492 = vpack.c.bf16 %v3486, %v3486
    %v3493 = vpack.c.bf16 %v3487, %v3487
    %v3494 = vpack.c.bf16 %v3488, %v3488
    %v3495 = vpack.c.bf16 %v3489, %v3489
    %v3496 = vpack.c.bf16 %v3490, %v3490
    %v3497 = vld [vmem:[#allocation14] sm:$0xff]
    %v3498 = vld [vmem:[#allocation14 + $0x8] sm:$0xff]
    %v3499 = vld [vmem:[#allocation14 + $0x10] sm:$0xff]
    %v3500 = vld [vmem:[#allocation14 + $0x18] sm:$0xff]
    %v3501 = vld [vmem:[#allocation14 + $0x20] sm:$0xff]
    %v3502 = vld [vmem:[#allocation14 + $0x28] sm:$0xff]
    %v3503 = vld [vmem:[#allocation14 + $0x30] sm:$0xff]
    %v3504 = vld [vmem:[#allocation14 + $0x38] sm:$0xff]
    %v3505 = vld [vmem:[#allocation14 + $0x40] sm:$0xff]
    %v3506 = vld [vmem:[#allocation14 + $0x48] sm:$0xff]
    %v3507 = vld [vmem:[#allocation14 + $0x50] sm:$0xff]
    %v3508 = vld [vmem:[#allocation14 + $0x58] sm:$0xff]
    %v3509 = vld [vmem:[#allocation14 + $0x60] sm:$0xff]
    %v3510 = vld [vmem:[#allocation14 + $0x68] sm:$0xff]
    %v3511 = vld [vmem:[#allocation14 + $0x70] sm:$0xff]
    %v3512 = vld [vmem:[#allocation14 + $0x78] sm:$0xff]
    %v3513 = vld [vmem:[#allocation14 + $0x80] sm:$0xff]
    %v3514 = vld [vmem:[#allocation14 + $0x88] sm:$0xff]
    %v3515 = vld [vmem:[#allocation14 + $0x90] sm:$0xff]
    %v3516 = vld [vmem:[#allocation14 + $0x98] sm:$0xff]
    %v3517 = vld [vmem:[#allocation14 + $0xa0] sm:$0xff]
    %v3518 = vld [vmem:[#allocation14 + $0xa8] sm:$0xff]
    %v3519 = vld [vmem:[#allocation14 + $0xb0] sm:$0xff]
    %v3520 = vld [vmem:[#allocation14 + $0xb8] sm:$0xff]
    %v3521 = vld [vmem:[#allocation14 + $0xc0] sm:$0xff]
    %v3522 = vld [vmem:[#allocation14 + $0xc8] sm:$0xff]
    %v3523 = vld [vmem:[#allocation14 + $0xd0] sm:$0xff]
    %v3524 = vld [vmem:[#allocation14 + $0xd8] sm:$0xff]
    %v3525 = vld [vmem:[#allocation14 + $0xe0] sm:$0xff]
    %v3526 = vld [vmem:[#allocation14 + $0xe8] sm:$0xff]
    %v3527 = vld [vmem:[#allocation14 + $0xf0] sm:$0xff]
    %v3528 = vld [vmem:[#allocation14 + $0xf8] sm:$0xff]
    %v3529 = vld [vmem:[#allocation14 + $0x100] sm:$0xff]
    %v3530 = vld [vmem:[#allocation14 + $0x108] sm:$0xff]
    %v3531 = vld [vmem:[#allocation14 + $0x110] sm:$0xff]
    %v3532 = vld [vmem:[#allocation14 + $0x118] sm:$0xff]
    %v3533 = vld [vmem:[#allocation14 + $0x120] sm:$0xff]
    %v3534 = vld [vmem:[#allocation14 + $0x128] sm:$0xff]
    %v3535 = vld [vmem:[#allocation14 + $0x130] sm:$0xff]
    %v3536 = vld [vmem:[#allocation14 + $0x138] sm:$0xff]
    %v3537 = vld [vmem:[#allocation14 + $0x140] sm:$0xff]
    %v3538 = vld [vmem:[#allocation14 + $0x148] sm:$0xff]
    %v3539 = vld [vmem:[#allocation14 + $0x150] sm:$0xff]
    %v3540 = vld [vmem:[#allocation14 + $0x158] sm:$0xff]
    %v3541 = vld [vmem:[#allocation14 + $0x160] sm:$0xff]
    %v3542 = vld [vmem:[#allocation14 + $0x168] sm:$0xff]
    %v3543 = vld [vmem:[#allocation14 + $0x170] sm:$0xff]
    %v3544 = vld [vmem:[#allocation14 + $0x178] sm:$0xff]
    %v3545 = vld [vmem:[#allocation14 + $0x180] sm:$0xff]
    %v3546 = vld [vmem:[#allocation14 + $0x188] sm:$0xff]
    %v3547 = vld [vmem:[#allocation14 + $0x190] sm:$0xff]
    %v3548 = vld [vmem:[#allocation14 + $0x198] sm:$0xff]
    %v3549 = vld [vmem:[#allocation14 + $0x1a0] sm:$0xff]
    %v3550 = vld [vmem:[#allocation14 + $0x1a8] sm:$0xff]
    %v3551 = vld [vmem:[#allocation14 + $0x1b0] sm:$0xff]
    %v3552 = vld [vmem:[#allocation14 + $0x1b8] sm:$0xff]
    %v3553 = vld [vmem:[#allocation14 + $0x1c0] sm:$0xff]
    %v3554 = vld [vmem:[#allocation14 + $0x1c8] sm:$0xff]
    %v3555 = vld [vmem:[#allocation14 + $0x1d0] sm:$0xff]
    %v3556 = vld [vmem:[#allocation14 + $0x1d8] sm:$0xff]
    %v3557 = vld [vmem:[#allocation14 + $0x1e0] sm:$0xff]
    %v3558 = vld [vmem:[#allocation14 + $0x1e8] sm:$0xff]
    %v3559 = vld [vmem:[#allocation14 + $0x1f0] sm:$0xff]
    %v3560 = vld [vmem:[#allocation14 + $0x1f8] sm:$0xff]
    %v3561 = vld [vmem:[#allocation14 + $0x200] sm:$0xff]
    %v3562 = vld [vmem:[#allocation14 + $0x208] sm:$0xff]
    %v3563 = vld [vmem:[#allocation14 + $0x210] sm:$0xff]
    %v3564 = vld [vmem:[#allocation14 + $0x218] sm:$0xff]
    %v3565 = vld [vmem:[#allocation14 + $0x220] sm:$0xff]
    %v3566 = vld [vmem:[#allocation14 + $0x228] sm:$0xff]
    %v3567 = vld [vmem:[#allocation14 + $0x230] sm:$0xff]
    %v3568 = vld [vmem:[#allocation14 + $0x238] sm:$0xff]
    %v3569 = vld [vmem:[#allocation14 + $0x240] sm:$0xff]
    %v3570 = vld [vmem:[#allocation14 + $0x248] sm:$0xff]
    %v3571 = vld [vmem:[#allocation14 + $0x250] sm:$0xff]
    %v3572 = vld [vmem:[#allocation14 + $0x258] sm:$0xff]
    %v3573 = vld [vmem:[#allocation14 + $0x260] sm:$0xff]
    %v3574 = vld [vmem:[#allocation14 + $0x268] sm:$0xff]
    %v3575 = vld [vmem:[#allocation14 + $0x270] sm:$0xff]
    %v3576 = vld [vmem:[#allocation14 + $0x278] sm:$0xff]
    %v3577 = vld [vmem:[#allocation14 + $0x280] sm:$0xff]
    %v3578 = vld [vmem:[#allocation14 + $0x288] sm:$0xff]
    %v3579 = vld [vmem:[#allocation14 + $0x290] sm:$0xff]
    %v3580 = vld [vmem:[#allocation14 + $0x298] sm:$0xff]
    %v3581 = vld [vmem:[#allocation14 + $0x2a0] sm:$0xff]
    %v3582 = vld [vmem:[#allocation14 + $0x2a8] sm:$0xff]
    %v3583 = vld [vmem:[#allocation14 + $0x2b0] sm:$0xff]
    %v3584 = vld [vmem:[#allocation14 + $0x2b8] sm:$0xff]
    %v3585 = vld [vmem:[#allocation14 + $0x2c0] sm:$0xff]
    %v3586 = vld [vmem:[#allocation14 + $0x2c8] sm:$0xff]
    %v3587 = vld [vmem:[#allocation14 + $0x2d0] sm:$0xff]
    %v3588 = vld [vmem:[#allocation14 + $0x2d8] sm:$0xff]
    %v3589 = vld [vmem:[#allocation14 + $0x2e0] sm:$0xff]
    %v3590 = vld [vmem:[#allocation14 + $0x2e8] sm:$0xff]
    %v3591 = vld [vmem:[#allocation14 + $0x2f0] sm:$0xff]
    %v3592 = vld [vmem:[#allocation14 + $0x2f8] sm:$0xff]
    %v3593 = vld [vmem:[#allocation14 + $0x300] sm:$0xff]
    %v3594 = vld [vmem:[#allocation14 + $0x308] sm:$0xff]
    %v3595 = vld [vmem:[#allocation14 + $0x310] sm:$0xff]
    %v3596 = vld [vmem:[#allocation14 + $0x318] sm:$0xff]
    %v3597 = vld [vmem:[#allocation14 + $0x320] sm:$0xff]
    %v3598 = vld [vmem:[#allocation14 + $0x328] sm:$0xff]
    %v3599 = vld [vmem:[#allocation14 + $0x330] sm:$0xff]
    %v3600 = vld [vmem:[#allocation14 + $0x338] sm:$0xff]
    %v3601 = vld [vmem:[#allocation14 + $0x340] sm:$0xff]
    %v3602 = vld [vmem:[#allocation14 + $0x348] sm:$0xff]
    %v3603 = vld [vmem:[#allocation14 + $0x350] sm:$0xff]
    %v3604 = vld [vmem:[#allocation14 + $0x358] sm:$0xff]
    %v3605 = vld [vmem:[#allocation14 + $0x360] sm:$0xff]
    %v3606 = vld [vmem:[#allocation14 + $0x368] sm:$0xff]
    %v3607 = vld [vmem:[#allocation14 + $0x370] sm:$0xff]
    %v3608 = vld [vmem:[#allocation14 + $0x378] sm:$0xff]
    %v3609 = vld [vmem:[#allocation14 + $0x380] sm:$0xff]
    %v3610 = vld [vmem:[#allocation14 + $0x388] sm:$0xff]
    %v3611 = vld [vmem:[#allocation14 + $0x390] sm:$0xff]
    %v3612 = vld [vmem:[#allocation14 + $0x398] sm:$0xff]
    %v3613 = vld [vmem:[#allocation14 + $0x3a0] sm:$0xff]
    %v3614 = vld [vmem:[#allocation14 + $0x3a8] sm:$0xff]
    %v3615 = vld [vmem:[#allocation14 + $0x3b0] sm:$0xff]
    %v3616 = vld [vmem:[#allocation14 + $0x3b8] sm:$0xff]
    %v3617 = vld [vmem:[#allocation14 + $0x3c0] sm:$0xff]
    %v3618 = vld [vmem:[#allocation14 + $0x3c8] sm:$0xff]
    %v3619 = vld [vmem:[#allocation14 + $0x3d0] sm:$0xff]
    %v3620 = vld [vmem:[#allocation14 + $0x3d8] sm:$0xff]
    %v3621 = vld [vmem:[#allocation14 + $0x3e0] sm:$0xff]
    %v3622 = vld [vmem:[#allocation14 + $0x3e8] sm:$0xff]
    %v3623 = vld [vmem:[#allocation14 + $0x3f0] sm:$0xff]
    %v3624 = vld [vmem:[#allocation14 + $0x3f8] sm:$0xff]
    %v3625 = vld [vmem:[#allocation14 + $0x400] sm:$0xff]
    %v3626 = vld [vmem:[#allocation14 + $0x408] sm:$0xff]
    %v3627 = vld [vmem:[#allocation14 + $0x410] sm:$0xff]
    %v3628 = vld [vmem:[#allocation14 + $0x418] sm:$0xff]
    %v3629 = vld [vmem:[#allocation14 + $0x420] sm:$0xff]
    %v3630 = vld [vmem:[#allocation14 + $0x428] sm:$0xff]
    %v3631 = vld [vmem:[#allocation14 + $0x430] sm:$0xff]
    %v3632 = vld [vmem:[#allocation14 + $0x438] sm:$0xff]
    %v3633 = vld [vmem:[#allocation14 + $0x440] sm:$0xff]
    %v3634 = vld [vmem:[#allocation14 + $0x448] sm:$0xff]
    %v3635 = vld [vmem:[#allocation14 + $0x450] sm:$0xff]
    %v3636 = vld [vmem:[#allocation14 + $0x458] sm:$0xff]
    %v3637 = vld [vmem:[#allocation14 + $0x460] sm:$0xff]
    %v3638 = vld [vmem:[#allocation14 + $0x468] sm:$0xff]
    %v3639 = vld [vmem:[#allocation14 + $0x470] sm:$0xff]
    %v3640 = vld [vmem:[#allocation14 + $0x478] sm:$0xff]
    %v3641 = vld [vmem:[#allocation14 + $0x480] sm:$0xff]
    %v3642 = vld [vmem:[#allocation14 + $0x488] sm:$0xff]
    %v3643 = vld [vmem:[#allocation14 + $0x490] sm:$0xff]
    %v3644 = vld [vmem:[#allocation14 + $0x498] sm:$0xff]
    %v3645 = vld [vmem:[#allocation14 + $0x4a0] sm:$0xff]
    %v3646 = vld [vmem:[#allocation14 + $0x4a8] sm:$0xff]
    %v3647 = vld [vmem:[#allocation14 + $0x4b0] sm:$0xff]
    %v3648 = vld [vmem:[#allocation14 + $0x4b8] sm:$0xff]
    %v3649 = vld [vmem:[#allocation14 + $0x4c0] sm:$0xff]
    %v3650 = vld [vmem:[#allocation14 + $0x4c8] sm:$0xff]
    %v3651 = vld [vmem:[#allocation14 + $0x4d0] sm:$0xff]
    %v3652 = vld [vmem:[#allocation14 + $0x4d8] sm:$0xff]
    %v3653 = vld [vmem:[#allocation14 + $0x4e0] sm:$0xff]
    %v3654 = vld [vmem:[#allocation14 + $0x4e8] sm:$0xff]
    %v3655 = vld [vmem:[#allocation14 + $0x4f0] sm:$0xff]
    %v3656 = vld [vmem:[#allocation14 + $0x4f8] sm:$0xff]
    %v3657 = vld [vmem:[#allocation14 + $0x500] sm:$0xff]
    %v3658 = vld [vmem:[#allocation14 + $0x508] sm:$0xff]
    %v3659 = vld [vmem:[#allocation14 + $0x510] sm:$0xff]
    %v3660 = vld [vmem:[#allocation14 + $0x518] sm:$0xff]
    %v3661 = vld [vmem:[#allocation14 + $0x520] sm:$0xff]
    %v3662 = vld [vmem:[#allocation14 + $0x528] sm:$0xff]
    %v3663 = vld [vmem:[#allocation14 + $0x530] sm:$0xff]
    %v3664 = vld [vmem:[#allocation14 + $0x538] sm:$0xff]
    %v3665 = vld [vmem:[#allocation14 + $0x540] sm:$0xff]
    %v3666 = vld [vmem:[#allocation14 + $0x548] sm:$0xff]
    %v3667 = vld [vmem:[#allocation14 + $0x550] sm:$0xff]
    %v3668 = vld [vmem:[#allocation14 + $0x558] sm:$0xff]
    %v3669 = vld [vmem:[#allocation14 + $0x560] sm:$0xff]
    %v3670 = vld [vmem:[#allocation14 + $0x568] sm:$0xff]
    %v3671 = vld [vmem:[#allocation14 + $0x570] sm:$0xff]
    %v3672 = vld [vmem:[#allocation14 + $0x578] sm:$0xff]
    %v3673 = vld [vmem:[#allocation14 + $0x580] sm:$0xff]
    %v3674 = vld [vmem:[#allocation14 + $0x588] sm:$0xff]
    %v3675 = vld [vmem:[#allocation14 + $0x590] sm:$0xff]
    %v3676 = vld [vmem:[#allocation14 + $0x598] sm:$0xff]
    %v3677 = vld [vmem:[#allocation14 + $0x5a0] sm:$0xff]
    %v3678 = vld [vmem:[#allocation14 + $0x5a8] sm:$0xff]
    %v3679 = vld [vmem:[#allocation14 + $0x5b0] sm:$0xff]
    %v3680 = vld [vmem:[#allocation14 + $0x5b8] sm:$0xff]
    %v3681 = vld [vmem:[#allocation14 + $0x5c0] sm:$0xff]
    %v3682 = vld [vmem:[#allocation14 + $0x5c8] sm:$0xff]
    %v3683 = vld [vmem:[#allocation14 + $0x5d0] sm:$0xff]
    %v3684 = vld [vmem:[#allocation14 + $0x5d8] sm:$0xff]
    %v3685 = vld [vmem:[#allocation14 + $0x5e0] sm:$0xff]
    %v3686 = vld [vmem:[#allocation14 + $0x5e8] sm:$0xff]
    %v3687 = vld [vmem:[#allocation14 + $0x5f0] sm:$0xff]
    %v3688 = vld [vmem:[#allocation14 + $0x5f8] sm:$0xff]
    %v3689 = vld [vmem:[%s13] sm:$0xf]
    %v3691 = vlaneseq
    %v3692 = vshrl.u32 %v3691, 7
    %v3693 = vsub.s32 0, %v3692
    %v3694 = vrot.slane %v3689, %v3693
    %v3695 = vlaneseq
    %v3696 = vshrl.u32 %v3695, 7
    %v3697 = vsub.s32 1, %v3696
    %v3698 = vrot.slane %v3689, %v3697
    %v3699 = vlaneseq
    %v3700 = vshrl.u32 %v3699, 7
    %v3701 = vsub.s32 2, %v3700
    %v3702 = vrot.slane %v3689, %v3701
    %v3703 = vlaneseq
    %v3704 = vshrl.u32 %v3703, 7
    %v3705 = vsub.s32 3, %v3704
    %v3706 = vrot.slane %v3689, %v3705
    %v3903 = vunpack.c.l.b16 %v3497
    %v3904 = vunpack.c.h.b16 %v3497
    %v3905 = vunpack.c.l.b16 %v3498
    %v3906 = vunpack.c.h.b16 %v3498
    %v3907 = vunpack.c.l.b16 %v3499
    %v3908 = vunpack.c.h.b16 %v3499
    %v3909 = vunpack.c.l.b16 %v3500
    %v3910 = vunpack.c.h.b16 %v3500
    %v3911 = vunpack.c.l.b16 %v3501
    %v3912 = vunpack.c.h.b16 %v3501
    %v3913 = vunpack.c.l.b16 %v3502
    %v3914 = vunpack.c.h.b16 %v3502
    %v3915 = vunpack.c.l.b16 %v3503
    %v3916 = vunpack.c.h.b16 %v3503
    %v3917 = vunpack.c.l.b16 %v3504
    %v3918 = vunpack.c.h.b16 %v3504
    %v3919 = vunpack.c.l.b16 %v3505
    %v3920 = vunpack.c.h.b16 %v3505
    %v3921 = vunpack.c.l.b16 %v3506
    %v3922 = vunpack.c.h.b16 %v3506
    %v3923 = vunpack.c.l.b16 %v3507
    %v3924 = vunpack.c.h.b16 %v3507
    %v3925 = vunpack.c.l.b16 %v3508
    %v3926 = vunpack.c.h.b16 %v3508
    %v3927 = vunpack.c.l.b16 %v3509
    %v3928 = vunpack.c.h.b16 %v3509
    %v3929 = vunpack.c.l.b16 %v3510
    %v3930 = vunpack.c.h.b16 %v3510
    %v3931 = vunpack.c.l.b16 %v3511
    %v3932 = vunpack.c.h.b16 %v3511
    %v3933 = vunpack.c.l.b16 %v3512
    %v3934 = vunpack.c.h.b16 %v3512
    %v3935 = vunpack.c.l.b16 %v3513
    %v3936 = vunpack.c.h.b16 %v3513
    %v3937 = vunpack.c.l.b16 %v3514
    %v3938 = vunpack.c.h.b16 %v3514
    %v3939 = vunpack.c.l.b16 %v3515
    %v3940 = vunpack.c.h.b16 %v3515
    %v3941 = vunpack.c.l.b16 %v3516
    %v3942 = vunpack.c.h.b16 %v3516
    %v3943 = vunpack.c.l.b16 %v3517
    %v3944 = vunpack.c.h.b16 %v3517
    %v3945 = vunpack.c.l.b16 %v3518
    %v3946 = vunpack.c.h.b16 %v3518
    %v3947 = vunpack.c.l.b16 %v3519
    %v3948 = vunpack.c.h.b16 %v3519
    %v3949 = vunpack.c.l.b16 %v3520
    %v3950 = vunpack.c.h.b16 %v3520
    %v3951 = vunpack.c.l.b16 %v3521
    %v3952 = vunpack.c.h.b16 %v3521
    %v3953 = vunpack.c.l.b16 %v3522
    %v3954 = vunpack.c.h.b16 %v3522
    %v3955 = vunpack.c.l.b16 %v3523
    %v3956 = vunpack.c.h.b16 %v3523
    %v3957 = vunpack.c.l.b16 %v3524
    %v3958 = vunpack.c.h.b16 %v3524
    %v3959 = vunpack.c.l.b16 %v3525
    %v3960 = vunpack.c.h.b16 %v3525
    %v3961 = vunpack.c.l.b16 %v3526
    %v3962 = vunpack.c.h.b16 %v3526
    %v3963 = vunpack.c.l.b16 %v3527
    %v3964 = vunpack.c.h.b16 %v3527
    %v3965 = vunpack.c.l.b16 %v3528
    %v3966 = vunpack.c.h.b16 %v3528
    %v3967 = vunpack.c.l.b16 %v3529
    %v3968 = vunpack.c.h.b16 %v3529
    %v3969 = vunpack.c.l.b16 %v3530
    %v3970 = vunpack.c.h.b16 %v3530
    %v3971 = vunpack.c.l.b16 %v3531
    %v3972 = vunpack.c.h.b16 %v3531
    %v3973 = vunpack.c.l.b16 %v3532
    %v3974 = vunpack.c.h.b16 %v3532
    %v3975 = vunpack.c.l.b16 %v3533
    %v3976 = vunpack.c.h.b16 %v3533
    %v3977 = vunpack.c.l.b16 %v3534
    %v3978 = vunpack.c.h.b16 %v3534
    %v3979 = vunpack.c.l.b16 %v3535
    %v3980 = vunpack.c.h.b16 %v3535
    %v3981 = vunpack.c.l.b16 %v3536
    %v3982 = vunpack.c.h.b16 %v3536
    %v3983 = vunpack.c.l.b16 %v3537
    %v3984 = vunpack.c.h.b16 %v3537
    %v3985 = vunpack.c.l.b16 %v3538
    %v3986 = vunpack.c.h.b16 %v3538
    %v3987 = vunpack.c.l.b16 %v3539
    %v3988 = vunpack.c.h.b16 %v3539
    %v3989 = vunpack.c.l.b16 %v3540
    %v3990 = vunpack.c.h.b16 %v3540
    %v3991 = vunpack.c.l.b16 %v3541
    %v3992 = vunpack.c.h.b16 %v3541
    %v3993 = vunpack.c.l.b16 %v3542
    %v3994 = vunpack.c.h.b16 %v3542
    %v3995 = vunpack.c.l.b16 %v3543
    %v3996 = vunpack.c.h.b16 %v3543
    %v3997 = vunpack.c.l.b16 %v3544
    %v3998 = vunpack.c.h.b16 %v3544
    %v3999 = vunpack.c.l.b16 %v3545
    %v4000 = vunpack.c.h.b16 %v3545
    %v4001 = vunpack.c.l.b16 %v3546
    %v4002 = vunpack.c.h.b16 %v3546
    %v4003 = vunpack.c.l.b16 %v3547
    %v4004 = vunpack.c.h.b16 %v3547
    %v4005 = vunpack.c.l.b16 %v3548
    %v4006 = vunpack.c.h.b16 %v3548
    %v4007 = vunpack.c.l.b16 %v3549
    %v4008 = vunpack.c.h.b16 %v3549
    %v4009 = vunpack.c.l.b16 %v3550
    %v4010 = vunpack.c.h.b16 %v3550
    %v4011 = vunpack.c.l.b16 %v3551
    %v4012 = vunpack.c.h.b16 %v3551
    %v4013 = vunpack.c.l.b16 %v3552
    %v4014 = vunpack.c.h.b16 %v3552
    %v4015 = vunpack.c.l.b16 %v3553
    %v4016 = vunpack.c.h.b16 %v3553
    %v4017 = vunpack.c.l.b16 %v3554
    %v4018 = vunpack.c.h.b16 %v3554
    %v4019 = vunpack.c.l.b16 %v3555
    %v4020 = vunpack.c.h.b16 %v3555
    %v4021 = vunpack.c.l.b16 %v3556
    %v4022 = vunpack.c.h.b16 %v3556
    %v4023 = vunpack.c.l.b16 %v3557
    %v4024 = vunpack.c.h.b16 %v3557
    %v4025 = vunpack.c.l.b16 %v3558
    %v4026 = vunpack.c.h.b16 %v3558
    %v4027 = vunpack.c.l.b16 %v3559
    %v4028 = vunpack.c.h.b16 %v3559
    %v4029 = vunpack.c.l.b16 %v3560
    %v4030 = vunpack.c.h.b16 %v3560
    %v4031 = vunpack.c.l.b16 %v3561
    %v4032 = vunpack.c.h.b16 %v3561
    %v4033 = vunpack.c.l.b16 %v3562
    %v4034 = vunpack.c.h.b16 %v3562
    %v4035 = vunpack.c.l.b16 %v3563
    %v4036 = vunpack.c.h.b16 %v3563
    %v4037 = vunpack.c.l.b16 %v3564
    %v4038 = vunpack.c.h.b16 %v3564
    %v4039 = vunpack.c.l.b16 %v3565
    %v4040 = vunpack.c.h.b16 %v3565
    %v4041 = vunpack.c.l.b16 %v3566
    %v4042 = vunpack.c.h.b16 %v3566
    %v4043 = vunpack.c.l.b16 %v3567
    %v4044 = vunpack.c.h.b16 %v3567
    %v4045 = vunpack.c.l.b16 %v3568
    %v4046 = vunpack.c.h.b16 %v3568
    %v4047 = vunpack.c.l.b16 %v3569
    %v4048 = vunpack.c.h.b16 %v3569
    %v4049 = vunpack.c.l.b16 %v3570
    %v4050 = vunpack.c.h.b16 %v3570
    %v4051 = vunpack.c.l.b16 %v3571
    %v4052 = vunpack.c.h.b16 %v3571
    %v4053 = vunpack.c.l.b16 %v3572
    %v4054 = vunpack.c.h.b16 %v3572
    %v4055 = vunpack.c.l.b16 %v3573
    %v4056 = vunpack.c.h.b16 %v3573
    %v4057 = vunpack.c.l.b16 %v3574
    %v4058 = vunpack.c.h.b16 %v3574
    %v4059 = vunpack.c.l.b16 %v3575
    %v4060 = vunpack.c.h.b16 %v3575
    %v4061 = vunpack.c.l.b16 %v3576
    %v4062 = vunpack.c.h.b16 %v3576
    %v4063 = vunpack.c.l.b16 %v3577
    %v4064 = vunpack.c.h.b16 %v3577
    %v4065 = vunpack.c.l.b16 %v3578
    %v4066 = vunpack.c.h.b16 %v3578
    %v4067 = vunpack.c.l.b16 %v3579
    %v4068 = vunpack.c.h.b16 %v3579
    %v4069 = vunpack.c.l.b16 %v3580
    %v4070 = vunpack.c.h.b16 %v3580
    %v4071 = vunpack.c.l.b16 %v3581
    %v4072 = vunpack.c.h.b16 %v3581
    %v4073 = vunpack.c.l.b16 %v3582
    %v4074 = vunpack.c.h.b16 %v3582
    %v4075 = vunpack.c.l.b16 %v3583
    %v4076 = vunpack.c.h.b16 %v3583
    %v4077 = vunpack.c.l.b16 %v3584
    %v4078 = vunpack.c.h.b16 %v3584
    %v4079 = vunpack.c.l.b16 %v3585
    %v4080 = vunpack.c.h.b16 %v3585
    %v4081 = vunpack.c.l.b16 %v3586
    %v4082 = vunpack.c.h.b16 %v3586
    %v4083 = vunpack.c.l.b16 %v3587
    %v4084 = vunpack.c.h.b16 %v3587
    %v4085 = vunpack.c.l.b16 %v3588
    %v4086 = vunpack.c.h.b16 %v3588
    %v4087 = vunpack.c.l.b16 %v3589
    %v4088 = vunpack.c.h.b16 %v3589
    %v4089 = vunpack.c.l.b16 %v3590
    %v4090 = vunpack.c.h.b16 %v3590
    %v4091 = vunpack.c.l.b16 %v3591
    %v4092 = vunpack.c.h.b16 %v3591
    %v4093 = vunpack.c.l.b16 %v3592
    %v4094 = vunpack.c.h.b16 %v3592
    %v4095 = vunpack.c.l.b16 %v3593
    %v4096 = vunpack.c.h.b16 %v3593
    %v4097 = vunpack.c.l.b16 %v3594
    %v4098 = vunpack.c.h.b16 %v3594
    %v4099 = vunpack.c.l.b16 %v3595
    %v4100 = vunpack.c.h.b16 %v3595
    %v4101 = vunpack.c.l.b16 %v3596
    %v4102 = vunpack.c.h.b16 %v3596
    %v4103 = vunpack.c.l.b16 %v3597
    %v4104 = vunpack.c.h.b16 %v3597
    %v4105 = vunpack.c.l.b16 %v3598
    %v4106 = vunpack.c.h.b16 %v3598
    %v4107 = vunpack.c.l.b16 %v3599
    %v4108 = vunpack.c.h.b16 %v3599
    %v4109 = vunpack.c.l.b16 %v3600
    %v4110 = vunpack.c.h.b16 %v3600
    %v4111 = vunpack.c.l.b16 %v3601
    %v4112 = vunpack.c.h.b16 %v3601
    %v4113 = vunpack.c.l.b16 %v3602
    %v4114 = vunpack.c.h.b16 %v3602
    %v4115 = vunpack.c.l.b16 %v3603
    %v4116 = vunpack.c.h.b16 %v3603
    %v4117 = vunpack.c.l.b16 %v3604
    %v4118 = vunpack.c.h.b16 %v3604
    %v4119 = vunpack.c.l.b16 %v3605
    %v4120 = vunpack.c.h.b16 %v3605
    %v4121 = vunpack.c.l.b16 %v3606
    %v4122 = vunpack.c.h.b16 %v3606
    %v4123 = vunpack.c.l.b16 %v3607
    %v4124 = vunpack.c.h.b16 %v3607
    %v4125 = vunpack.c.l.b16 %v3608
    %v4126 = vunpack.c.h.b16 %v3608
    %v4127 = vunpack.c.l.b16 %v3609
    %v4128 = vunpack.c.h.b16 %v3609
    %v4129 = vunpack.c.l.b16 %v3610
    %v4130 = vunpack.c.h.b16 %v3610
    %v4131 = vunpack.c.l.b16 %v3611
    %v4132 = vunpack.c.h.b16 %v3611
    %v4133 = vunpack.c.l.b16 %v3612
    %v4134 = vunpack.c.h.b16 %v3612
    %v4135 = vunpack.c.l.b16 %v3613
    %v4136 = vunpack.c.h.b16 %v3613
    %v4137 = vunpack.c.l.b16 %v3614
    %v4138 = vunpack.c.h.b16 %v3614
    %v4139 = vunpack.c.l.b16 %v3615
    %v4140 = vunpack.c.h.b16 %v3615
    %v4141 = vunpack.c.l.b16 %v3616
    %v4142 = vunpack.c.h.b16 %v3616
    %v4143 = vunpack.c.l.b16 %v3617
    %v4144 = vunpack.c.h.b16 %v3617
    %v4145 = vunpack.c.l.b16 %v3618
    %v4146 = vunpack.c.h.b16 %v3618
    %v4147 = vunpack.c.l.b16 %v3619
    %v4148 = vunpack.c.h.b16 %v3619
    %v4149 = vunpack.c.l.b16 %v3620
    %v4150 = vunpack.c.h.b16 %v3620
    %v4151 = vunpack.c.l.b16 %v3621
    %v4152 = vunpack.c.h.b16 %v3621
    %v4153 = vunpack.c.l.b16 %v3622
    %v4154 = vunpack.c.h.b16 %v3622
    %v4155 = vunpack.c.l.b16 %v3623
    %v4156 = vunpack.c.h.b16 %v3623
    %v4157 = vunpack.c.l.b16 %v3624
    %v4158 = vunpack.c.h.b16 %v3624
    %v4159 = vunpack.c.l.b16 %v3625
    %v4160 = vunpack.c.h.b16 %v3625
    %v4161 = vunpack.c.l.b16 %v3626
    %v4162 = vunpack.c.h.b16 %v3626
    %v4163 = vunpack.c.l.b16 %v3627
    %v4164 = vunpack.c.h.b16 %v3627
    %v4165 = vunpack.c.l.b16 %v3628
    %v4166 = vunpack.c.h.b16 %v3628
    %v4167 = vunpack.c.l.b16 %v3629
    %v4168 = vunpack.c.h.b16 %v3629
    %v4169 = vunpack.c.l.b16 %v3630
    %v4170 = vunpack.c.h.b16 %v3630
    %v4171 = vunpack.c.l.b16 %v3631
    %v4172 = vunpack.c.h.b16 %v3631
    %v4173 = vunpack.c.l.b16 %v3632
    %v4174 = vunpack.c.h.b16 %v3632
    %v4175 = vunpack.c.l.b16 %v3633
    %v4176 = vunpack.c.h.b16 %v3633
    %v4177 = vunpack.c.l.b16 %v3634
    %v4178 = vunpack.c.h.b16 %v3634
    %v4179 = vunpack.c.l.b16 %v3635
    %v4180 = vunpack.c.h.b16 %v3635
    %v4181 = vunpack.c.l.b16 %v3636
    %v4182 = vunpack.c.h.b16 %v3636
    %v4183 = vunpack.c.l.b16 %v3637
    %v4184 = vunpack.c.h.b16 %v3637
    %v4185 = vunpack.c.l.b16 %v3638
    %v4186 = vunpack.c.h.b16 %v3638
    %v4187 = vunpack.c.l.b16 %v3639
    %v4188 = vunpack.c.h.b16 %v3639
    %v4189 = vunpack.c.l.b16 %v3640
    %v4190 = vunpack.c.h.b16 %v3640
    %v4191 = vunpack.c.l.b16 %v3641
    %v4192 = vunpack.c.h.b16 %v3641
    %v4193 = vunpack.c.l.b16 %v3642
    %v4194 = vunpack.c.h.b16 %v3642
    %v4195 = vunpack.c.l.b16 %v3643
    %v4196 = vunpack.c.h.b16 %v3643
    %v4197 = vunpack.c.l.b16 %v3644
    %v4198 = vunpack.c.h.b16 %v3644
    %v4199 = vunpack.c.l.b16 %v3645
    %v4200 = vunpack.c.h.b16 %v3645
    %v4201 = vunpack.c.l.b16 %v3646
    %v4202 = vunpack.c.h.b16 %v3646
    %v4203 = vunpack.c.l.b16 %v3647
    %v4204 = vunpack.c.h.b16 %v3647
    %v4205 = vunpack.c.l.b16 %v3648
    %v4206 = vunpack.c.h.b16 %v3648
    %v4207 = vunpack.c.l.b16 %v3649
    %v4208 = vunpack.c.h.b16 %v3649
    %v4209 = vunpack.c.l.b16 %v3650
    %v4210 = vunpack.c.h.b16 %v3650
    %v4211 = vunpack.c.l.b16 %v3651
    %v4212 = vunpack.c.h.b16 %v3651
    %v4213 = vunpack.c.l.b16 %v3652
    %v4214 = vunpack.c.h.b16 %v3652
    %v4215 = vunpack.c.l.b16 %v3653
    %v4216 = vunpack.c.h.b16 %v3653
    %v4217 = vunpack.c.l.b16 %v3654
    %v4218 = vunpack.c.h.b16 %v3654
    %v4219 = vunpack.c.l.b16 %v3655
    %v4220 = vunpack.c.h.b16 %v3655
    %v4221 = vunpack.c.l.b16 %v3656
    %v4222 = vunpack.c.h.b16 %v3656
    %v4223 = vunpack.c.l.b16 %v3657
    %v4224 = vunpack.c.h.b16 %v3657
    %v4225 = vunpack.c.l.b16 %v3658
    %v4226 = vunpack.c.h.b16 %v3658
    %v4227 = vunpack.c.l.b16 %v3659
    %v4228 = vunpack.c.h.b16 %v3659
    %v4229 = vunpack.c.l.b16 %v3660
    %v4230 = vunpack.c.h.b16 %v3660
    %v4231 = vunpack.c.l.b16 %v3661
    %v4232 = vunpack.c.h.b16 %v3661
    %v4233 = vunpack.c.l.b16 %v3662
    %v4234 = vunpack.c.h.b16 %v3662
    %v4235 = vunpack.c.l.b16 %v3663
    %v4236 = vunpack.c.h.b16 %v3663
    %v4237 = vunpack.c.l.b16 %v3664
    %v4238 = vunpack.c.h.b16 %v3664
    %v4239 = vunpack.c.l.b16 %v3665
    %v4240 = vunpack.c.h.b16 %v3665
    %v4241 = vunpack.c.l.b16 %v3666
    %v4242 = vunpack.c.h.b16 %v3666
    %v4243 = vunpack.c.l.b16 %v3667
    %v4244 = vunpack.c.h.b16 %v3667
    %v4245 = vunpack.c.l.b16 %v3668
    %v4246 = vunpack.c.h.b16 %v3668
    %v4247 = vunpack.c.l.b16 %v3669
    %v4248 = vunpack.c.h.b16 %v3669
    %v4249 = vunpack.c.l.b16 %v3670
    %v4250 = vunpack.c.h.b16 %v3670
    %v4251 = vunpack.c.l.b16 %v3671
    %v4252 = vunpack.c.h.b16 %v3671
    %v4253 = vunpack.c.l.b16 %v3672
    %v4254 = vunpack.c.h.b16 %v3672
    %v4255 = vunpack.c.l.b16 %v3673
    %v4256 = vunpack.c.h.b16 %v3673
    %v4257 = vunpack.c.l.b16 %v3674
    %v4258 = vunpack.c.h.b16 %v3674
    %v4259 = vunpack.c.l.b16 %v3675
    %v4260 = vunpack.c.h.b16 %v3675
    %v4261 = vunpack.c.l.b16 %v3676
    %v4262 = vunpack.c.h.b16 %v3676
    %v4263 = vunpack.c.l.b16 %v3677
    %v4264 = vunpack.c.h.b16 %v3677
    %v4265 = vunpack.c.l.b16 %v3678
    %v4266 = vunpack.c.h.b16 %v3678
    %v4267 = vunpack.c.l.b16 %v3679
    %v4268 = vunpack.c.h.b16 %v3679
    %v4269 = vunpack.c.l.b16 %v3680
    %v4270 = vunpack.c.h.b16 %v3680
    %v4271 = vunpack.c.l.b16 %v3681
    %v4272 = vunpack.c.h.b16 %v3681
    %v4273 = vunpack.c.l.b16 %v3682
    %v4274 = vunpack.c.h.b16 %v3682
    %v4275 = vunpack.c.l.b16 %v3683
    %v4276 = vunpack.c.h.b16 %v3683
    %v4277 = vunpack.c.l.b16 %v3684
    %v4278 = vunpack.c.h.b16 %v3684
    %v4279 = vunpack.c.l.b16 %v3685
    %v4280 = vunpack.c.h.b16 %v3685
    %v4281 = vunpack.c.l.b16 %v3686
    %v4282 = vunpack.c.h.b16 %v3686
    %v4283 = vunpack.c.l.b16 %v3687
    %v4284 = vunpack.c.h.b16 %v3687
    %v4285 = vunpack.c.l.b16 %v3688
    %v4286 = vunpack.c.h.b16 %v3688
    %v4287 = vpack.c.b16 %v3907, %v3903
    %v4288 = vpack.c.b16 %v3908, %v3904
    %v4289 = vpack.c.b16 %v3909, %v3905
    %v4290 = vpack.c.b16 %v3910, %v3906
    %v4291 = vpack.c.b16 %v3915, %v3911
    %v4292 = vpack.c.b16 %v3916, %v3912
    %v4293 = vpack.c.b16 %v3917, %v3913
    %v4294 = vpack.c.b16 %v3918, %v3914
    %v4295 = vpack.c.b16 %v3923, %v3919
    %v4296 = vpack.c.b16 %v3924, %v3920
    %v4297 = vpack.c.b16 %v3925, %v3921
    %v4298 = vpack.c.b16 %v3926, %v3922
    %v4299 = vpack.c.b16 %v3931, %v3927
    %v4300 = vpack.c.b16 %v3932, %v3928
    %v4301 = vpack.c.b16 %v3933, %v3929
    %v4302 = vpack.c.b16 %v3934, %v3930
    %v4303 = vpack.c.b16 %v3939, %v3935
    %v4304 = vpack.c.b16 %v3940, %v3936
    %v4305 = vpack.c.b16 %v3941, %v3937
    %v4306 = vpack.c.b16 %v3942, %v3938
    %v4307 = vpack.c.b16 %v3947, %v3943
    %v4308 = vpack.c.b16 %v3948, %v3944
    %v4309 = vpack.c.b16 %v3949, %v3945
    %v4310 = vpack.c.b16 %v3950, %v3946
    %v4311 = vpack.c.b16 %v3955, %v3951
    %v4312 = vpack.c.b16 %v3956, %v3952
    %v4313 = vpack.c.b16 %v3957, %v3953
    %v4314 = vpack.c.b16 %v3958, %v3954
    %v4315 = vpack.c.b16 %v3963, %v3959
    %v4316 = vpack.c.b16 %v3964, %v3960
    %v4317 = vpack.c.b16 %v3965, %v3961
    %v4318 = vpack.c.b16 %v3966, %v3962
    %v4319 = vpack.c.b16 %v3971, %v3967
    %v4320 = vpack.c.b16 %v3972, %v3968
    %v4321 = vpack.c.b16 %v3973, %v3969
    %v4322 = vpack.c.b16 %v3974, %v3970
    %v4323 = vpack.c.b16 %v3979, %v3975
    %v4324 = vpack.c.b16 %v3980, %v3976
    %v4325 = vpack.c.b16 %v3981, %v3977
    %v4326 = vpack.c.b16 %v3982, %v3978
    %v4327 = vpack.c.b16 %v3987, %v3983
    %v4328 = vpack.c.b16 %v3988, %v3984
    %v4329 = vpack.c.b16 %v3989, %v3985
    %v4330 = vpack.c.b16 %v3990, %v3986
    %v4331 = vpack.c.b16 %v3995, %v3991
    %v4332 = vpack.c.b16 %v3996, %v3992
    %v4333 = vpack.c.b16 %v3997, %v3993
    %v4334 = vpack.c.b16 %v3998, %v3994
    %v4335 = vpack.c.b16 %v4003, %v3999
    %v4336 = vpack.c.b16 %v4004, %v4000
    %v4337 = vpack.c.b16 %v4005, %v4001
    %v4338 = vpack.c.b16 %v4006, %v4002
    %v4339 = vpack.c.b16 %v4011, %v4007
    %v4340 = vpack.c.b16 %v4012, %v4008
    %v4341 = vpack.c.b16 %v4013, %v4009
    %v4342 = vpack.c.b16 %v4014, %v4010
    %v4343 = vpack.c.b16 %v4019, %v4015
    %v4344 = vpack.c.b16 %v4020, %v4016
    %v4345 = vpack.c.b16 %v4021, %v4017
    %v4346 = vpack.c.b16 %v4022, %v4018
    %v4347 = vpack.c.b16 %v4027, %v4023
    %v4348 = vpack.c.b16 %v4028, %v4024
    %v4349 = vpack.c.b16 %v4029, %v4025
    %v4350 = vpack.c.b16 %v4030, %v4026
    %v4351 = vpack.c.b16 %v4035, %v4031
    %v4352 = vpack.c.b16 %v4036, %v4032
    %v4353 = vpack.c.b16 %v4037, %v4033
    %v4354 = vpack.c.b16 %v4038, %v4034
    %v4355 = vpack.c.b16 %v4043, %v4039
    %v4356 = vpack.c.b16 %v4044, %v4040
    %v4357 = vpack.c.b16 %v4045, %v4041
    %v4358 = vpack.c.b16 %v4046, %v4042
    %v4359 = vpack.c.b16 %v4051, %v4047
    %v4360 = vpack.c.b16 %v4052, %v4048
    %v4361 = vpack.c.b16 %v4053, %v4049
    %v4362 = vpack.c.b16 %v4054, %v4050
    %v4363 = vpack.c.b16 %v4059, %v4055
    %v4364 = vpack.c.b16 %v4060, %v4056
    %v4365 = vpack.c.b16 %v4061, %v4057
    %v4366 = vpack.c.b16 %v4062, %v4058
    %v4367 = vpack.c.b16 %v4067, %v4063
    %v4368 = vpack.c.b16 %v4068, %v4064
    %v4369 = vpack.c.b16 %v4069, %v4065
    %v4370 = vpack.c.b16 %v4070, %v4066
    %v4371 = vpack.c.b16 %v4075, %v4071
    %v4372 = vpack.c.b16 %v4076, %v4072
    %v4373 = vpack.c.b16 %v4077, %v4073
    %v4374 = vpack.c.b16 %v4078, %v4074
    %v4375 = vpack.c.b16 %v4083, %v4079
    %v4376 = vpack.c.b16 %v4084, %v4080
    %v4377 = vpack.c.b16 %v4085, %v4081
    %v4378 = vpack.c.b16 %v4086, %v4082
    %v4379 = vpack.c.b16 %v4091, %v4087
    %v4380 = vpack.c.b16 %v4092, %v4088
    %v4381 = vpack.c.b16 %v4093, %v4089
    %v4382 = vpack.c.b16 %v4094, %v4090
    %v4383 = vpack.c.b16 %v4099, %v4095
    %v4384 = vpack.c.b16 %v4100, %v4096
    %v4385 = vpack.c.b16 %v4101, %v4097
    %v4386 = vpack.c.b16 %v4102, %v4098
    %v4387 = vpack.c.b16 %v4107, %v4103
    %v4388 = vpack.c.b16 %v4108, %v4104
    %v4389 = vpack.c.b16 %v4109, %v4105
    %v4390 = vpack.c.b16 %v4110, %v4106
    %v4391 = vpack.c.b16 %v4115, %v4111
    %v4392 = vpack.c.b16 %v4116, %v4112
    %v4393 = vpack.c.b16 %v4117, %v4113
    %v4394 = vpack.c.b16 %v4118, %v4114
    %v4395 = vpack.c.b16 %v4123, %v4119
    %v4396 = vpack.c.b16 %v4124, %v4120
    %v4397 = vpack.c.b16 %v4125, %v4121
    %v4398 = vpack.c.b16 %v4126, %v4122
    %v4399 = vpack.c.b16 %v4131, %v4127
    %v4400 = vpack.c.b16 %v4132, %v4128
    %v4401 = vpack.c.b16 %v4133, %v4129
    %v4402 = vpack.c.b16 %v4134, %v4130
    %v4403 = vpack.c.b16 %v4139, %v4135
    %v4404 = vpack.c.b16 %v4140, %v4136
    %v4405 = vpack.c.b16 %v4141, %v4137
    %v4406 = vpack.c.b16 %v4142, %v4138
    %v4407 = vpack.c.b16 %v4147, %v4143
    %v4408 = vpack.c.b16 %v4148, %v4144
    %v4409 = vpack.c.b16 %v4149, %v4145
    %v4410 = vpack.c.b16 %v4150, %v4146
    %v4411 = vpack.c.b16 %v4155, %v4151
    %v4412 = vpack.c.b16 %v4156, %v4152
    %v4413 = vpack.c.b16 %v4157, %v4153
    %v4414 = vpack.c.b16 %v4158, %v4154
    %v4415 = vpack.c.b16 %v4163, %v4159
    %v4416 = vpack.c.b16 %v4164, %v4160
    %v4417 = vpack.c.b16 %v4165, %v4161
    %v4418 = vpack.c.b16 %v4166, %v4162
    %v4419 = vpack.c.b16 %v4171, %v4167
    %v4420 = vpack.c.b16 %v4172, %v4168
    %v4421 = vpack.c.b16 %v4173, %v4169
    %v4422 = vpack.c.b16 %v4174, %v4170
    %v4423 = vpack.c.b16 %v4179, %v4175
    %v4424 = vpack.c.b16 %v4180, %v4176
    %v4425 = vpack.c.b16 %v4181, %v4177
    %v4426 = vpack.c.b16 %v4182, %v4178
    %v4427 = vpack.c.b16 %v4187, %v4183
    %v4428 = vpack.c.b16 %v4188, %v4184
    %v4429 = vpack.c.b16 %v4189, %v4185
    %v4430 = vpack.c.b16 %v4190, %v4186
    %v4431 = vpack.c.b16 %v4195, %v4191
    %v4432 = vpack.c.b16 %v4196, %v4192
    %v4433 = vpack.c.b16 %v4197, %v4193
    %v4434 = vpack.c.b16 %v4198, %v4194
    %v4435 = vpack.c.b16 %v4203, %v4199
    %v4436 = vpack.c.b16 %v4204, %v4200
    %v4437 = vpack.c.b16 %v4205, %v4201
    %v4438 = vpack.c.b16 %v4206, %v4202
    %v4439 = vpack.c.b16 %v4211, %v4207
    %v4440 = vpack.c.b16 %v4212, %v4208
    %v4441 = vpack.c.b16 %v4213, %v4209
    %v4442 = vpack.c.b16 %v4214, %v4210
    %v4443 = vpack.c.b16 %v4219, %v4215
    %v4444 = vpack.c.b16 %v4220, %v4216
    %v4445 = vpack.c.b16 %v4221, %v4217
    %v4446 = vpack.c.b16 %v4222, %v4218
    %v4447 = vpack.c.b16 %v4227, %v4223
    %v4448 = vpack.c.b16 %v4228, %v4224
    %v4449 = vpack.c.b16 %v4229, %v4225
    %v4450 = vpack.c.b16 %v4230, %v4226
    %v4451 = vpack.c.b16 %v4235, %v4231
    %v4452 = vpack.c.b16 %v4236, %v4232
    %v4453 = vpack.c.b16 %v4237, %v4233
    %v4454 = vpack.c.b16 %v4238, %v4234
    %v4455 = vpack.c.b16 %v4243, %v4239
    %v4456 = vpack.c.b16 %v4244, %v4240
    %v4457 = vpack.c.b16 %v4245, %v4241
    %v4458 = vpack.c.b16 %v4246, %v4242
    %v4459 = vpack.c.b16 %v4251, %v4247
    %v4460 = vpack.c.b16 %v4252, %v4248
    %v4461 = vpack.c.b16 %v4253, %v4249
    %v4462 = vpack.c.b16 %v4254, %v4250
    %v4463 = vpack.c.b16 %v4259, %v4255
    %v4464 = vpack.c.b16 %v4260, %v4256
    %v4465 = vpack.c.b16 %v4261, %v4257
    %v4466 = vpack.c.b16 %v4262, %v4258
    %v4467 = vpack.c.b16 %v4267, %v4263
    %v4468 = vpack.c.b16 %v4268, %v4264
    %v4469 = vpack.c.b16 %v4269, %v4265
    %v4470 = vpack.c.b16 %v4270, %v4266
    %v4471 = vpack.c.b16 %v4275, %v4271
    %v4472 = vpack.c.b16 %v4276, %v4272
    %v4473 = vpack.c.b16 %v4277, %v4273
    %v4474 = vpack.c.b16 %v4278, %v4274
    %v4475 = vpack.c.b16 %v4283, %v4279
    %v4476 = vpack.c.b16 %v4284, %v4280
    %v4477 = vpack.c.b16 %v4285, %v4281
    %v4478 = vpack.c.b16 %v4286, %v4282
    %4671 = vmatprep.subr.bf16.mxu0 %v4288
    %4672 = vmatpush1.bf16.msra.mxu0 %v4287
    %4673 = vmatprep.subr.bf16.mxu0 %v4292
    %4674 = vmatpush1.bf16.msra.mxu0 %v4291
    %4675 = vmatprep.subr.bf16.mxu0 %v4296
    %4676 = vmatpush1.bf16.msra.mxu0 %v4295
    %4677 = vmatprep.subr.bf16.mxu0 %v4300
    %4678 = vmatpush1.bf16.msra.mxu0 %v4299
    %4679 = vmatprep.subr.bf16.mxu0 %v4304
    %4680 = vmatpush1.bf16.msra.mxu0 %v4303
    %4681 = vmatprep.subr.bf16.mxu0 %v4308
    %4682 = vmatpush1.bf16.msra.mxu0 %v4307
    %4683 = vmatprep.subr.bf16.mxu0 %v4312
    %4684 = vmatpush1.bf16.msra.mxu0 %v4311
    %4685 = vmatprep.subr.bf16.mxu0 %v4316
    %4686 = vmatpush1.bf16.msra.mxu0 %v4315
    %4687 = vmatprep.subr.bf16.mxu0 %v4320
    %4688 = vmatpush1.bf16.msra.mxu0 %v4319
    %4689 = vmatprep.subr.bf16.mxu0 %v4324
    %4690 = vmatpush1.bf16.msra.mxu0 %v4323
    %4691 = vmatprep.subr.bf16.mxu0 %v4328
    %4692 = vmatpush1.bf16.msra.mxu0 %v4327
    %4693 = vmatprep.subr.bf16.mxu0 %v4332
    %4694 = vmatpush1.bf16.msra.mxu0 %v4331
    %4695 = vmatprep.subr.bf16.mxu0 %v4336
    %4696 = vmatpush1.bf16.msra.mxu0 %v4335
    %4697 = vmatprep.subr.bf16.mxu0 %v4340
    %4698 = vmatpush1.bf16.msra.mxu0 %v4339
    %4699 = vmatprep.subr.bf16.mxu0 %v4344
    %4700 = vmatpush1.bf16.msra.mxu0 %v4343
    %4701 = vmatprep.subr.bf16.mxu0 %v4348
    %4702 = vmatpush1.bf16.msra.mxu0 %v4347
    %4703 = vmatprep.mubr.bf16.mxu0 %v3492
    %4704 = vmatmul.mubr.bf16.gmra.mrb[0].mxu0 %v3491
    %v4705 = vpop.f32.mrb[0].mxu0
    %v4706 = vadd.f32 %v3694, %v4705
    %v4707 = vpop.f32.mrb[0].mxu0
    %v4708 = vadd.f32 %v3698, %v4707
    %v4709 = vpop.f32.mrb[0].mxu0
    %v4710 = vpop.f32.mrb[0].mxu0
    %4711 = vdwg.mxu0
    %4712 = vmatprep.subr.bf16.mxu0 %v4352
    %4713 = vmatpush1.bf16.msra.mxu0 %v4351
    %4714 = vmatprep.subr.bf16.mxu0 %v4356
    %4715 = vmatpush1.bf16.msra.mxu0 %v4355
    %4716 = vmatprep.subr.bf16.mxu0 %v4360
    %4717 = vmatpush1.bf16.msra.mxu0 %v4359
    %4718 = vmatprep.subr.bf16.mxu0 %v4364
    %4719 = vmatpush1.bf16.msra.mxu0 %v4363
    %4720 = vmatprep.subr.bf16.mxu0 %v4368
    %4721 = vmatpush1.bf16.msra.mxu0 %v4367
    %4722 = vmatprep.subr.bf16.mxu0 %v4372
    %4723 = vmatpush1.bf16.msra.mxu0 %v4371
    %4724 = vmatprep.subr.bf16.mxu0 %v4376
    %4725 = vmatpush1.bf16.msra.mxu0 %v4375
    %4726 = vmatprep.subr.bf16.mxu0 %v4380
    %4727 = vmatpush1.bf16.msra.mxu0 %v4379
    %4728 = vmatprep.subr.bf16.mxu0 %v4384
    %4729 = vmatpush1.bf16.msra.mxu0 %v4383
    %4730 = vmatprep.subr.bf16.mxu0 %v4388
    %4731 = vmatpush1.bf16.msra.mxu0 %v4387
    %4732 = vmatprep.subr.bf16.mxu0 %v4392
    %4733 = vmatpush1.bf16.msra.mxu0 %v4391
    %4734 = vmatprep.subr.bf16.mxu0 %v4396
    %4735 = vmatpush1.bf16.msra.mxu0 %v4395
    %4736 = vmatprep.subr.bf16.mxu0 %v4400
    %4737 = vmatpush1.bf16.msra.mxu0 %v4399
    %4738 = vmatprep.subr.bf16.mxu0 %v4404
    %4739 = vmatpush1.bf16.msra.mxu0 %v4403
    %4740 = vmatprep.subr.bf16.mxu0 %v4408
    %4741 = vmatpush1.bf16.msra.mxu0 %v4407
    %4742 = vmatprep.subr.bf16.mxu0 %v4412
    %4743 = vmatpush1.bf16.msra.mxu0 %v4411
    %4744 = vmatprep.mubr.bf16.mxu0 %v3494
    %4745 = vmatmul.mubr.bf16.gmra.mrb[0].mxu0 %v3493
    %v4746 = vpop.f32.mrb[0].mxu0
    %v4747 = vadd.f32 %v4706, %v4746
    %v4748 = vpop.f32.mrb[0].mxu0
    %v4749 = vadd.f32 %v4708, %v4748
    %v4750 = vpop.f32.mrb[0].mxu0
    %v4751 = vpop.f32.mrb[0].mxu0
    %4752 = vdwg.mxu0
    %4753 = vmatprep.subr.bf16.mxu0 %v4416
    %4754 = vmatpush1.bf16.msra.mxu0 %v4415
    %4755 = vmatprep.subr.bf16.mxu0 %v4420
    %4756 = vmatpush1.bf16.msra.mxu0 %v4419
    %4757 = vmatprep.subr.bf16.mxu0 %v4424
    %4758 = vmatpush1.bf16.msra.mxu0 %v4423
    %4759 = vmatprep.subr.bf16.mxu0 %v4428
    %4760 = vmatpush1.bf16.msra.mxu0 %v4427
    %4761 = vmatprep.subr.bf16.mxu0 %v4432
    %4762 = vmatpush1.bf16.msra.mxu0 %v4431
    %4763 = vmatprep.subr.bf16.mxu0 %v4436
    %4764 = vmatpush1.bf16.msra.mxu0 %v4435
    %4765 = vmatprep.subr.bf16.mxu0 %v4440
    %4766 = vmatpush1.bf16.msra.mxu0 %v4439
    %4767 = vmatprep.subr.bf16.mxu0 %v4444
    %4768 = vmatpush1.bf16.msra.mxu0 %v4443
    %4769 = vmatprep.subr.bf16.mxu0 %v4448
    %4770 = vmatpush1.bf16.msra.mxu0 %v4447
    %4771 = vmatprep.subr.bf16.mxu0 %v4452
    %4772 = vmatpush1.bf16.msra.mxu0 %v4451
    %4773 = vmatprep.subr.bf16.mxu0 %v4456
    %4774 = vmatpush1.bf16.msra.mxu0 %v4455
    %4775 = vmatprep.subr.bf16.mxu0 %v4460
    %4776 = vmatpush1.bf16.msra.mxu0 %v4459
    %4777 = vmatprep.subr.bf16.mxu0 %v4464
    %4778 = vmatpush1.bf16.msra.mxu0 %v4463
    %4779 = vmatprep.subr.bf16.mxu0 %v4468
    %4780 = vmatpush1.bf16.msra.mxu0 %v4467
    %4781 = vmatprep.subr.bf16.mxu0 %v4472
    %4782 = vmatpush1.bf16.msra.mxu0 %v4471
    %4783 = vmatprep.subr.bf16.mxu0 %v4476
    %4784 = vmatpush1.bf16.msra.mxu0 %v4475
    %4785 = vmatprep.mubr.bf16.mxu0 %v3496
    %4786 = vmatmul.mubr.bf16.gmra.mrb[0].mxu0 %v3495
    %v4787 = vpop.f32.mrb[0].mxu0
    %v4788 = vadd.f32 %v4747, %v4787
    %v4789 = vpop.f32.mrb[0].mxu0
    %v4790 = vadd.f32 %v4749, %v4789
    %v4791 = vpop.f32.mrb[0].mxu0
    %v4792 = vpop.f32.mrb[0].mxu0
    %4793 = vdwg.mxu0
    %4794 = vmatprep.subr.bf16.mxu0 %v4290
    %4795 = vmatpush1.bf16.msra.mxu0 %v4289
    %4796 = vmatprep.subr.bf16.mxu0 %v4294
    %4797 = vmatpush1.bf16.msra.mxu0 %v4293
    %4798 = vmatprep.subr.bf16.mxu0 %v4298
    %4799 = vmatpush1.bf16.msra.mxu0 %v4297
    %4800 = vmatprep.subr.bf16.mxu0 %v4302
    %4801 = vmatpush1.bf16.msra.mxu0 %v4301
    %4802 = vmatprep.subr.bf16.mxu0 %v4306
    %4803 = vmatpush1.bf16.msra.mxu0 %v4305
    %4804 = vmatprep.subr.bf16.mxu0 %v4310
    %4805 = vmatpush1.bf16.msra.mxu0 %v4309
    %4806 = vmatprep.subr.bf16.mxu0 %v4314
    %4807 = vmatpush1.bf16.msra.mxu0 %v4313
    %4808 = vmatprep.subr.bf16.mxu0 %v4318
    %4809 = vmatpush1.bf16.msra.mxu0 %v4317
    %4810 = vmatprep.subr.bf16.mxu0 %v4322
    %4811 = vmatpush1.bf16.msra.mxu0 %v4321
    %4812 = vmatprep.subr.bf16.mxu0 %v4326
    %4813 = vmatpush1.bf16.msra.mxu0 %v4325
    %4814 = vmatprep.subr.bf16.mxu0 %v4330
    %4815 = vmatpush1.bf16.msra.mxu0 %v4329
    %4816 = vmatprep.subr.bf16.mxu0 %v4334
    %4817 = vmatpush1.bf16.msra.mxu0 %v4333
    %4818 = vmatprep.subr.bf16.mxu0 %v4338
    %4819 = vmatpush1.bf16.msra.mxu0 %v4337
    %4820 = vmatprep.subr.bf16.mxu0 %v4342
    %4821 = vmatpush1.bf16.msra.mxu0 %v4341
    %4822 = vmatprep.subr.bf16.mxu0 %v4346
    %4823 = vmatpush1.bf16.msra.mxu0 %v4345
    %4824 = vmatprep.subr.bf16.mxu0 %v4350
    %4825 = vmatpush1.bf16.msra.mxu0 %v4349
    %4826 = vmatprep.mubr.bf16.mxu0 %v3492
    %4827 = vmatmul.mubr.bf16.gmra.mrb[0].mxu0 %v3491
    %v4828 = vpop.f32.mrb[0].mxu0
    %v4829 = vadd.f32 %v3702, %v4828
    %v4830 = vpop.f32.mrb[0].mxu0
    %v4831 = vadd.f32 %v3706, %v4830
    %v4832 = vpop.f32.mrb[0].mxu0
    %v4833 = vpop.f32.mrb[0].mxu0
    %4834 = vdwg.mxu0
    %4835 = vmatprep.subr.bf16.mxu0 %v4354
    %4836 = vmatpush1.bf16.msra.mxu0 %v4353
    %4837 = vmatprep.subr.bf16.mxu0 %v4358
    %4838 = vmatpush1.bf16.msra.mxu0 %v4357
    %4839 = vmatprep.subr.bf16.mxu0 %v4362
    %4840 = vmatpush1.bf16.msra.mxu0 %v4361
    %4841 = vmatprep.subr.bf16.mxu0 %v4366
    %4842 = vmatpush1.bf16.msra.mxu0 %v4365
    %4843 = vmatprep.subr.bf16.mxu0 %v4370
    %4844 = vmatpush1.bf16.msra.mxu0 %v4369
    %4845 = vmatprep.subr.bf16.mxu0 %v4374
    %4846 = vmatpush1.bf16.msra.mxu0 %v4373
    %4847 = vmatprep.subr.bf16.mxu0 %v4378
    %4848 = vmatpush1.bf16.msra.mxu0 %v4377
    %4849 = vmatprep.subr.bf16.mxu0 %v4382
    %4850 = vmatpush1.bf16.msra.mxu0 %v4381
    %4851 = vmatprep.subr.bf16.mxu0 %v4386
    %4852 = vmatpush1.bf16.msra.mxu0 %v4385
    %4853 = vmatprep.subr.bf16.mxu0 %v4390
    %4854 = vmatpush1.bf16.msra.mxu0 %v4389
    %4855 = vmatprep.subr.bf16.mxu0 %v4394
    %4856 = vmatpush1.bf16.msra.mxu0 %v4393
    %4857 = vmatprep.subr.bf16.mxu0 %v4398
    %4858 = vmatpush1.bf16.msra.mxu0 %v4397
    %4859 = vmatprep.subr.bf16.mxu0 %v4402
    %4860 = vmatpush1.bf16.msra.mxu0 %v4401
    %4861 = vmatprep.subr.bf16.mxu0 %v4406
    %4862 = vmatpush1.bf16.msra.mxu0 %v4405
    %4863 = vmatprep.subr.bf16.mxu0 %v4410
    %4864 = vmatpush1.bf16.msra.mxu0 %v4409
    %4865 = vmatprep.subr.bf16.mxu0 %v4414
    %4866 = vmatpush1.bf16.msra.mxu0 %v4413
    %4867 = vmatprep.mubr.bf16.mxu0 %v3494
    %4868 = vmatmul.mubr.bf16.gmra.mrb[0].mxu0 %v3493
    %v4869 = vpop.f32.mrb[0].mxu0
    %v4870 = vadd.f32 %v4829, %v4869
    %v4871 = vpop.f32.mrb[0].mxu0
    %v4872 = vadd.f32 %v4831, %v4871
    %v4873 = vpop.f32.mrb[0].mxu0
    %v4874 = vpop.f32.mrb[0].mxu0
    %4875 = vdwg.mxu0
    %4876 = vmatprep.subr.bf16.mxu0 %v4418
    %4877 = vmatpush1.bf16.msra.mxu0 %v4417
    %4878 = vmatprep.subr.bf16.mxu0 %v4422
    %4879 = vmatpush1.bf16.msra.mxu0 %v4421
    %4880 = vmatprep.subr.bf16.mxu0 %v4426
    %4881 = vmatpush1.bf16.msra.mxu0 %v4425
    %4882 = vmatprep.subr.bf16.mxu0 %v4430
    %4883 = vmatpush1.bf16.msra.mxu0 %v4429
    %4884 = vmatprep.subr.bf16.mxu0 %v4434
    %4885 = vmatpush1.bf16.msra.mxu0 %v4433
    %4886 = vmatprep.subr.bf16.mxu0 %v4438
    %4887 = vmatpush1.bf16.msra.mxu0 %v4437
    %4888 = vmatprep.subr.bf16.mxu0 %v4442
    %4889 = vmatpush1.bf16.msra.mxu0 %v4441
    %4890 = vmatprep.subr.bf16.mxu0 %v4446
    %4891 = vmatpush1.bf16.msra.mxu0 %v4445
    %4892 = vmatprep.subr.bf16.mxu0 %v4450
    %4893 = vmatpush1.bf16.msra.mxu0 %v4449
    %4894 = vmatprep.subr.bf16.mxu0 %v4454
    %4895 = vmatpush1.bf16.msra.mxu0 %v4453
    %4896 = vmatprep.subr.bf16.mxu0 %v4458
    %4897 = vmatpush1.bf16.msra.mxu0 %v4457
    %4898 = vmatprep.subr.bf16.mxu0 %v4462
    %4899 = vmatpush1.bf16.msra.mxu0 %v4461
    %4900 = vmatprep.subr.bf16.mxu0 %v4466
    %4901 = vmatpush1.bf16.msra.mxu0 %v4465
    %4902 = vmatprep.subr.bf16.mxu0 %v4470
    %4903 = vmatpush1.bf16.msra.mxu0 %v4469
    %4904 = vmatprep.subr.bf16.mxu0 %v4474
    %4905 = vmatpush1.bf16.msra.mxu0 %v4473
    %4906 = vmatprep.subr.bf16.mxu0 %v4478
    %4907 = vmatpush1.bf16.msra.mxu0 %v4477
    %4908 = vmatprep.mubr.bf16.mxu0 %v3496
    %4909 = vmatmul.mubr.bf16.gmra.mrb[0].mxu0 %v3495
    %v4910 = vpop.f32.mrb[0].mxu0
    %v4911 = vadd.f32 %v4870, %v4910
    %v4912 = vpop.f32.mrb[0].mxu0
    %v4913 = vadd.f32 %v4872, %v4912
    %v4914 = vpop.f32.mrb[0].mxu0
    %v4915 = vpop.f32.mrb[0].mxu0
    %4916 = vdwg.mxu0
    %v4917 = vmax.f32 %v4788, 0.0
    %v4918 = vmax.f32 %v4790, 0.0
    %v4919 = vmax.f32 %v4911, 0.0
    %v4920 = vmax.f32 %v4913, 0.0
    %v4921 = vpack.c.bf16 %v4917, %v4917
    %v4922 = vpack.c.bf16 %v4918, %v4918
    %v4923 = vpack.c.bf16 %v4919, %v4919
    %v4924 = vpack.c.bf16 %v4920, %v4920
    %v4925 = vld [vmem:[#allocation16] sm:$0xff]
    %v4926 = vld [vmem:[#allocation16 + $0x8] sm:$0xff]
    %v4927 = vld [vmem:[#allocation16 + $0x10] sm:$0xff]
    %v4928 = vld [vmem:[#allocation16 + $0x18] sm:$0xff]
    %v4929 = vld [vmem:[#allocation16 + $0x20] sm:$0xff]
    %v4930 = vld [vmem:[#allocation16 + $0x28] sm:$0xff]
    %v4931 = vld [vmem:[#allocation16 + $0x30] sm:$0xff]
    %v4932 = vld [vmem:[#allocation16 + $0x38] sm:$0xff]
    %v4933 = vld [vmem:[#allocation16 + $0x40] sm:$0xff]
    %v4934 = vld [vmem:[#allocation16 + $0x48] sm:$0xff]
    %v4935 = vld [vmem:[#allocation16 + $0x50] sm:$0xff]
    %v4936 = vld [vmem:[#allocation16 + $0x58] sm:$0xff]
    %v4937 = vld [vmem:[#allocation16 + $0x60] sm:$0xff]
    %v4938 = vld [vmem:[#allocation16 + $0x68] sm:$0xff]
    %v4939 = vld [vmem:[#allocation16 + $0x70] sm:$0xff]
    %v4940 = vld [vmem:[#allocation16 + $0x78] sm:$0xff]
    %v4941 = vld [vmem:[#allocation16 + $0x80] sm:$0xff]
    %v4942 = vld [vmem:[#allocation16 + $0x88] sm:$0xff]
    %v4943 = vld [vmem:[#allocation16 + $0x90] sm:$0xff]
    %v4944 = vld [vmem:[#allocation16 + $0x98] sm:$0xff]
    %v4945 = vld [vmem:[#allocation16 + $0xa0] sm:$0xff]
    %v4946 = vld [vmem:[#allocation16 + $0xa8] sm:$0xff]
    %v4947 = vld [vmem:[#allocation16 + $0xb0] sm:$0xff]
    %v4948 = vld [vmem:[#allocation16 + $0xb8] sm:$0xff]
    %v4949 = vld [vmem:[#allocation16 + $0xc0] sm:$0xff]
    %v4950 = vld [vmem:[#allocation16 + $0xc8] sm:$0xff]
    %v4951 = vld [vmem:[#allocation16 + $0xd0] sm:$0xff]
    %v4952 = vld [vmem:[#allocation16 + $0xd8] sm:$0xff]
    %v4953 = vld [vmem:[#allocation16 + $0xe0] sm:$0xff]
    %v4954 = vld [vmem:[#allocation16 + $0xe8] sm:$0xff]
    %v4955 = vld [vmem:[#allocation16 + $0xf0] sm:$0xff]
    %v4956 = vld [vmem:[#allocation16 + $0xf8] sm:$0xff]
    %v4957 = vld [vmem:[#allocation16 + $0x100] sm:$0xff]
    %v4958 = vld [vmem:[#allocation16 + $0x108] sm:$0xff]
    %v4959 = vld [vmem:[#allocation16 + $0x110] sm:$0xff]
    %v4960 = vld [vmem:[#allocation16 + $0x118] sm:$0xff]
    %v4961 = vld [vmem:[#allocation16 + $0x120] sm:$0xff]
    %v4962 = vld [vmem:[#allocation16 + $0x128] sm:$0xff]
    %v4963 = vld [vmem:[#allocation16 + $0x130] sm:$0xff]
    %v4964 = vld [vmem:[#allocation16 + $0x138] sm:$0xff]
    %v4965 = vld [vmem:[#allocation16 + $0x140] sm:$0xff]
    %v4966 = vld [vmem:[#allocation16 + $0x148] sm:$0xff]
    %v4967 = vld [vmem:[#allocation16 + $0x150] sm:$0xff]
    %v4968 = vld [vmem:[#allocation16 + $0x158] sm:$0xff]
    %v4969 = vld [vmem:[#allocation16 + $0x160] sm:$0xff]
    %v4970 = vld [vmem:[#allocation16 + $0x168] sm:$0xff]
    %v4971 = vld [vmem:[#allocation16 + $0x170] sm:$0xff]
    %v4972 = vld [vmem:[#allocation16 + $0x178] sm:$0xff]
    %v4973 = vld [vmem:[#allocation16 + $0x180] sm:$0xff]
    %v4974 = vld [vmem:[#allocation16 + $0x188] sm:$0xff]
    %v4975 = vld [vmem:[#allocation16 + $0x190] sm:$0xff]
    %v4976 = vld [vmem:[#allocation16 + $0x198] sm:$0xff]
    %v4977 = vld [vmem:[#allocation16 + $0x1a0] sm:$0xff]
    %v4978 = vld [vmem:[#allocation16 + $0x1a8] sm:$0xff]
    %v4979 = vld [vmem:[#allocation16 + $0x1b0] sm:$0xff]
    %v4980 = vld [vmem:[#allocation16 + $0x1b8] sm:$0xff]
    %v4981 = vld [vmem:[#allocation16 + $0x1c0] sm:$0xff]
    %v4982 = vld [vmem:[#allocation16 + $0x1c8] sm:$0xff]
    %v4983 = vld [vmem:[#allocation16 + $0x1d0] sm:$0xff]
    %v4984 = vld [vmem:[#allocation16 + $0x1d8] sm:$0xff]
    %v4985 = vld [vmem:[#allocation16 + $0x1e0] sm:$0xff]
    %v4986 = vld [vmem:[#allocation16 + $0x1e8] sm:$0xff]
    %v4987 = vld [vmem:[#allocation16 + $0x1f0] sm:$0xff]
    %v4988 = vld [vmem:[#allocation16 + $0x1f8] sm:$0xff]
    %v4989 = vld [vmem:[%s15] sm:$0x3]
    %v4991 = vlaneseq
    %v4992 = vshrl.u32 %v4991, 7
    %v4993 = vsub.s32 0, %v4992
    %v4994 = vrot.slane %v4989, %v4993
    %v4995 = vlaneseq
    %v4996 = vshrl.u32 %v4995, 7
    %v4997 = vsub.s32 1, %v4996
    %v4998 = vrot.slane %v4989, %v4997
    %v5065 = vunpack.c.l.b16 %v4925
    %v5066 = vunpack.c.h.b16 %v4925
    %v5067 = vunpack.c.l.b16 %v4926
    %v5068 = vunpack.c.h.b16 %v4926
    %v5069 = vunpack.c.l.b16 %v4927
    %v5070 = vunpack.c.h.b16 %v4927
    %v5071 = vunpack.c.l.b16 %v4928
    %v5072 = vunpack.c.h.b16 %v4928
    %v5073 = vunpack.c.l.b16 %v4929
    %v5074 = vunpack.c.h.b16 %v4929
    %v5075 = vunpack.c.l.b16 %v4930
    %v5076 = vunpack.c.h.b16 %v4930
    %v5077 = vunpack.c.l.b16 %v4931
    %v5078 = vunpack.c.h.b16 %v4931
    %v5079 = vunpack.c.l.b16 %v4932
    %v5080 = vunpack.c.h.b16 %v4932
    %v5081 = vunpack.c.l.b16 %v4933
    %v5082 = vunpack.c.h.b16 %v4933
    %v5083 = vunpack.c.l.b16 %v4934
    %v5084 = vunpack.c.h.b16 %v4934
    %v5085 = vunpack.c.l.b16 %v4935
    %v5086 = vunpack.c.h.b16 %v4935
    %v5087 = vunpack.c.l.b16 %v4936
    %v5088 = vunpack.c.h.b16 %v4936
    %v5089 = vunpack.c.l.b16 %v4937
    %v5090 = vunpack.c.h.b16 %v4937
    %v5091 = vunpack.c.l.b16 %v4938
    %v5092 = vunpack.c.h.b16 %v4938
    %v5093 = vunpack.c.l.b16 %v4939
    %v5094 = vunpack.c.h.b16 %v4939
    %v5095 = vunpack.c.l.b16 %v4940
    %v5096 = vunpack.c.h.b16 %v4940
    %v5097 = vunpack.c.l.b16 %v4941
    %v5098 = vunpack.c.h.b16 %v4941
    %v5099 = vunpack.c.l.b16 %v4942
    %v5100 = vunpack.c.h.b16 %v4942
    %v5101 = vunpack.c.l.b16 %v4943
    %v5102 = vunpack.c.h.b16 %v4943
    %v5103 = vunpack.c.l.b16 %v4944
    %v5104 = vunpack.c.h.b16 %v4944
    %v5105 = vunpack.c.l.b16 %v4945
    %v5106 = vunpack.c.h.b16 %v4945
    %v5107 = vunpack.c.l.b16 %v4946
    %v5108 = vunpack.c.h.b16 %v4946
    %v5109 = vunpack.c.l.b16 %v4947
    %v5110 = vunpack.c.h.b16 %v4947
    %v5111 = vunpack.c.l.b16 %v4948
    %v5112 = vunpack.c.h.b16 %v4948
    %v5113 = vunpack.c.l.b16 %v4949
    %v5114 = vunpack.c.h.b16 %v4949
    %v5115 = vunpack.c.l.b16 %v4950
    %v5116 = vunpack.c.h.b16 %v4950
    %v5117 = vunpack.c.l.b16 %v4951
    %v5118 = vunpack.c.h.b16 %v4951
    %v5119 = vunpack.c.l.b16 %v4952
    %v5120 = vunpack.c.h.b16 %v4952
    %v5121 = vunpack.c.l.b16 %v4953
    %v5122 = vunpack.c.h.b16 %v4953
    %v5123 = vunpack.c.l.b16 %v4954
    %v5124 = vunpack.c.h.b16 %v4954
    %v5125 = vunpack.c.l.b16 %v4955
    %v5126 = vunpack.c.h.b16 %v4955
    %v5127 = vunpack.c.l.b16 %v4956
    %v5128 = vunpack.c.h.b16 %v4956
    %v5129 = vunpack.c.l.b16 %v4957
    %v5130 = vunpack.c.h.b16 %v4957
    %v5131 = vunpack.c.l.b16 %v4958
    %v5132 = vunpack.c.h.b16 %v4958
    %v5133 = vunpack.c.l.b16 %v4959
    %v5134 = vunpack.c.h.b16 %v4959
    %v5135 = vunpack.c.l.b16 %v4960
    %v5136 = vunpack.c.h.b16 %v4960
    %v5137 = vunpack.c.l.b16 %v4961
    %v5138 = vunpack.c.h.b16 %v4961
    %v5139 = vunpack.c.l.b16 %v4962
    %v5140 = vunpack.c.h.b16 %v4962
    %v5141 = vunpack.c.l.b16 %v4963
    %v5142 = vunpack.c.h.b16 %v4963
    %v5143 = vunpack.c.l.b16 %v4964
    %v5144 = vunpack.c.h.b16 %v4964
    %v5145 = vunpack.c.l.b16 %v4965
    %v5146 = vunpack.c.h.b16 %v4965
    %v5147 = vunpack.c.l.b16 %v4966
    %v5148 = vunpack.c.h.b16 %v4966
    %v5149 = vunpack.c.l.b16 %v4967
    %v5150 = vunpack.c.h.b16 %v4967
    %v5151 = vunpack.c.l.b16 %v4968
    %v5152 = vunpack.c.h.b16 %v4968
    %v5153 = vunpack.c.l.b16 %v4969
    %v5154 = vunpack.c.h.b16 %v4969
    %v5155 = vunpack.c.l.b16 %v4970
    %v5156 = vunpack.c.h.b16 %v4970
    %v5157 = vunpack.c.l.b16 %v4971
    %v5158 = vunpack.c.h.b16 %v4971
    %v5159 = vunpack.c.l.b16 %v4972
    %v5160 = vunpack.c.h.b16 %v4972
    %v5161 = vunpack.c.l.b16 %v4973
    %v5162 = vunpack.c.h.b16 %v4973
    %v5163 = vunpack.c.l.b16 %v4974
    %v5164 = vunpack.c.h.b16 %v4974
    %v5165 = vunpack.c.l.b16 %v4975
    %v5166 = vunpack.c.h.b16 %v4975
    %v5167 = vunpack.c.l.b16 %v4976
    %v5168 = vunpack.c.h.b16 %v4976
    %v5169 = vunpack.c.l.b16 %v4977
    %v5170 = vunpack.c.h.b16 %v4977
    %v5171 = vunpack.c.l.b16 %v4978
    %v5172 = vunpack.c.h.b16 %v4978
    %v5173 = vunpack.c.l.b16 %v4979
    %v5174 = vunpack.c.h.b16 %v4979
    %v5175 = vunpack.c.l.b16 %v4980
    %v5176 = vunpack.c.h.b16 %v4980
    %v5177 = vunpack.c.l.b16 %v4981
    %v5178 = vunpack.c.h.b16 %v4981
    %v5179 = vunpack.c.l.b16 %v4982
    %v5180 = vunpack.c.h.b16 %v4982
    %v5181 = vunpack.c.l.b16 %v4983
    %v5182 = vunpack.c.h.b16 %v4983
    %v5183 = vunpack.c.l.b16 %v4984
    %v5184 = vunpack.c.h.b16 %v4984
    %v5185 = vunpack.c.l.b16 %v4985
    %v5186 = vunpack.c.h.b16 %v4985
    %v5187 = vunpack.c.l.b16 %v4986
    %v5188 = vunpack.c.h.b16 %v4986
    %v5189 = vunpack.c.l.b16 %v4987
    %v5190 = vunpack.c.h.b16 %v4987
    %v5191 = vunpack.c.l.b16 %v4988
    %v5192 = vunpack.c.h.b16 %v4988
    %v5193 = vpack.c.b16 %v5067, %v5065
    %v5194 = vpack.c.b16 %v5068, %v5066
    %v5195 = vpack.c.b16 %v5071, %v5069
    %v5196 = vpack.c.b16 %v5072, %v5070
    %v5197 = vpack.c.b16 %v5075, %v5073
    %v5198 = vpack.c.b16 %v5076, %v5074
    %v5199 = vpack.c.b16 %v5079, %v5077
    %v5200 = vpack.c.b16 %v5080, %v5078
    %v5201 = vpack.c.b16 %v5083, %v5081
    %v5202 = vpack.c.b16 %v5084, %v5082
    %v5203 = vpack.c.b16 %v5087, %v5085
    %v5204 = vpack.c.b16 %v5088, %v5086
    %v5205 = vpack.c.b16 %v5091, %v5089
    %v5206 = vpack.c.b16 %v5092, %v5090
    %v5207 = vpack.c.b16 %v5095, %v5093
    %v5208 = vpack.c.b16 %v5096, %v5094
    %v5209 = vpack.c.b16 %v5099, %v5097
    %v5210 = vpack.c.b16 %v5100, %v5098
    %v5211 = vpack.c.b16 %v5103, %v5101
    %v5212 = vpack.c.b16 %v5104, %v5102
    %v5213 = vpack.c.b16 %v5107, %v5105
    %v5214 = vpack.c.b16 %v5108, %v5106
    %v5215 = vpack.c.b16 %v5111, %v5109
    %v5216 = vpack.c.b16 %v5112, %v5110
    %v5217 = vpack.c.b16 %v5115, %v5113
    %v5218 = vpack.c.b16 %v5116, %v5114
    %v5219 = vpack.c.b16 %v5119, %v5117
    %v5220 = vpack.c.b16 %v5120, %v5118
    %v5221 = vpack.c.b16 %v5123, %v5121
    %v5222 = vpack.c.b16 %v5124, %v5122
    %v5223 = vpack.c.b16 %v5127, %v5125
    %v5224 = vpack.c.b16 %v5128, %v5126
    %v5225 = vpack.c.b16 %v5131, %v5129
    %v5226 = vpack.c.b16 %v5132, %v5130
    %v5227 = vpack.c.b16 %v5135, %v5133
    %v5228 = vpack.c.b16 %v5136, %v5134
    %v5229 = vpack.c.b16 %v5139, %v5137
    %v5230 = vpack.c.b16 %v5140, %v5138
    %v5231 = vpack.c.b16 %v5143, %v5141
    %v5232 = vpack.c.b16 %v5144, %v5142
    %v5233 = vpack.c.b16 %v5147, %v5145
    %v5234 = vpack.c.b16 %v5148, %v5146
    %v5235 = vpack.c.b16 %v5151, %v5149
    %v5236 = vpack.c.b16 %v5152, %v5150
    %v5237 = vpack.c.b16 %v5155, %v5153
    %v5238 = vpack.c.b16 %v5156, %v5154
    %v5239 = vpack.c.b16 %v5159, %v5157
    %v5240 = vpack.c.b16 %v5160, %v5158
    %v5241 = vpack.c.b16 %v5163, %v5161
    %v5242 = vpack.c.b16 %v5164, %v5162
    %v5243 = vpack.c.b16 %v5167, %v5165
    %v5244 = vpack.c.b16 %v5168, %v5166
    %v5245 = vpack.c.b16 %v5171, %v5169
    %v5246 = vpack.c.b16 %v5172, %v5170
    %v5247 = vpack.c.b16 %v5175, %v5173
    %v5248 = vpack.c.b16 %v5176, %v5174
    %v5249 = vpack.c.b16 %v5179, %v5177
    %v5250 = vpack.c.b16 %v5180, %v5178
    %v5251 = vpack.c.b16 %v5183, %v5181
    %v5252 = vpack.c.b16 %v5184, %v5182
    %v5253 = vpack.c.b16 %v5187, %v5185
    %v5254 = vpack.c.b16 %v5188, %v5186
    %v5255 = vpack.c.b16 %v5191, %v5189
    %v5256 = vpack.c.b16 %v5192, %v5190
    %5321 = vmatprep.subr.bf16.mxu0 %v5194
    %5322 = vmatpush1.bf16.msra.mxu0 %v5193
    %5323 = vmatprep.subr.bf16.mxu0 %v5196
    %5324 = vmatpush1.bf16.msra.mxu0 %v5195
    %5325 = vmatprep.subr.bf16.mxu0 %v5198
    %5326 = vmatpush1.bf16.msra.mxu0 %v5197
    %5327 = vmatprep.subr.bf16.mxu0 %v5200
    %5328 = vmatpush1.bf16.msra.mxu0 %v5199
    %5329 = vmatprep.subr.bf16.mxu0 %v5202
    %5330 = vmatpush1.bf16.msra.mxu0 %v5201
    %5331 = vmatprep.subr.bf16.mxu0 %v5204
    %5332 = vmatpush1.bf16.msra.mxu0 %v5203
    %5333 = vmatprep.subr.bf16.mxu0 %v5206
    %5334 = vmatpush1.bf16.msra.mxu0 %v5205
    %5335 = vmatprep.subr.bf16.mxu0 %v5208
    %5336 = vmatpush1.bf16.msra.mxu0 %v5207
    %5337 = vmatprep.subr.bf16.mxu0 %v5210
    %5338 = vmatpush1.bf16.msra.mxu0 %v5209
    %5339 = vmatprep.subr.bf16.mxu0 %v5212
    %5340 = vmatpush1.bf16.msra.mxu0 %v5211
    %5341 = vmatprep.subr.bf16.mxu0 %v5214
    %5342 = vmatpush1.bf16.msra.mxu0 %v5213
    %5343 = vmatprep.subr.bf16.mxu0 %v5216
    %5344 = vmatpush1.bf16.msra.mxu0 %v5215
    %5345 = vmatprep.subr.bf16.mxu0 %v5218
    %5346 = vmatpush1.bf16.msra.mxu0 %v5217
    %5347 = vmatprep.subr.bf16.mxu0 %v5220
    %5348 = vmatpush1.bf16.msra.mxu0 %v5219
    %5349 = vmatprep.subr.bf16.mxu0 %v5222
    %5350 = vmatpush1.bf16.msra.mxu0 %v5221
    %5351 = vmatprep.subr.bf16.mxu0 %v5224
    %5352 = vmatpush1.bf16.msra.mxu0 %v5223
    %5353 = vmatprep.mubr.bf16.mxu0 %v4922
    %5354 = vmatmul.mubr.bf16.gmra.mrb[0].mxu0 %v4921
    %v5355 = vpop.f32.mrb[0].mxu0
    %v5356 = vadd.f32 %v4994, %v5355
    %v5357 = vpop.f32.mrb[0].mxu0
    %v5358 = vadd.f32 %v4998, %v5357
    %v5359 = vpop.f32.mrb[0].mxu0
    %v5360 = vpop.f32.mrb[0].mxu0
    %5361 = vdwg.mxu0
    %5362 = vmatprep.subr.bf16.mxu0 %v5226
    %5363 = vmatpush1.bf16.msra.mxu0 %v5225
    %5364 = vmatprep.subr.bf16.mxu0 %v5228
    %5365 = vmatpush1.bf16.msra.mxu0 %v5227
    %5366 = vmatprep.subr.bf16.mxu0 %v5230
    %5367 = vmatpush1.bf16.msra.mxu0 %v5229
    %5368 = vmatprep.subr.bf16.mxu0 %v5232
    %5369 = vmatpush1.bf16.msra.mxu0 %v5231
    %5370 = vmatprep.subr.bf16.mxu0 %v5234
    %5371 = vmatpush1.bf16.msra.mxu0 %v5233
    %5372 = vmatprep.subr.bf16.mxu0 %v5236
    %5373 = vmatpush1.bf16.msra.mxu0 %v5235
    %5374 = vmatprep.subr.bf16.mxu0 %v5238
    %5375 = vmatpush1.bf16.msra.mxu0 %v5237
    %5376 = vmatprep.subr.bf16.mxu0 %v5240
    %5377 = vmatpush1.bf16.msra.mxu0 %v5239
    %5378 = vmatprep.subr.bf16.mxu0 %v5242
    %5379 = vmatpush1.bf16.msra.mxu0 %v5241
    %5380 = vmatprep.subr.bf16.mxu0 %v5244
    %5381 = vmatpush1.bf16.msra.mxu0 %v5243
    %5382 = vmatprep.subr.bf16.mxu0 %v5246
    %5383 = vmatpush1.bf16.msra.mxu0 %v5245
    %5384 = vmatprep.subr.bf16.mxu0 %v5248
    %5385 = vmatpush1.bf16.msra.mxu0 %v5247
    %5386 = vmatprep.subr.bf16.mxu0 %v5250
    %5387 = vmatpush1.bf16.msra.mxu0 %v5249
    %5388 = vmatprep.subr.bf16.mxu0 %v5252
    %5389 = vmatpush1.bf16.msra.mxu0 %v5251
    %5390 = vmatprep.subr.bf16.mxu0 %v5254
    %5391 = vmatpush1.bf16.msra.mxu0 %v5253
    %5392 = vmatprep.subr.bf16.mxu0 %v5256
    %5393 = vmatpush1.bf16.msra.mxu0 %v5255
    %5394 = vmatprep.mubr.bf16.mxu0 %v4924
    %5395 = vmatmul.mubr.bf16.gmra.mrb[0].mxu0 %v4923
    %v5396 = vpop.f32.mrb[0].mxu0
    %v5397 = vadd.f32 %v5356, %v5396
    %v5398 = vpop.f32.mrb[0].mxu0
    %v5399 = vadd.f32 %v5358, %v5398
    %v5400 = vpop.f32.mrb[0].mxu0
    %v5401 = vpop.f32.mrb[0].mxu0
    %5402 = vdwg.mxu0
    %v5403 = vmax.f32 %v5397, 0.0
    %v5404 = vmax.f32 %v5399, 0.0
    %v5405 = vpack.c.bf16 %v5403, %v5403
    %v5406 = vpack.c.bf16 %v5404, %v5404
    %v5407 = vld [vmem:[#allocation17] sm:$0xff]
    %v5408 = vld [vmem:[#allocation17 + $0x8] sm:$0xff]
    %v5409 = vld [vmem:[#allocation17 + $0x10] sm:$0xff]
    %v5410 = vld [vmem:[#allocation17 + $0x18] sm:$0xff]
    %v5411 = vld [vmem:[#allocation17 + $0x20] sm:$0xff]
    %v5412 = vld [vmem:[#allocation17 + $0x28] sm:$0xff]
    %v5413 = vld [vmem:[#allocation17 + $0x30] sm:$0xff]
    %v5414 = vld [vmem:[#allocation17 + $0x38] sm:$0xff]
    %v5415 = vld [vmem:[#allocation17 + $0x40] sm:$0xff]
    %v5416 = vld [vmem:[#allocation17 + $0x48] sm:$0xff]
    %v5417 = vld [vmem:[#allocation17 + $0x50] sm:$0xff]
    %v5418 = vld [vmem:[#allocation17 + $0x58] sm:$0xff]
    %v5419 = vld [vmem:[#allocation17 + $0x60] sm:$0xff]
    %v5420 = vld [vmem:[#allocation17 + $0x68] sm:$0xff]
    %v5421 = vld [vmem:[#allocation17 + $0x70] sm:$0xff]
    %v5422 = vld [vmem:[#allocation17 + $0x78] sm:$0xff]
    %v5423 = vld [vmem:[#allocation17 + $0x80] sm:$0xff]
    %v5424 = vld [vmem:[#allocation17 + $0x88] sm:$0xff]
    %v5425 = vld [vmem:[#allocation17 + $0x90] sm:$0xff]
    %v5426 = vld [vmem:[#allocation17 + $0x98] sm:$0xff]
    %v5427 = vld [vmem:[#allocation17 + $0xa0] sm:$0xff]
    %v5428 = vld [vmem:[#allocation17 + $0xa8] sm:$0xff]
    %v5429 = vld [vmem:[#allocation17 + $0xb0] sm:$0xff]
    %v5430 = vld [vmem:[#allocation17 + $0xb8] sm:$0xff]
    %v5431 = vld [vmem:[#allocation17 + $0xc0] sm:$0xff]
    %v5432 = vld [vmem:[#allocation17 + $0xc8] sm:$0xff]
    %v5433 = vld [vmem:[#allocation17 + $0xd0] sm:$0xff]
    %v5434 = vld [vmem:[#allocation17 + $0xd8] sm:$0xff]
    %v5435 = vld [vmem:[#allocation17 + $0xe0] sm:$0xff]
    %v5436 = vld [vmem:[#allocation17 + $0xe8] sm:$0xff]
    %v5437 = vld [vmem:[#allocation17 + $0xf0] sm:$0xff]
    %v5438 = vld [vmem:[#allocation17 + $0xf8] sm:$0xff]
    %v5439 = vld [vmem:[%s17] sm:$0x3]
    %v5441 = vlaneseq
    %v5442 = vshrl.u32 %v5441, 7
    %v5443 = vsub.s32 0, %v5442
    %v5444 = vrot.slane %v5439, %v5443
    %v5445 = vlaneseq
    %v5446 = vshrl.u32 %v5445, 7
    %v5447 = vsub.s32 1, %v5446
    %v5448 = vrot.slane %v5439, %v5447
    %v5483 = vunpack.c.l.b16 %v5407
    %v5484 = vunpack.c.h.b16 %v5407
    %v5485 = vunpack.c.l.b16 %v5408
    %v5486 = vunpack.c.h.b16 %v5408
    %v5487 = vunpack.c.l.b16 %v5409
    %v5488 = vunpack.c.h.b16 %v5409
    %v5489 = vunpack.c.l.b16 %v5410
    %v5490 = vunpack.c.h.b16 %v5410
    %v5491 = vunpack.c.l.b16 %v5411
    %v5492 = vunpack.c.h.b16 %v5411
    %v5493 = vunpack.c.l.b16 %v5412
    %v5494 = vunpack.c.h.b16 %v5412
    %v5495 = vunpack.c.l.b16 %v5413
    %v5496 = vunpack.c.h.b16 %v5413
    %v5497 = vunpack.c.l.b16 %v5414
    %v5498 = vunpack.c.h.b16 %v5414
    %v5499 = vunpack.c.l.b16 %v5415
    %v5500 = vunpack.c.h.b16 %v5415
    %v5501 = vunpack.c.l.b16 %v5416
    %v5502 = vunpack.c.h.b16 %v5416
    %v5503 = vunpack.c.l.b16 %v5417
    %v5504 = vunpack.c.h.b16 %v5417
    %v5505 = vunpack.c.l.b16 %v5418
    %v5506 = vunpack.c.h.b16 %v5418
    %v5507 = vunpack.c.l.b16 %v5419
    %v5508 = vunpack.c.h.b16 %v5419
    %v5509 = vunpack.c.l.b16 %v5420
    %v5510 = vunpack.c.h.b16 %v5420
    %v5511 = vunpack.c.l.b16 %v5421
    %v5512 = vunpack.c.h.b16 %v5421
    %v5513 = vunpack.c.l.b16 %v5422
    %v5514 = vunpack.c.h.b16 %v5422
    %v5515 = vunpack.c.l.b16 %v5423
    %v5516 = vunpack.c.h.b16 %v5423
    %v5517 = vunpack.c.l.b16 %v5424
    %v5518 = vunpack.c.h.b16 %v5424
    %v5519 = vunpack.c.l.b16 %v5425
    %v5520 = vunpack.c.h.b16 %v5425
    %v5521 = vunpack.c.l.b16 %v5426
    %v5522 = vunpack.c.h.b16 %v5426
    %v5523 = vunpack.c.l.b16 %v5427
    %v5524 = vunpack.c.h.b16 %v5427
    %v5525 = vunpack.c.l.b16 %v5428
    %v5526 = vunpack.c.h.b16 %v5428
    %v5527 = vunpack.c.l.b16 %v5429
    %v5528 = vunpack.c.h.b16 %v5429
    %v5529 = vunpack.c.l.b16 %v5430
    %v5530 = vunpack.c.h.b16 %v5430
    %v5531 = vunpack.c.l.b16 %v5431
    %v5532 = vunpack.c.h.b16 %v5431
    %v5533 = vunpack.c.l.b16 %v5432
    %v5534 = vunpack.c.h.b16 %v5432
    %v5535 = vunpack.c.l.b16 %v5433
    %v5536 = vunpack.c.h.b16 %v5433
    %v5537 = vunpack.c.l.b16 %v5434
    %v5538 = vunpack.c.h.b16 %v5434
    %v5539 = vunpack.c.l.b16 %v5435
    %v5540 = vunpack.c.h.b16 %v5435
    %v5541 = vunpack.c.l.b16 %v5436
    %v5542 = vunpack.c.h.b16 %v5436
    %v5543 = vunpack.c.l.b16 %v5437
    %v5544 = vunpack.c.h.b16 %v5437
    %v5545 = vunpack.c.l.b16 %v5438
    %v5546 = vunpack.c.h.b16 %v5438
    %v5547 = vpack.c.b16 %v5485, %v5483
    %v5548 = vpack.c.b16 %v5486, %v5484
    %v5549 = vpack.c.b16 %v5489, %v5487
    %v5550 = vpack.c.b16 %v5490, %v5488
    %v5551 = vpack.c.b16 %v5493, %v5491
    %v5552 = vpack.c.b16 %v5494, %v5492
    %v5553 = vpack.c.b16 %v5497, %v5495
    %v5554 = vpack.c.b16 %v5498, %v5496
    %v5555 = vpack.c.b16 %v5501, %v5499
    %v5556 = vpack.c.b16 %v5502, %v5500
    %v5557 = vpack.c.b16 %v5505, %v5503
    %v5558 = vpack.c.b16 %v5506, %v5504
    %v5559 = vpack.c.b16 %v5509, %v5507
    %v5560 = vpack.c.b16 %v5510, %v5508
    %v5561 = vpack.c.b16 %v5513, %v5511
    %v5562 = vpack.c.b16 %v5514, %v5512
    %v5563 = vpack.c.b16 %v5517, %v5515
    %v5564 = vpack.c.b16 %v5518, %v5516
    %v5565 = vpack.c.b16 %v5521, %v5519
    %v5566 = vpack.c.b16 %v5522, %v5520
    %v5567 = vpack.c.b16 %v5525, %v5523
    %v5568 = vpack.c.b16 %v5526, %v5524
    %v5569 = vpack.c.b16 %v5529, %v5527
    %v5570 = vpack.c.b16 %v5530, %v5528
    %v5571 = vpack.c.b16 %v5533, %v5531
    %v5572 = vpack.c.b16 %v5534, %v5532
    %v5573 = vpack.c.b16 %v5537, %v5535
    %v5574 = vpack.c.b16 %v5538, %v5536
    %v5575 = vpack.c.b16 %v5541, %v5539
    %v5576 = vpack.c.b16 %v5542, %v5540
    %v5577 = vpack.c.b16 %v5545, %v5543
    %v5578 = vpack.c.b16 %v5546, %v5544
    %5611 = vmatprep.subr.bf16.mxu0 %v5548
    %5612 = vmatpush1.bf16.msra.mxu0 %v5547
    %5613 = vmatprep.subr.bf16.mxu0 %v5550
    %5614 = vmatpush1.bf16.msra.mxu0 %v5549
    %5615 = vmatprep.subr.bf16.mxu0 %v5552
    %5616 = vmatpush1.bf16.msra.mxu0 %v5551
    %5617 = vmatprep.subr.bf16.mxu0 %v5554
    %5618 = vmatpush1.bf16.msra.mxu0 %v5553
    %5619 = vmatprep.subr.bf16.mxu0 %v5556
    %5620 = vmatpush1.bf16.msra.mxu0 %v5555
    %5621 = vmatprep.subr.bf16.mxu0 %v5558
    %5622 = vmatpush1.bf16.msra.mxu0 %v5557
    %5623 = vmatprep.subr.bf16.mxu0 %v5560
    %5624 = vmatpush1.bf16.msra.mxu0 %v5559
    %5625 = vmatprep.subr.bf16.mxu0 %v5562
    %5626 = vmatpush1.bf16.msra.mxu0 %v5561
    %5627 = vmatprep.subr.bf16.mxu0 %v5564
    %5628 = vmatpush1.bf16.msra.mxu0 %v5563
    %5629 = vmatprep.subr.bf16.mxu0 %v5566
    %5630 = vmatpush1.bf16.msra.mxu0 %v5565
    %5631 = vmatprep.subr.bf16.mxu0 %v5568
    %5632 = vmatpush1.bf16.msra.mxu0 %v5567
    %5633 = vmatprep.subr.bf16.mxu0 %v5570
    %5634 = vmatpush1.bf16.msra.mxu0 %v5569
    %5635 = vmatprep.subr.bf16.mxu0 %v5572
    %5636 = vmatpush1.bf16.msra.mxu0 %v5571
    %5637 = vmatprep.subr.bf16.mxu0 %v5574
    %5638 = vmatpush1.bf16.msra.mxu0 %v5573
    %5639 = vmatprep.subr.bf16.mxu0 %v5576
    %5640 = vmatpush1.bf16.msra.mxu0 %v5575
    %5641 = vmatprep.subr.bf16.mxu0 %v5578
    %5642 = vmatpush1.bf16.msra.mxu0 %v5577
    %5643 = vmatprep.mubr.bf16.mxu0 %v5406
    %5644 = vmatmul.mubr.bf16.gmra.mrb[0].mxu0 %v5405
    %v5645 = vpop.f32.mrb[0].mxu0
    %v5646 = vadd.f32 %v5444, %v5645
    %v5647 = vpop.f32.mrb[0].mxu0
    %v5648 = vadd.f32 %v5448, %v5647
    %v5649 = vpop.f32.mrb[0].mxu0
    %v5650 = vpop.f32.mrb[0].mxu0
    %5651 = vdwg.mxu0
    %v5652 = vtanh.pop %v5646
    %v5653 = vtanh.pop %v5648
    %5654 = vst [vmem:[#allocation19] sm:$0xff] %v5652
    %5655 = vst [vmem:[#allocation19 + $0x8] sm:$0xff] %v5653
    // Predicated region
    $region114: #{tpu_custom_call.1} parent=1 // pred_check
      _
    $region115: #{tpu_custom_call.1} parent=1 // pred_check_branch
      %5657 = sbr.rel (0) target = $region117
    $region116: #{tpu_custom_call.1} parent=1 // pred_region
      %s5659 = ssub.s32 256, 256
      %5660 = vsyncadd [#allocation4], %s5659
      %s5662 = sshll.u32 [#allocation19], 4
      %s5663 = int_to_ptr.vmem [resolvable:$true] %s5662
      %5665 = dma.vmem_to_hbm [thread:$0]  %s5663, 256, %s18, [#allocation4]
    $region117: #{tpu_custom_call.1} parent=1 // pred_fallthru
      _
    // Predicated region
    $region118: #{tpu_custom_call.1} parent=1 // pred_check
      _
    $region119: #{tpu_custom_call.1} parent=1 // pred_check_branch
      %5667 = sbr.rel (0) target = $region121
    $region120: #{tpu_custom_call.1} parent=1 // pred_region
      %s5669 = ssub.s32 128, 128
      %5670 = vsyncadd [#allocation21], %s5669
      %s5672 = sshll.u32 [#allocation20], 4
      %s5673 = int_to_ptr.vmem [resolvable:$true] %s5672
      %5675 = dma.vmem_to_hbm [thread:$0]  %s5673, 128, %s19, [#allocation21]
    $region121: #{tpu_custom_call.1} parent=1 // pred_fallthru
      _
    // Predicated region
    $region122: #{tpu_custom_call.1} parent=1 // pred_check
      _
    $region123: #{tpu_custom_call.1} parent=1 // pred_check_branch
      %5677 = sbr.rel (0) target = $region125
    $region124: #{tpu_custom_call.1} parent=1 // pred_region
      %5678 = dma.done [#allocation4], 256
    $region125: #{tpu_custom_call.1} parent=1 // pred_fallthru
      _
    // Predicated region
    $region126: #{tpu_custom_call.1} parent=1 // pred_check
      _
    $region127: #{tpu_custom_call.1} parent=1 // pred_check_branch
      %5680 = sbr.rel (0) target = $region129
    $region128: #{tpu_custom_call.1} parent=1 // pred_region
      %5681 = dma.done [#allocation21], 128
    $region129: #{tpu_custom_call.1} parent=1 // pred_fallthru
      _
    %5682 = vsyncpa [#allocation3], 1
    %5683 = vsyncpa [#allocation6], 1
    %5684 = vsyncpa [#allocation9], 1
    %5685 = vsyncpa [#allocation12], 1
    %5686 = vsyncpa [#allocation15], 1
    %5687 = vsyncpa [#allocation18], 1
    %5688 = vsyncpa [#allocation4], 1
    %5689 = vsyncpa [#allocation21], 1

</llo_original>
